<compile_context>
chip_gen: v5e
topology: v5e:2x2
jax: 0.10.0
libtpu: 0.0.40
codegen_flags: <defaults>
</compile_context>

<pallas_src>
import jax
import jax.numpy as jnp
from jax import lax
from jax.experimental import pallas as pl
from jax.experimental.pallas import tpu as pltpu


def convstack_kernel(x_ref, w1_ref, b1_ref, w2_ref, b2_ref, w3_ref, b3_ref,
                     wfc_ref, bfc_ref, out_ref, pad1, pad2, p3):
    # Static shape bookkeeping (all shapes known at trace time).
    Fp, Tp = x_ref.shape                 # padded freq / time extents
    F, T = Fp - 2, Tp - 2
    C1 = w2_ref.shape[1]                 # conv1/conv2 channels
    C2 = w3_ref.shape[1]                 # conv3 channels
    F2 = F // 2                          # freq rows after first MaxPool2d((1,2))
    Fq = F2 // 2                         # freq rows after second MaxPool2d((1,2))
    f32 = jnp.float32
    bf16 = jnp.bfloat16

    # ---- Zero only the halo rows / columns of the padded scratch planes -------
    # (interiors are fully overwritten below; re-zeroing every grid step keeps
    #  correctness under "parallel" megacore scheduling and is far cheaper than
    #  re-zeroing the full volumes).
    pad1[0:C1, :] = jnp.zeros((C1, Tp), f32)                        # freq halo 0
    pad1[(F + 1) * C1:(F + 2) * C1, :] = jnp.zeros((C1, Tp), f32)   # freq halo F+1
    pad1[:, 0:1] = jnp.zeros((pad1.shape[0], 1), f32)               # time halos
    pad1[:, T + 1:T + 2] = jnp.zeros((pad1.shape[0], 1), f32)
    pad2[0:C1, :] = jnp.zeros((C1, Tp), f32)
    pad2[(F2 + 1) * C1:(F2 + 2) * C1, :] = jnp.zeros((C1, Tp), f32)
    pad2[:, 0:1] = jnp.zeros((pad2.shape[0], 1), f32)
    pad2[:, T + 1:T + 2] = jnp.zeros((pad2.shape[0], 1), f32)

    # Hoist all weight / bias loads out of the row loops.
    w1_taps = [w1_ref[u] for u in range(3)]     # 3 x (C1, 3)      f32
    w2_taps = [w2_ref[u] for u in range(3)]     # 3 x (C1, 3*C1)   bf16
    w3_taps = [w3_ref[u] for u in range(3)]     # 3 x (C2, 3*C1)   bf16
    b1 = b1_ref[...]
    b2 = b2_ref[...]
    b3 = b3_ref[...]

    # One 3x3-conv output row, raw accumulator (no bias / ReLU).  The flattened
    # (freq*channel, time) layout makes rows r..r+2 a contiguous (3*C_in, Tp)
    # slab, so each time tap u is one bf16 MXU dot with K = 3*C_in (f32 accum).
    def conv_row(src, w_taps, r, c_in):
        slab = src[r * c_in:(r + 3) * c_in, :].astype(bf16)         # (3*C_in, Tp)
        acc = jnp.dot(w_taps[0], slab[:, 0:T], preferred_element_type=f32)
        acc += jnp.dot(w_taps[1], slab[:, 1:T + 1], preferred_element_type=f32)
        acc += jnp.dot(w_taps[2], slab[:, 2:T + 2], preferred_element_type=f32)
        return acc                                                  # (C_out, T) f32

    # ---- Conv1 (in_ch = 1) + folded BN + ReLU -> pad1 interior (MXU, f32) -----
    # Same tap folding on the raw input: one (C1, 3) x (3, T) dot per time tap.
    for f in range(F):
        slab = x_ref[f:f + 3, :]                                    # (3, Tp) f32
        acc = jnp.dot(w1_taps[0], slab[:, 0:T], preferred_element_type=f32)
        acc += jnp.dot(w1_taps[1], slab[:, 1:T + 1], preferred_element_type=f32)
        acc += jnp.dot(w1_taps[2], slab[:, 2:T + 2], preferred_element_type=f32)
        pad1[(f + 1) * C1:(f + 2) * C1, 1:T + 1] = jnp.maximum(acc + b1, 0.0)

    # ---- Conv2 + folded BN + ReLU + MaxPool2d((1,2)) over freq -> pad2 --------
    # Bias + ReLU applied once after the pool (exact identity).
    for j in range(F2):
        a0 = conv_row(pad1, w2_taps, 2 * j, C1)
        a1 = conv_row(pad1, w2_taps, 2 * j + 1, C1)
        pad2[(j + 1) * C1:(j + 2) * C1, 1:T + 1] = jnp.maximum(
            jnp.maximum(a0, a1) + b2, 0.0)

    # ---- Conv3 + folded BN + ReLU + MaxPool2d((1,2)) -> p3 (flat FC features) -
    # p3 row index = q*C2 + c (freq-major); the FC weight is permuted to match.
    for q in range(Fq):
        a0 = conv_row(pad2, w3_taps, 2 * q, C1)
        a1 = conv_row(pad2, w3_taps, 2 * q + 1, C1)
        p3[q * C2:(q + 1) * C2, :] = jnp.maximum(jnp.maximum(a0, a1) + b3, 0.0)

    # ---- FC (Linear): single fused (OUT, K) x (K, T) bf16 MXU matmul ----------
    out_ref[...] = jnp.dot(wfc_ref[...], p3[...].astype(bf16),
                           preferred_element_type=f32) + bfc_ref[...]


def convstack_forward(mel, params):
    """mel: (B, T, F_in) float32 -> (B, T, OUT) float32 (eval-mode forward)."""
    B, T, F = mel.shape
    OUT = params['wfc'].shape[0]
    C1 = OUT // 16
    C2 = OUT // 8
    F2 = F // 2
    Fq = F2 // 2
    K = Fq * C2
    Fp, Tp = F + 2, T + 2
    eps = 1e-5
    f32, bf16 = jnp.float32, jnp.bfloat16

    # Fold eval-mode BatchNorm into effective conv weights / biases (glue).
    def fold(w, cb, bn):
        g, be, m, v = bn
        scale = g / jnp.sqrt(v + eps)
        w_eff = (w * scale[:, None, None, None]).astype(f32)
        b_eff = ((cb - m) * scale + be).astype(f32)
        return w_eff, b_eff

    w1f, b1f = fold(params['w1'], params['cb1'], params['bn1'])   # (C1,1,3,3)
    w2f, b2f = fold(params['w2'], params['cb2'], params['bn2'])   # (C1,C1,3,3)
    w3f, b3f = fold(params['w3'], params['cb3'], params['bn3'])   # (C2,C1,3,3)

    # Conv1 weights as 3 per-time-tap (C1, 3) matrices (columns = freq tap v).
    w1u = jnp.transpose(w1f[:, 0], (1, 0, 2))                     # (3, C1, 3) f32
    # Conv2/Conv3 weights as 3 per-time-tap (C_out, 3*C_in) matrices, bf16.
    # Column index v*C_in + c_in matches the flattened scratch slab rows.
    w2u = jnp.transpose(w2f, (2, 0, 3, 1)).reshape(3, C1, 3 * C1).astype(bf16)
    w3u = jnp.transpose(w3f, (2, 0, 3, 1)).reshape(3, C2, 3 * C1).astype(bf16)
    b1m = b1f.reshape(C1, 1)
    b2m = b2f.reshape(C1, 1)
    b3m = b3f.reshape(C2, 1)

    # FC weight permuted to the kernel's freq-major feature order (bf16):
    # column j*C2 + c  <->  PyTorch feature c*Fq + j.
    wfc_p = (params['wfc'].reshape(OUT, C2, Fq)
             .transpose(0, 2, 1).reshape(OUT, K).astype(bf16))
    bfc2 = params['bfc'].reshape(OUT, 1).astype(f32)

    # (B, T, F) -> (B, F, T), then zero-pad freq & time by 1 (conv padding=1).
    x_ft = jnp.transpose(mel, (0, 2, 1)).astype(f32)
    x_pad = jnp.pad(x_ft, ((0, 0), (1, 1), (1, 1)))

    # Scoped-VMEM limit: scratch + (double-buffered) block footprint + headroom.
    scratch_bytes = 4 * (Fp * C1 * Tp + (F2 + 2) * C1 * Tp + K * T)
    block_bytes = (4 * Fp * Tp + 4 * OUT * T + 4 * 3 * C1 * 3
                   + 2 * 3 * C1 * 3 * C1 + 2 * 3 * C2 * 3 * C1
                   + 2 * OUT * K + 4 * (2 * C1 + C2 + OUT))
    vmem_limit = min(int(scratch_bytes + 2 * block_bytes) + (8 << 20), 100 << 20)

    out = pl.pallas_call(
        convstack_kernel,
        out_shape=jax.ShapeDtypeStruct((B, OUT, T), jnp.float32),
        grid=(B,),
        in_specs=[
            pl.BlockSpec((None, Fp, Tp), lambda b: (b, 0, 0)),      # padded input
            pl.BlockSpec((3, C1, 3), lambda b: (0, 0, 0)),          # conv1 taps
            pl.BlockSpec((C1, 1), lambda b: (0, 0)),                # conv1 bias
            pl.BlockSpec((3, C1, 3 * C1), lambda b: (0, 0, 0)),     # conv2 taps
            pl.BlockSpec((C1, 1), lambda b: (0, 0)),                # conv2 bias
            pl.BlockSpec((3, C2, 3 * C1), lambda b: (0, 0, 0)),     # conv3 taps
            pl.BlockSpec((C2, 1), lambda b: (0, 0)),                # conv3 bias
            pl.BlockSpec((OUT, K), lambda b: (0, 0)),               # FC weight
            pl.BlockSpec((OUT, 1), lambda b: (0, 0)),               # FC bias
        ],
        out_specs=pl.BlockSpec((None, OUT, T), lambda b: (b, 0, 0)),
        scratch_shapes=[
            pltpu.VMEM((Fp * C1, Tp), jnp.float32),                 # conv1 out (padded)
            pltpu.VMEM(((F2 + 2) * C1, Tp), jnp.float32),           # conv2+pool (padded)
            pltpu.VMEM((K, T), jnp.float32),                        # flat FC features
        ],
        compiler_params=pltpu.CompilerParams(
            dimension_semantics=("parallel",),
            vmem_limit_bytes=vmem_limit),
    )(x_pad, w1u, b1m, w2u, b2m, w3u, b3m, wfc_p, bfc2)

    return jnp.transpose(out, (0, 2, 1))                            # (B, T, OUT)


def reference_forward(mel, params, mxu_bf16=False):
    """Pure-JAX re-implementation of the PyTorch forward (eval mode).

    With mxu_bf16=True it mirrors the kernel's mixed precision: BatchNorm folded
    into conv weights, conv2/conv3/FC operands rounded to bfloat16, f32 accum.
    """
    B, T, F = mel.shape
    eps = 1e-5
    f32 = jnp.float32
    op_dt = jnp.bfloat16 if mxu_bf16 else f32

    def fold(w, cb, bn):
        g, be, m, v = bn
        s = g / jnp.sqrt(v + eps)
        return w * s[:, None, None, None], (cb - m) * s + be

    def conv(x, w, b, dt):
        prec = lax.Precision.HIGHEST if dt == f32 else None
        y = lax.conv_general_dilated(
            x.astype(dt), w.astype(dt), (1, 1), ((1, 1), (1, 1)),
            dimension_numbers=('NCHW', 'OIHW', 'NCHW'),
            preferred_element_type=f32, precision=prec)
        return y + b[None, :, None, None]

    def pool_w2(x):                       # MaxPool2d((1,2)), floor semantics
        Bb, C, H, W = x.shape
        W2 = W // 2
        return x[..., :W2 * 2].reshape(Bb, C, H, W2, 2).max(axis=-1)

    relu = lambda z: jnp.maximum(z, 0.0)

    w1f, b1f = fold(params['w1'], params['cb1'], params['bn1'])
    w2f, b2f = fold(params['w2'], params['cb2'], params['bn2'])
    w3f, b3f = fold(params['w3'], params['cb3'], params['bn3'])

    x = mel.reshape(B, 1, T, F).astype(f32)
    x = relu(conv(x, w1f, b1f, f32))               # conv1 stays f32 (kernel too)
    x = relu(conv(x, w2f, b2f, op_dt))
    x = pool_w2(x)
    x = relu(conv(x, w3f, b3f, op_dt))
    x = pool_w2(x)
    x = jnp.transpose(x, (0, 2, 1, 3)).reshape(B, T, -1)
    prec = lax.Precision.HIGHEST if op_dt == f32 else None
    out = jnp.dot(x.astype(op_dt), params['wfc'].T.astype(op_dt),
                  preferred_element_type=f32, precision=prec)
    return out + params['bfc']


if __name__ == "__main__":
    B, T, F_IN, OUT = 2, 8, 16, 32          # input_features=16, output_features=32
    C1, C2 = OUT // 16, OUT // 8            # 2, 4
    DFC = C2 * (F_IN // 4)                  # 16

    key = jax.random.PRNGKey(0)
    ks = jax.random.split(key, 16)

    def bn_init(k, c):
        a, b, c_, d = jax.random.split(k, 4)
        return (1.0 + 0.1 * jax.random.normal(a, (c,)),
                0.1 * jax.random.normal(b, (c,)),
                0.1 * jax.random.normal(c_, (c,)),
                0.5 + 0.25 * jnp.abs(jax.random.normal(d, (c,))))

    params = {
        'w1': 0.3 * jax.random.normal(ks[0], (C1, 1, 3, 3)),
        'cb1': 0.1 * jax.random.normal(ks[1], (C1,)),
        'bn1': bn_init(ks[2], C1),
        'w2': 0.3 * jax.random.normal(ks[3], (C1, C1, 3, 3)),
        'cb2': 0.1 * jax.random.normal(ks[4], (C1,)),
        'bn2': bn_init(ks[5], C1),
        'w3': 0.3 * jax.random.normal(ks[6], (C2, C1, 3, 3)),
        'cb3': 0.1 * jax.random.normal(ks[7], (C2,)),
        'bn3': bn_init(ks[8], C2),
        'wfc': 0.2 * jax.random.normal(ks[9], (OUT, DFC)),
        'bfc': 0.1 * jax.random.normal(ks[10], (OUT,)),
    }
    mel = jax.random.normal(ks[11], (B, T, F_IN), dtype=jnp.float32)

    y = jax.block_until_ready(jax.jit(convstack_forward)(mel, params))
    assert y.shape == (B, T, OUT), y.shape

    # Tight check vs a reference that mirrors the kernel's bf16 MXU operands.
    y_bf = reference_forward(mel, params, mxu_bf16=True)
    if not jnp.allclose(y, y_bf, rtol=5e-2, atol=5e-2):
        max_err = float(jnp.max(jnp.abs(y - y_bf)))
        raise AssertionError(f"mismatch vs bf16-matched reference, max_err={max_err}")

    # Loose sanity check vs the exact f32 PyTorch math (bounds bf16 rounding and
    # catches any structural/tap-indexing bug, which would give O(1) errors).
    y_f32 = reference_forward(mel, params, mxu_bf16=False)
    max_err_f32 = float(jnp.max(jnp.abs(y - y_f32)))
    if max_err_f32 > 0.25:
        raise AssertionError(f"mismatch vs f32 reference, max_err={max_err_f32}")

    print("KERNEL_OK")
</pallas_src>

<mosaic_0001>
module attributes {stable_mosaic.version = 11 : i64} {
  func.func @convstack_kernel(%arg0: i32, %arg1: memref<1x18x10xf32, #tpu.memory_space<vmem>>, %arg2: memref<3x2x3xf32, #tpu.memory_space<vmem>>, %arg3: memref<2x1xf32, #tpu.memory_space<vmem>>, %arg4: memref<3x2x6xbf16, #tpu.memory_space<vmem>>, %arg5: memref<2x1xf32, #tpu.memory_space<vmem>>, %arg6: memref<3x4x6xbf16, #tpu.memory_space<vmem>>, %arg7: memref<4x1xf32, #tpu.memory_space<vmem>>, %arg8: memref<32x16xbf16, #tpu.memory_space<vmem>>, %arg9: memref<32x1xf32, #tpu.memory_space<vmem>>, %arg10: memref<1x32x8xf32, #tpu.memory_space<vmem>>, %arg11: memref<36x10xf32, #tpu.memory_space<vmem>>, %arg12: memref<20x10xf32, #tpu.memory_space<vmem>>, %arg13: memref<16x8xf32, #tpu.memory_space<vmem>>) attributes {dimension_semantics = [#tpu.dimension_semantics<parallel>], iteration_bounds = array<i64: 2>, scalar_prefetch = 0 : i64, scratch_operands = 3 : i64, tpu.core_type = #tpu.core_type<tc>, window_params = [{transform_indices = @transform_0, window_bounds = array<i64: 1, 18, 10>}, {pipeline_mode = #tpu.pipeline_mode<synchronous>, transform_indices = @transform_1, window_bounds = array<i64: 3, 2, 3>}, {pipeline_mode = #tpu.pipeline_mode<synchronous>, transform_indices = @transform_2, window_bounds = array<i64: 2, 1>}, {pipeline_mode = #tpu.pipeline_mode<synchronous>, transform_indices = @transform_3, window_bounds = array<i64: 3, 2, 6>}, {pipeline_mode = #tpu.pipeline_mode<synchronous>, transform_indices = @transform_4, window_bounds = array<i64: 2, 1>}, {pipeline_mode = #tpu.pipeline_mode<synchronous>, transform_indices = @transform_5, window_bounds = array<i64: 3, 4, 6>}, {pipeline_mode = #tpu.pipeline_mode<synchronous>, transform_indices = @transform_6, window_bounds = array<i64: 4, 1>}, {pipeline_mode = #tpu.pipeline_mode<synchronous>, transform_indices = @transform_7, window_bounds = array<i64: 32, 16>}, {pipeline_mode = #tpu.pipeline_mode<synchronous>, transform_indices = @transform_8, window_bounds = array<i64: 32, 1>}, {transform_indices = @transform_9, window_bounds = array<i64: 1, 32, 8>}]} {
    %cst = arith.constant 0.000000e+00 : f32
    %0 = vector.broadcast %cst : f32 to vector<2x10xf32>
    %c0 = arith.constant 0 : index
    %c0_0 = arith.constant 0 : index
    %1 = vector.load %arg11[%c0, %c0_0] : memref<36x10xf32, #tpu.memory_space<vmem>>, vector<2x10xf32>
    tpu.vector_store %arg11[%c0, %c0_0], %0 {strides = array<i32>} : memref<36x10xf32, #tpu.memory_space<vmem>>, vector<2x10xf32>,
    %cst_1 = arith.constant 0.000000e+00 : f32
    %2 = vector.broadcast %cst_1 : f32 to vector<2x10xf32>
    %c34 = arith.constant 34 : index
    %c0_2 = arith.constant 0 : index
    %3 = vector.load %arg11[%c34, %c0_2] : memref<36x10xf32, #tpu.memory_space<vmem>>, vector<2x10xf32>
    tpu.vector_store %arg11[%c34, %c0_2], %2 {strides = array<i32>} : memref<36x10xf32, #tpu.memory_space<vmem>>, vector<2x10xf32>,
    %cst_3 = arith.constant 0.000000e+00 : f32
    %4 = vector.broadcast %cst_3 : f32 to vector<36x1xf32>
    %c0_4 = arith.constant 0 : index
    %c0_5 = arith.constant 0 : index
    %5 = vector.load %arg11[%c0_4, %c0_5] : memref<36x10xf32, #tpu.memory_space<vmem>>, vector<36x1xf32>
    tpu.vector_store %arg11[%c0_4, %c0_5], %4 {strides = array<i32>} : memref<36x10xf32, #tpu.memory_space<vmem>>, vector<36x1xf32>,
    %cst_6 = arith.constant 0.000000e+00 : f32
    %6 = vector.broadcast %cst_6 : f32 to vector<36x1xf32>
    %c0_7 = arith.constant 0 : index
    %c9 = arith.constant 9 : index
    %7 = vector.load %arg11[%c0_7, %c9] : memref<36x10xf32, #tpu.memory_space<vmem>>, vector<36x1xf32>
    tpu.vector_store %arg11[%c0_7, %c9], %6 {strides = array<i32>} : memref<36x10xf32, #tpu.memory_space<vmem>>, vector<36x1xf32>,
    %cst_8 = arith.constant 0.000000e+00 : f32
    %8 = vector.broadcast %cst_8 : f32 to vector<2x10xf32>
    %c0_9 = arith.constant 0 : index
    %c0_10 = arith.constant 0 : index
    %9 = vector.load %arg12[%c0_9, %c0_10] : memref<20x10xf32, #tpu.memory_space<vmem>>, vector<2x10xf32>
    tpu.vector_store %arg12[%c0_9, %c0_10], %8 {strides = array<i32>} : memref<20x10xf32, #tpu.memory_space<vmem>>, vector<2x10xf32>,
    %cst_11 = arith.constant 0.000000e+00 : f32
    %10 = vector.broadcast %cst_11 : f32 to vector<2x10xf32>
    %c18 = arith.constant 18 : index
    %c0_12 = arith.constant 0 : index
    %11 = vector.load %arg12[%c18, %c0_12] : memref<20x10xf32, #tpu.memory_space<vmem>>, vector<2x10xf32>
    tpu.vector_store %arg12[%c18, %c0_12], %10 {strides = array<i32>} : memref<20x10xf32, #tpu.memory_space<vmem>>, vector<2x10xf32>,
    %cst_13 = arith.constant 0.000000e+00 : f32
    %12 = vector.broadcast %cst_13 : f32 to vector<20x1xf32>
    %c0_14 = arith.constant 0 : index
    %c0_15 = arith.constant 0 : index
    %13 = vector.load %arg12[%c0_14, %c0_15] : memref<20x10xf32, #tpu.memory_space<vmem>>, vector<20x1xf32>
    tpu.vector_store %arg12[%c0_14, %c0_15], %12 {strides = array<i32>} : memref<20x10xf32, #tpu.memory_space<vmem>>, vector<20x1xf32>,
    %cst_16 = arith.constant 0.000000e+00 : f32
    %14 = vector.broadcast %cst_16 : f32 to vector<20x1xf32>
    %c0_17 = arith.constant 0 : index
    %c9_18 = arith.constant 9 : index
    %15 = vector.load %arg12[%c0_17, %c9_18] : memref<20x10xf32, #tpu.memory_space<vmem>>, vector<20x1xf32>
    tpu.vector_store %arg12[%c0_17, %c9_18], %14 {strides = array<i32>} : memref<20x10xf32, #tpu.memory_space<vmem>>, vector<20x1xf32>,
    %c0_19 = arith.constant 0 : index
    %c0_20 = arith.constant 0 : index
    %c0_21 = arith.constant 0 : index
    %16 = vector.load %arg2[%c0_19, %c0_20, %c0_21] : memref<3x2x3xf32, #tpu.memory_space<vmem>>, vector<1x2x3xf32>
    %17 = vector.shape_cast %16 : vector<1x2x3xf32> to vector<2x3xf32>
    %c1 = arith.constant 1 : index
    %c0_22 = arith.constant 0 : index
    %c0_23 = arith.constant 0 : index
    %18 = vector.load %arg2[%c1, %c0_22, %c0_23] : memref<3x2x3xf32, #tpu.memory_space<vmem>>, vector<1x2x3xf32>
    %19 = vector.shape_cast %18 : vector<1x2x3xf32> to vector<2x3xf32>
    %c2 = arith.constant 2 : index
    %c0_24 = arith.constant 0 : index
    %c0_25 = arith.constant 0 : index
    %20 = vector.load %arg2[%c2, %c0_24, %c0_25] : memref<3x2x3xf32, #tpu.memory_space<vmem>>, vector<1x2x3xf32>
    %21 = vector.shape_cast %20 : vector<1x2x3xf32> to vector<2x3xf32>
    %c0_26 = arith.constant 0 : index
    %c0_27 = arith.constant 0 : index
    %c0_28 = arith.constant 0 : index
    %22 = vector.load %arg4[%c0_26, %c0_27, %c0_28] : memref<3x2x6xbf16, #tpu.memory_space<vmem>>, vector<1x2x6xbf16>
    %23 = vector.shape_cast %22 : vector<1x2x6xbf16> to vector<2x6xbf16>
    %c1_29 = arith.constant 1 : index
    %c0_30 = arith.constant 0 : index
    %c0_31 = arith.constant 0 : index
    %24 = vector.load %arg4[%c1_29, %c0_30, %c0_31] : memref<3x2x6xbf16, #tpu.memory_space<vmem>>, vector<1x2x6xbf16>
    %25 = vector.shape_cast %24 : vector<1x2x6xbf16> to vector<2x6xbf16>
    %c2_32 = arith.constant 2 : index
    %c0_33 = arith.constant 0 : index
    %c0_34 = arith.constant 0 : index
    %26 = vector.load %arg4[%c2_32, %c0_33, %c0_34] : memref<3x2x6xbf16, #tpu.memory_space<vmem>>, vector<1x2x6xbf16>
    %27 = vector.shape_cast %26 : vector<1x2x6xbf16> to vector<2x6xbf16>
    %c0_35 = arith.constant 0 : index
    %c0_36 = arith.constant 0 : index
    %c0_37 = arith.constant 0 : index
    %28 = vector.load %arg6[%c0_35, %c0_36, %c0_37] : memref<3x4x6xbf16, #tpu.memory_space<vmem>>, vector<1x4x6xbf16>
    %29 = vector.shape_cast %28 : vector<1x4x6xbf16> to vector<4x6xbf16>
    %c1_38 = arith.constant 1 : index
    %c0_39 = arith.constant 0 : index
    %c0_40 = arith.constant 0 : index
    %30 = vector.load %arg6[%c1_38, %c0_39, %c0_40] : memref<3x4x6xbf16, #tpu.memory_space<vmem>>, vector<1x4x6xbf16>
    %31 = vector.shape_cast %30 : vector<1x4x6xbf16> to vector<4x6xbf16>
    %c2_41 = arith.constant 2 : index
    %c0_42 = arith.constant 0 : index
    %c0_43 = arith.constant 0 : index
    %32 = vector.load %arg6[%c2_41, %c0_42, %c0_43] : memref<3x4x6xbf16, #tpu.memory_space<vmem>>, vector<1x4x6xbf16>
    %33 = vector.shape_cast %32 : vector<1x4x6xbf16> to vector<4x6xbf16>
    %c0_44 = arith.constant 0 : index
    %c0_45 = arith.constant 0 : index
    %34 = vector.load %arg3[%c0_44, %c0_45] : memref<2x1xf32, #tpu.memory_space<vmem>>, vector<2x1xf32>
    %c0_46 = arith.constant 0 : index
    %c0_47 = arith.constant 0 : index
    %35 = vector.load %arg5[%c0_46, %c0_47] : memref<2x1xf32, #tpu.memory_space<vmem>>, vector<2x1xf32>
    %c0_48 = arith.constant 0 : index
    %c0_49 = arith.constant 0 : index
    %36 = vector.load %arg7[%c0_48, %c0_49] : memref<4x1xf32, #tpu.memory_space<vmem>>, vector<4x1xf32>
    %c0_50 = arith.constant 0 : index
    %c0_51 = arith.constant 0 : index
    %c0_52 = arith.constant 0 : index
    %37 = vector.load %arg1[%c0_50, %c0_51, %c0_52] : memref<1x18x10xf32, #tpu.memory_space<vmem>>, vector<1x3x10xf32>
    %38 = vector.shape_cast %37 : vector<1x3x10xf32> to vector<3x10xf32>
    %39 = vector.extract_strided_slice %38 {offsets = [0, 0], sizes = [3, 8], strides = [1, 1]} : vector<3x10xf32> to vector<3x8xf32>
    %cst_53 = arith.constant dense<0.000000e+00> : vector<2x8xf32>
    %40 = tpu.matmul %17, %39, %cst_53 {dimension_numbers = #tpu.dot_dimension_numbers<[1], [0], [0], [1], [0, 0, 1, 1], [], []>} : vector<2x3xf32>, vector<3x8xf32>, vector<2x8xf32> -> vector<2x8xf32>
    %41 = vector.extract_strided_slice %38 {offsets = [0, 1], sizes = [3, 8], strides = [1, 1]} : vector<3x10xf32> to vector<3x8xf32>
    %cst_54 = arith.constant dense<0.000000e+00> : vector<2x8xf32>
    %42 = tpu.matmul %19, %41, %cst_54 {dimension_numbers = #tpu.dot_dimension_numbers<[1], [0], [0], [1], [0, 0, 1, 1], [], []>} : vector<2x3xf32>, vector<3x8xf32>, vector<2x8xf32> -> vector<2x8xf32>
    %43 = arith.addf %40, %42 : vector<2x8xf32>
    %44 = vector.extract_strided_slice %38 {offsets = [0, 2], sizes = [3, 8], strides = [1, 1]} : vector<3x10xf32> to vector<3x8xf32>
    %cst_55 = arith.constant dense<0.000000e+00> : vector<2x8xf32>
    %45 = tpu.matmul %21, %44, %cst_55 {dimension_numbers = #tpu.dot_dimension_numbers<[1], [0], [0], [1], [0, 0, 1, 1], [], []>} : vector<2x3xf32>, vector<3x8xf32>, vector<2x8xf32> -> vector<2x8xf32>
    %46 = arith.addf %43, %45 : vector<2x8xf32>
    %47 = vector.broadcast %34 : vector<2x1xf32> to vector<2x8xf32>
    %48 = arith.addf %46, %47 : vector<2x8xf32>
    %cst_56 = arith.constant 0.000000e+00 : f32
    %49 = vector.broadcast %cst_56 : f32 to vector<2x8xf32>
    %50 = arith.maximumf %48, %49 : vector<2x8xf32>
    %c2_57 = arith.constant 2 : index
    %c1_58 = arith.constant 1 : index
    %51 = vector.load %arg11[%c2_57, %c1_58] : memref<36x10xf32, #tpu.memory_space<vmem>>, vector<2x8xf32>
    tpu.vector_store %arg11[%c2_57, %c1_58], %50 {strides = array<i32>} : memref<36x10xf32, #tpu.memory_space<vmem>>, vector<2x8xf32>,
    %c0_59 = arith.constant 0 : index
    %c1_60 = arith.constant 1 : index
    %c0_61 = arith.constant 0 : index
    %52 = vector.load %arg1[%c0_59, %c1_60, %c0_61] : memref<1x18x10xf32, #tpu.memory_space<vmem>>, vector<1x3x10xf32>
    %53 = vector.shape_cast %52 : vector<1x3x10xf32> to vector<3x10xf32>
    %54 = vector.extract_strided_slice %53 {offsets = [0, 0], sizes = [3, 8], strides = [1, 1]} : vector<3x10xf32> to vector<3x8xf32>
    %cst_62 = arith.constant dense<0.000000e+00> : vector<2x8xf32>
    %55 = tpu.matmul %17, %54, %cst_62 {dimension_numbers = #tpu.dot_dimension_numbers<[1], [0], [0], [1], [0, 0, 1, 1], [], []>} : vector<2x3xf32>, vector<3x8xf32>, vector<2x8xf32> -> vector<2x8xf32>
    %56 = vector.extract_strided_slice %53 {offsets = [0, 1], sizes = [3, 8], strides = [1, 1]} : vector<3x10xf32> to vector<3x8xf32>
    %cst_63 = arith.constant dense<0.000000e+00> : vector<2x8xf32>
    %57 = tpu.matmul %19, %56, %cst_63 {dimension_numbers = #tpu.dot_dimension_numbers<[1], [0], [0], [1], [0, 0, 1, 1], [], []>} : vector<2x3xf32>, vector<3x8xf32>, vector<2x8xf32> -> vector<2x8xf32>
    %58 = arith.addf %55, %57 : vector<2x8xf32>
    %59 = vector.extract_strided_slice %53 {offsets = [0, 2], sizes = [3, 8], strides = [1, 1]} : vector<3x10xf32> to vector<3x8xf32>
    %cst_64 = arith.constant dense<0.000000e+00> : vector<2x8xf32>
    %60 = tpu.matmul %21, %59, %cst_64 {dimension_numbers = #tpu.dot_dimension_numbers<[1], [0], [0], [1], [0, 0, 1, 1], [], []>} : vector<2x3xf32>, vector<3x8xf32>, vector<2x8xf32> -> vector<2x8xf32>
    %61 = arith.addf %58, %60 : vector<2x8xf32>
    %62 = vector.broadcast %34 : vector<2x1xf32> to vector<2x8xf32>
    %63 = arith.addf %61, %62 : vector<2x8xf32>
    %cst_65 = arith.constant 0.000000e+00 : f32
    %64 = vector.broadcast %cst_65 : f32 to vector<2x8xf32>
    %65 = arith.maximumf %63, %64 : vector<2x8xf32>
    %c4 = arith.constant 4 : index
    %c1_66 = arith.constant 1 : index
    %66 = vector.load %arg11[%c4, %c1_66] : memref<36x10xf32, #tpu.memory_space<vmem>>, vector<2x8xf32>
    tpu.vector_store %arg11[%c4, %c1_66], %65 {strides = array<i32>} : memref<36x10xf32, #tpu.memory_space<vmem>>, vector<2x8xf32>,
    %c0_67 = arith.constant 0 : index
    %c2_68 = arith.constant 2 : index
    %c0_69 = arith.constant 0 : index
    %67 = vector.load %arg1[%c0_67, %c2_68, %c0_69] : memref<1x18x10xf32, #tpu.memory_space<vmem>>, vector<1x3x10xf32>
    %68 = vector.shape_cast %67 : vector<1x3x10xf32> to vector<3x10xf32>
    %69 = vector.extract_strided_slice %68 {offsets = [0, 0], sizes = [3, 8], strides = [1, 1]} : vector<3x10xf32> to vector<3x8xf32>
    %cst_70 = arith.constant dense<0.000000e+00> : vector<2x8xf32>
    %70 = tpu.matmul %17, %69, %cst_70 {dimension_numbers = #tpu.dot_dimension_numbers<[1], [0], [0], [1], [0, 0, 1, 1], [], []>} : vector<2x3xf32>, vector<3x8xf32>, vector<2x8xf32> -> vector<2x8xf32>
    %71 = vector.extract_strided_slice %68 {offsets = [0, 1], sizes = [3, 8], strides = [1, 1]} : vector<3x10xf32> to vector<3x8xf32>
    %cst_71 = arith.constant dense<0.000000e+00> : vector<2x8xf32>
    %72 = tpu.matmul %19, %71, %cst_71 {dimension_numbers = #tpu.dot_dimension_numbers<[1], [0], [0], [1], [0, 0, 1, 1], [], []>} : vector<2x3xf32>, vector<3x8xf32>, vector<2x8xf32> -> vector<2x8xf32>
    %73 = arith.addf %70, %72 : vector<2x8xf32>
    %74 = vector.extract_strided_slice %68 {offsets = [0, 2], sizes = [3, 8], strides = [1, 1]} : vector<3x10xf32> to vector<3x8xf32>
    %cst_72 = arith.constant dense<0.000000e+00> : vector<2x8xf32>
    %75 = tpu.matmul %21, %74, %cst_72 {dimension_numbers = #tpu.dot_dimension_numbers<[1], [0], [0], [1], [0, 0, 1, 1], [], []>} : vector<2x3xf32>, vector<3x8xf32>, vector<2x8xf32> -> vector<2x8xf32>
    %76 = arith.addf %73, %75 : vector<2x8xf32>
    %77 = vector.broadcast %34 : vector<2x1xf32> to vector<2x8xf32>
    %78 = arith.addf %76, %77 : vector<2x8xf32>
    %cst_73 = arith.constant 0.000000e+00 : f32
    %79 = vector.broadcast %cst_73 : f32 to vector<2x8xf32>
    %80 = arith.maximumf %78, %79 : vector<2x8xf32>
    %c6 = arith.constant 6 : index
    %c1_74 = arith.constant 1 : index
    %81 = vector.load %arg11[%c6, %c1_74] : memref<36x10xf32, #tpu.memory_space<vmem>>, vector<2x8xf32>
    tpu.vector_store %arg11[%c6, %c1_74], %80 {strides = array<i32>} : memref<36x10xf32, #tpu.memory_space<vmem>>, vector<2x8xf32>,
    %c0_75 = arith.constant 0 : index
    %c3 = arith.constant 3 : index
    %c0_76 = arith.constant 0 : index
    %82 = vector.load %arg1[%c0_75, %c3, %c0_76] : memref<1x18x10xf32, #tpu.memory_space<vmem>>, vector<1x3x10xf32>
    %83 = vector.shape_cast %82 : vector<1x3x10xf32> to vector<3x10xf32>
    %84 = vector.extract_strided_slice %83 {offsets = [0, 0], sizes = [3, 8], strides = [1, 1]} : vector<3x10xf32> to vector<3x8xf32>
    %cst_77 = arith.constant dense<0.000000e+00> : vector<2x8xf32>
    %85 = tpu.matmul %17, %84, %cst_77 {dimension_numbers = #tpu.dot_dimension_numbers<[1], [0], [0], [1], [0, 0, 1, 1], [], []>} : vector<2x3xf32>, vector<3x8xf32>, vector<2x8xf32> -> vector<2x8xf32>
    %86 = vector.extract_strided_slice %83 {offsets = [0, 1], sizes = [3, 8], strides = [1, 1]} : vector<3x10xf32> to vector<3x8xf32>
    %cst_78 = arith.constant dense<0.000000e+00> : vector<2x8xf32>
    %87 = tpu.matmul %19, %86, %cst_78 {dimension_numbers = #tpu.dot_dimension_numbers<[1], [0], [0], [1], [0, 0, 1, 1], [], []>} : vector<2x3xf32>, vector<3x8xf32>, vector<2x8xf32> -> vector<2x8xf32>
    %88 = arith.addf %85, %87 : vector<2x8xf32>
    %89 = vector.extract_strided_slice %83 {offsets = [0, 2], sizes = [3, 8], strides = [1, 1]} : vector<3x10xf32> to vector<3x8xf32>
    %cst_79 = arith.constant dense<0.000000e+00> : vector<2x8xf32>
    %90 = tpu.matmul %21, %89, %cst_79 {dimension_numbers = #tpu.dot_dimension_numbers<[1], [0], [0], [1], [0, 0, 1, 1], [], []>} : vector<2x3xf32>, vector<3x8xf32>, vector<2x8xf32> -> vector<2x8xf32>
    %91 = arith.addf %88, %90 : vector<2x8xf32>
    %92 = vector.broadcast %34 : vector<2x1xf32> to vector<2x8xf32>
    %93 = arith.addf %91, %92 : vector<2x8xf32>
    %cst_80 = arith.constant 0.000000e+00 : f32
    %94 = vector.broadcast %cst_80 : f32 to vector<2x8xf32>
    %95 = arith.maximumf %93, %94 : vector<2x8xf32>
    %c8 = arith.constant 8 : index
    %c1_81 = arith.constant 1 : index
    %96 = vector.load %arg11[%c8, %c1_81] : memref<36x10xf32, #tpu.memory_space<vmem>>, vector<2x8xf32>
    tpu.vector_store %arg11[%c8, %c1_81], %95 {strides = array<i32>} : memref<36x10xf32, #tpu.memory_space<vmem>>, vector<2x8xf32>,
    %c0_82 = arith.constant 0 : index
    %c4_83 = arith.constant 4 : index
    %c0_84 = arith.constant 0 : index
    %97 = vector.load %arg1[%c0_82, %c4_83, %c0_84] : memref<1x18x10xf32, #tpu.memory_space<vmem>>, vector<1x3x10xf32>
    %98 = vector.shape_cast %97 : vector<1x3x10xf32> to vector<3x10xf32>
    %99 = vector.extract_strided_slice %98 {offsets = [0, 0], sizes = [3, 8], strides = [1, 1]} : vector<3x10xf32> to vector<3x8xf32>
    %cst_85 = arith.constant dense<0.000000e+00> : vector<2x8xf32>
    %100 = tpu.matmul %17, %99, %cst_85 {dimension_numbers = #tpu.dot_dimension_numbers<[1], [0], [0], [1], [0, 0, 1, 1], [], []>} : vector<2x3xf32>, vector<3x8xf32>, vector<2x8xf32> -> vector<2x8xf32>
    %101 = vector.extract_strided_slice %98 {offsets = [0, 1], sizes = [3, 8], strides = [1, 1]} : vector<3x10xf32> to vector<3x8xf32>
    %cst_86 = arith.constant dense<0.000000e+00> : vector<2x8xf32>
    %102 = tpu.matmul %19, %101, %cst_86 {dimension_numbers = #tpu.dot_dimension_numbers<[1], [0], [0], [1], [0, 0, 1, 1], [], []>} : vector<2x3xf32>, vector<3x8xf32>, vector<2x8xf32> -> vector<2x8xf32>
    %103 = arith.addf %100, %102 : vector<2x8xf32>
    %104 = vector.extract_strided_slice %98 {offsets = [0, 2], sizes = [3, 8], strides = [1, 1]} : vector<3x10xf32> to vector<3x8xf32>
    %cst_87 = arith.constant dense<0.000000e+00> : vector<2x8xf32>
    %105 = tpu.matmul %21, %104, %cst_87 {dimension_numbers = #tpu.dot_dimension_numbers<[1], [0], [0], [1], [0, 0, 1, 1], [], []>} : vector<2x3xf32>, vector<3x8xf32>, vector<2x8xf32> -> vector<2x8xf32>
    %106 = arith.addf %103, %105 : vector<2x8xf32>
    %107 = vector.broadcast %34 : vector<2x1xf32> to vector<2x8xf32>
    %108 = arith.addf %106, %107 : vector<2x8xf32>
    %cst_88 = arith.constant 0.000000e+00 : f32
    %109 = vector.broadcast %cst_88 : f32 to vector<2x8xf32>
    %110 = arith.maximumf %108, %109 : vector<2x8xf32>
    %c10 = arith.constant 10 : index
    %c1_89 = arith.constant 1 : index
    %111 = vector.load %arg11[%c10, %c1_89] : memref<36x10xf32, #tpu.memory_space<vmem>>, vector<2x8xf32>
    tpu.vector_store %arg11[%c10, %c1_89], %110 {strides = array<i32>} : memref<36x10xf32, #tpu.memory_space<vmem>>, vector<2x8xf32>,
    %c0_90 = arith.constant 0 : index
    %c5 = arith.constant 5 : index
    %c0_91 = arith.constant 0 : index
    %112 = vector.load %arg1[%c0_90, %c5, %c0_91] : memref<1x18x10xf32, #tpu.memory_space<vmem>>, vector<1x3x10xf32>
    %113 = vector.shape_cast %112 : vector<1x3x10xf32> to vector<3x10xf32>
    %114 = vector.extract_strided_slice %113 {offsets = [0, 0], sizes = [3, 8], strides = [1, 1]} : vector<3x10xf32> to vector<3x8xf32>
    %cst_92 = arith.constant dense<0.000000e+00> : vector<2x8xf32>
    %115 = tpu.matmul %17, %114, %cst_92 {dimension_numbers = #tpu.dot_dimension_numbers<[1], [0], [0], [1], [0, 0, 1, 1], [], []>} : vector<2x3xf32>, vector<3x8xf32>, vector<2x8xf32> -> vector<2x8xf32>
    %116 = vector.extract_strided_slice %113 {offsets = [0, 1], sizes = [3, 8], strides = [1, 1]} : vector<3x10xf32> to vector<3x8xf32>
    %cst_93 = arith.constant dense<0.000000e+00> : vector<2x8xf32>
    %117 = tpu.matmul %19, %116, %cst_93 {dimension_numbers = #tpu.dot_dimension_numbers<[1], [0], [0], [1], [0, 0, 1, 1], [], []>} : vector<2x3xf32>, vector<3x8xf32>, vector<2x8xf32> -> vector<2x8xf32>
    %118 = arith.addf %115, %117 : vector<2x8xf32>
    %119 = vector.extract_strided_slice %113 {offsets = [0, 2], sizes = [3, 8], strides = [1, 1]} : vector<3x10xf32> to vector<3x8xf32>
    %cst_94 = arith.constant dense<0.000000e+00> : vector<2x8xf32>
    %120 = tpu.matmul %21, %119, %cst_94 {dimension_numbers = #tpu.dot_dimension_numbers<[1], [0], [0], [1], [0, 0, 1, 1], [], []>} : vector<2x3xf32>, vector<3x8xf32>, vector<2x8xf32> -> vector<2x8xf32>
    %121 = arith.addf %118, %120 : vector<2x8xf32>
    %122 = vector.broadcast %34 : vector<2x1xf32> to vector<2x8xf32>
    %123 = arith.addf %121, %122 : vector<2x8xf32>
    %cst_95 = arith.constant 0.000000e+00 : f32
    %124 = vector.broadcast %cst_95 : f32 to vector<2x8xf32>
    %125 = arith.maximumf %123, %124 : vector<2x8xf32>
    %c12 = arith.constant 12 : index
    %c1_96 = arith.constant 1 : index
    %126 = vector.load %arg11[%c12, %c1_96] : memref<36x10xf32, #tpu.memory_space<vmem>>, vector<2x8xf32>
    tpu.vector_store %arg11[%c12, %c1_96], %125 {strides = array<i32>} : memref<36x10xf32, #tpu.memory_space<vmem>>, vector<2x8xf32>,
    %c0_97 = arith.constant 0 : index
    %c6_98 = arith.constant 6 : index
    %c0_99 = arith.constant 0 : index
    %127 = vector.load %arg1[%c0_97, %c6_98, %c0_99] : memref<1x18x10xf32, #tpu.memory_space<vmem>>, vector<1x3x10xf32>
    %128 = vector.shape_cast %127 : vector<1x3x10xf32> to vector<3x10xf32>
    %129 = vector.extract_strided_slice %128 {offsets = [0, 0], sizes = [3, 8], strides = [1, 1]} : vector<3x10xf32> to vector<3x8xf32>
    %cst_100 = arith.constant dense<0.000000e+00> : vector<2x8xf32>
    %130 = tpu.matmul %17, %129, %cst_100 {dimension_numbers = #tpu.dot_dimension_numbers<[1], [0], [0], [1], [0, 0, 1, 1], [], []>} : vector<2x3xf32>, vector<3x8xf32>, vector<2x8xf32> -> vector<2x8xf32>
    %131 = vector.extract_strided_slice %128 {offsets = [0, 1], sizes = [3, 8], strides = [1, 1]} : vector<3x10xf32> to vector<3x8xf32>
    %cst_101 = arith.constant dense<0.000000e+00> : vector<2x8xf32>
    %132 = tpu.matmul %19, %131, %cst_101 {dimension_numbers = #tpu.dot_dimension_numbers<[1], [0], [0], [1], [0, 0, 1, 1], [], []>} : vector<2x3xf32>, vector<3x8xf32>, vector<2x8xf32> -> vector<2x8xf32>
    %133 = arith.addf %130, %132 : vector<2x8xf32>
    %134 = vector.extract_strided_slice %128 {offsets = [0, 2], sizes = [3, 8], strides = [1, 1]} : vector<3x10xf32> to vector<3x8xf32>
    %cst_102 = arith.constant dense<0.000000e+00> : vector<2x8xf32>
    %135 = tpu.matmul %21, %134, %cst_102 {dimension_numbers = #tpu.dot_dimension_numbers<[1], [0], [0], [1], [0, 0, 1, 1], [], []>} : vector<2x3xf32>, vector<3x8xf32>, vector<2x8xf32> -> vector<2x8xf32>
    %136 = arith.addf %133, %135 : vector<2x8xf32>
    %137 = vector.broadcast %34 : vector<2x1xf32> to vector<2x8xf32>
    %138 = arith.addf %136, %137 : vector<2x8xf32>
    %cst_103 = arith.constant 0.000000e+00 : f32
    %139 = vector.broadcast %cst_103 : f32 to vector<2x8xf32>
    %140 = arith.maximumf %138, %139 : vector<2x8xf32>
    %c14 = arith.constant 14 : index
    %c1_104 = arith.constant 1 : index
    %141 = vector.load %arg11[%c14, %c1_104] : memref<36x10xf32, #tpu.memory_space<vmem>>, vector<2x8xf32>
    tpu.vector_store %arg11[%c14, %c1_104], %140 {strides = array<i32>} : memref<36x10xf32, #tpu.memory_space<vmem>>, vector<2x8xf32>,
    %c0_105 = arith.constant 0 : index
    %c7 = arith.constant 7 : index
    %c0_106 = arith.constant 0 : index
    %142 = vector.load %arg1[%c0_105, %c7, %c0_106] : memref<1x18x10xf32, #tpu.memory_space<vmem>>, vector<1x3x10xf32>
    %143 = vector.shape_cast %142 : vector<1x3x10xf32> to vector<3x10xf32>
    %144 = vector.extract_strided_slice %143 {offsets = [0, 0], sizes = [3, 8], strides = [1, 1]} : vector<3x10xf32> to vector<3x8xf32>
    %cst_107 = arith.constant dense<0.000000e+00> : vector<2x8xf32>
    %145 = tpu.matmul %17, %144, %cst_107 {dimension_numbers = #tpu.dot_dimension_numbers<[1], [0], [0], [1], [0, 0, 1, 1], [], []>} : vector<2x3xf32>, vector<3x8xf32>, vector<2x8xf32> -> vector<2x8xf32>
    %146 = vector.extract_strided_slice %143 {offsets = [0, 1], sizes = [3, 8], strides = [1, 1]} : vector<3x10xf32> to vector<3x8xf32>
    %cst_108 = arith.constant dense<0.000000e+00> : vector<2x8xf32>
    %147 = tpu.matmul %19, %146, %cst_108 {dimension_numbers = #tpu.dot_dimension_numbers<[1], [0], [0], [1], [0, 0, 1, 1], [], []>} : vector<2x3xf32>, vector<3x8xf32>, vector<2x8xf32> -> vector<2x8xf32>
    %148 = arith.addf %145, %147 : vector<2x8xf32>
    %149 = vector.extract_strided_slice %143 {offsets = [0, 2], sizes = [3, 8], strides = [1, 1]} : vector<3x10xf32> to vector<3x8xf32>
    %cst_109 = arith.constant dense<0.000000e+00> : vector<2x8xf32>
    %150 = tpu.matmul %21, %149, %cst_109 {dimension_numbers = #tpu.dot_dimension_numbers<[1], [0], [0], [1], [0, 0, 1, 1], [], []>} : vector<2x3xf32>, vector<3x8xf32>, vector<2x8xf32> -> vector<2x8xf32>
    %151 = arith.addf %148, %150 : vector<2x8xf32>
    %152 = vector.broadcast %34 : vector<2x1xf32> to vector<2x8xf32>
    %153 = arith.addf %151, %152 : vector<2x8xf32>
    %cst_110 = arith.constant 0.000000e+00 : f32
    %154 = vector.broadcast %cst_110 : f32 to vector<2x8xf32>
    %155 = arith.maximumf %153, %154 : vector<2x8xf32>
    %c16 = arith.constant 16 : index
    %c1_111 = arith.constant 1 : index
    %156 = vector.load %arg11[%c16, %c1_111] : memref<36x10xf32, #tpu.memory_space<vmem>>, vector<2x8xf32>
    tpu.vector_store %arg11[%c16, %c1_111], %155 {strides = array<i32>} : memref<36x10xf32, #tpu.memory_space<vmem>>, vector<2x8xf32>,
    %c0_112 = arith.constant 0 : index
    %c8_113 = arith.constant 8 : index
    %c0_114 = arith.constant 0 : index
    %157 = vector.load %arg1[%c0_112, %c8_113, %c0_114] : memref<1x18x10xf32, #tpu.memory_space<vmem>>, vector<1x3x10xf32>
    %158 = vector.shape_cast %157 : vector<1x3x10xf32> to vector<3x10xf32>
    %159 = vector.extract_strided_slice %158 {offsets = [0, 0], sizes = [3, 8], strides = [1, 1]} : vector<3x10xf32> to vector<3x8xf32>
    %cst_115 = arith.constant dense<0.000000e+00> : vector<2x8xf32>
    %160 = tpu.matmul %17, %159, %cst_115 {dimension_numbers = #tpu.dot_dimension_numbers<[1], [0], [0], [1], [0, 0, 1, 1], [], []>} : vector<2x3xf32>, vector<3x8xf32>, vector<2x8xf32> -> vector<2x8xf32>
    %161 = vector.extract_strided_slice %158 {offsets = [0, 1], sizes = [3, 8], strides = [1, 1]} : vector<3x10xf32> to vector<3x8xf32>
    %cst_116 = arith.constant dense<0.000000e+00> : vector<2x8xf32>
    %162 = tpu.matmul %19, %161, %cst_116 {dimension_numbers = #tpu.dot_dimension_numbers<[1], [0], [0], [1], [0, 0, 1, 1], [], []>} : vector<2x3xf32>, vector<3x8xf32>, vector<2x8xf32> -> vector<2x8xf32>
    %163 = arith.addf %160, %162 : vector<2x8xf32>
    %164 = vector.extract_strided_slice %158 {offsets = [0, 2], sizes = [3, 8], strides = [1, 1]} : vector<3x10xf32> to vector<3x8xf32>
    %cst_117 = arith.constant dense<0.000000e+00> : vector<2x8xf32>
    %165 = tpu.matmul %21, %164, %cst_117 {dimension_numbers = #tpu.dot_dimension_numbers<[1], [0], [0], [1], [0, 0, 1, 1], [], []>} : vector<2x3xf32>, vector<3x8xf32>, vector<2x8xf32> -> vector<2x8xf32>
    %166 = arith.addf %163, %165 : vector<2x8xf32>
    %167 = vector.broadcast %34 : vector<2x1xf32> to vector<2x8xf32>
    %168 = arith.addf %166, %167 : vector<2x8xf32>
    %cst_118 = arith.constant 0.000000e+00 : f32
    %169 = vector.broadcast %cst_118 : f32 to vector<2x8xf32>
    %170 = arith.maximumf %168, %169 : vector<2x8xf32>
    %c18_119 = arith.constant 18 : index
    %c1_120 = arith.constant 1 : index
    %171 = vector.load %arg11[%c18_119, %c1_120] : memref<36x10xf32, #tpu.memory_space<vmem>>, vector<2x8xf32>
    tpu.vector_store %arg11[%c18_119, %c1_120], %170 {strides = array<i32>} : memref<36x10xf32, #tpu.memory_space<vmem>>, vector<2x8xf32>,
    %c0_121 = arith.constant 0 : index
    %c9_122 = arith.constant 9 : index
    %c0_123 = arith.constant 0 : index
    %172 = vector.load %arg1[%c0_121, %c9_122, %c0_123] : memref<1x18x10xf32, #tpu.memory_space<vmem>>, vector<1x3x10xf32>
    %173 = vector.shape_cast %172 : vector<1x3x10xf32> to vector<3x10xf32>
    %174 = vector.extract_strided_slice %173 {offsets = [0, 0], sizes = [3, 8], strides = [1, 1]} : vector<3x10xf32> to vector<3x8xf32>
    %cst_124 = arith.constant dense<0.000000e+00> : vector<2x8xf32>
    %175 = tpu.matmul %17, %174, %cst_124 {dimension_numbers = #tpu.dot_dimension_numbers<[1], [0], [0], [1], [0, 0, 1, 1], [], []>} : vector<2x3xf32>, vector<3x8xf32>, vector<2x8xf32> -> vector<2x8xf32>
    %176 = vector.extract_strided_slice %173 {offsets = [0, 1], sizes = [3, 8], strides = [1, 1]} : vector<3x10xf32> to vector<3x8xf32>
    %cst_125 = arith.constant dense<0.000000e+00> : vector<2x8xf32>
    %177 = tpu.matmul %19, %176, %cst_125 {dimension_numbers = #tpu.dot_dimension_numbers<[1], [0], [0], [1], [0, 0, 1, 1], [], []>} : vector<2x3xf32>, vector<3x8xf32>, vector<2x8xf32> -> vector<2x8xf32>
    %178 = arith.addf %175, %177 : vector<2x8xf32>
    %179 = vector.extract_strided_slice %173 {offsets = [0, 2], sizes = [3, 8], strides = [1, 1]} : vector<3x10xf32> to vector<3x8xf32>
    %cst_126 = arith.constant dense<0.000000e+00> : vector<2x8xf32>
    %180 = tpu.matmul %21, %179, %cst_126 {dimension_numbers = #tpu.dot_dimension_numbers<[1], [0], [0], [1], [0, 0, 1, 1], [], []>} : vector<2x3xf32>, vector<3x8xf32>, vector<2x8xf32> -> vector<2x8xf32>
    %181 = arith.addf %178, %180 : vector<2x8xf32>
    %182 = vector.broadcast %34 : vector<2x1xf32> to vector<2x8xf32>
    %183 = arith.addf %181, %182 : vector<2x8xf32>
    %cst_127 = arith.constant 0.000000e+00 : f32
    %184 = vector.broadcast %cst_127 : f32 to vector<2x8xf32>
    %185 = arith.maximumf %183, %184 : vector<2x8xf32>
    %c20 = arith.constant 20 : index
    %c1_128 = arith.constant 1 : index
    %186 = vector.load %arg11[%c20, %c1_128] : memref<36x10xf32, #tpu.memory_space<vmem>>, vector<2x8xf32>
    tpu.vector_store %arg11[%c20, %c1_128], %185 {strides = array<i32>} : memref<36x10xf32, #tpu.memory_space<vmem>>, vector<2x8xf32>,
    %c0_129 = arith.constant 0 : index
    %c10_130 = arith.constant 10 : index
    %c0_131 = arith.constant 0 : index
    %187 = vector.load %arg1[%c0_129, %c10_130, %c0_131] : memref<1x18x10xf32, #tpu.memory_space<vmem>>, vector<1x3x10xf32>
    %188 = vector.shape_cast %187 : vector<1x3x10xf32> to vector<3x10xf32>
    %189 = vector.extract_strided_slice %188 {offsets = [0, 0], sizes = [3, 8], strides = [1, 1]} : vector<3x10xf32> to vector<3x8xf32>
    %cst_132 = arith.constant dense<0.000000e+00> : vector<2x8xf32>
    %190 = tpu.matmul %17, %189, %cst_132 {dimension_numbers = #tpu.dot_dimension_numbers<[1], [0], [0], [1], [0, 0, 1, 1], [], []>} : vector<2x3xf32>, vector<3x8xf32>, vector<2x8xf32> -> vector<2x8xf32>
    %191 = vector.extract_strided_slice %188 {offsets = [0, 1], sizes = [3, 8], strides = [1, 1]} : vector<3x10xf32> to vector<3x8xf32>
    %cst_133 = arith.constant dense<0.000000e+00> : vector<2x8xf32>
    %192 = tpu.matmul %19, %191, %cst_133 {dimension_numbers = #tpu.dot_dimension_numbers<[1], [0], [0], [1], [0, 0, 1, 1], [], []>} : vector<2x3xf32>, vector<3x8xf32>, vector<2x8xf32> -> vector<2x8xf32>
    %193 = arith.addf %190, %192 : vector<2x8xf32>
    %194 = vector.extract_strided_slice %188 {offsets = [0, 2], sizes = [3, 8], strides = [1, 1]} : vector<3x10xf32> to vector<3x8xf32>
    %cst_134 = arith.constant dense<0.000000e+00> : vector<2x8xf32>
    %195 = tpu.matmul %21, %194, %cst_134 {dimension_numbers = #tpu.dot_dimension_numbers<[1], [0], [0], [1], [0, 0, 1, 1], [], []>} : vector<2x3xf32>, vector<3x8xf32>, vector<2x8xf32> -> vector<2x8xf32>
    %196 = arith.addf %193, %195 : vector<2x8xf32>
    %197 = vector.broadcast %34 : vector<2x1xf32> to vector<2x8xf32>
    %198 = arith.addf %196, %197 : vector<2x8xf32>
    %cst_135 = arith.constant 0.000000e+00 : f32
    %199 = vector.broadcast %cst_135 : f32 to vector<2x8xf32>
    %200 = arith.maximumf %198, %199 : vector<2x8xf32>
    %c22 = arith.constant 22 : index
    %c1_136 = arith.constant 1 : index
    %201 = vector.load %arg11[%c22, %c1_136] : memref<36x10xf32, #tpu.memory_space<vmem>>, vector<2x8xf32>
    tpu.vector_store %arg11[%c22, %c1_136], %200 {strides = array<i32>} : memref<36x10xf32, #tpu.memory_space<vmem>>, vector<2x8xf32>,
    %c0_137 = arith.constant 0 : index
    %c11 = arith.constant 11 : index
    %c0_138 = arith.constant 0 : index
    %202 = vector.load %arg1[%c0_137, %c11, %c0_138] : memref<1x18x10xf32, #tpu.memory_space<vmem>>, vector<1x3x10xf32>
    %203 = vector.shape_cast %202 : vector<1x3x10xf32> to vector<3x10xf32>
    %204 = vector.extract_strided_slice %203 {offsets = [0, 0], sizes = [3, 8], strides = [1, 1]} : vector<3x10xf32> to vector<3x8xf32>
    %cst_139 = arith.constant dense<0.000000e+00> : vector<2x8xf32>
    %205 = tpu.matmul %17, %204, %cst_139 {dimension_numbers = #tpu.dot_dimension_numbers<[1], [0], [0], [1], [0, 0, 1, 1], [], []>} : vector<2x3xf32>, vector<3x8xf32>, vector<2x8xf32> -> vector<2x8xf32>
    %206 = vector.extract_strided_slice %203 {offsets = [0, 1], sizes = [3, 8], strides = [1, 1]} : vector<3x10xf32> to vector<3x8xf32>
    %cst_140 = arith.constant dense<0.000000e+00> : vector<2x8xf32>
    %207 = tpu.matmul %19, %206, %cst_140 {dimension_numbers = #tpu.dot_dimension_numbers<[1], [0], [0], [1], [0, 0, 1, 1], [], []>} : vector<2x3xf32>, vector<3x8xf32>, vector<2x8xf32> -> vector<2x8xf32>
    %208 = arith.addf %205, %207 : vector<2x8xf32>
    %209 = vector.extract_strided_slice %203 {offsets = [0, 2], sizes = [3, 8], strides = [1, 1]} : vector<3x10xf32> to vector<3x8xf32>
    %cst_141 = arith.constant dense<0.000000e+00> : vector<2x8xf32>
    %210 = tpu.matmul %21, %209, %cst_141 {dimension_numbers = #tpu.dot_dimension_numbers<[1], [0], [0], [1], [0, 0, 1, 1], [], []>} : vector<2x3xf32>, vector<3x8xf32>, vector<2x8xf32> -> vector<2x8xf32>
    %211 = arith.addf %208, %210 : vector<2x8xf32>
    %212 = vector.broadcast %34 : vector<2x1xf32> to vector<2x8xf32>
    %213 = arith.addf %211, %212 : vector<2x8xf32>
    %cst_142 = arith.constant 0.000000e+00 : f32
    %214 = vector.broadcast %cst_142 : f32 to vector<2x8xf32>
    %215 = arith.maximumf %213, %214 : vector<2x8xf32>
    %c24 = arith.constant 24 : index
    %c1_143 = arith.constant 1 : index
    %216 = vector.load %arg11[%c24, %c1_143] : memref<36x10xf32, #tpu.memory_space<vmem>>, vector<2x8xf32>
    tpu.vector_store %arg11[%c24, %c1_143], %215 {strides = array<i32>} : memref<36x10xf32, #tpu.memory_space<vmem>>, vector<2x8xf32>,
    %c0_144 = arith.constant 0 : index
    %c12_145 = arith.constant 12 : index
    %c0_146 = arith.constant 0 : index
    %217 = vector.load %arg1[%c0_144, %c12_145, %c0_146] : memref<1x18x10xf32, #tpu.memory_space<vmem>>, vector<1x3x10xf32>
    %218 = vector.shape_cast %217 : vector<1x3x10xf32> to vector<3x10xf32>
    %219 = vector.extract_strided_slice %218 {offsets = [0, 0], sizes = [3, 8], strides = [1, 1]} : vector<3x10xf32> to vector<3x8xf32>
    %cst_147 = arith.constant dense<0.000000e+00> : vector<2x8xf32>
    %220 = tpu.matmul %17, %219, %cst_147 {dimension_numbers = #tpu.dot_dimension_numbers<[1], [0], [0], [1], [0, 0, 1, 1], [], []>} : vector<2x3xf32>, vector<3x8xf32>, vector<2x8xf32> -> vector<2x8xf32>
    %221 = vector.extract_strided_slice %218 {offsets = [0, 1], sizes = [3, 8], strides = [1, 1]} : vector<3x10xf32> to vector<3x8xf32>
    %cst_148 = arith.constant dense<0.000000e+00> : vector<2x8xf32>
    %222 = tpu.matmul %19, %221, %cst_148 {dimension_numbers = #tpu.dot_dimension_numbers<[1], [0], [0], [1], [0, 0, 1, 1], [], []>} : vector<2x3xf32>, vector<3x8xf32>, vector<2x8xf32> -> vector<2x8xf32>
    %223 = arith.addf %220, %222 : vector<2x8xf32>
    %224 = vector.extract_strided_slice %218 {offsets = [0, 2], sizes = [3, 8], strides = [1, 1]} : vector<3x10xf32> to vector<3x8xf32>
    %cst_149 = arith.constant dense<0.000000e+00> : vector<2x8xf32>
    %225 = tpu.matmul %21, %224, %cst_149 {dimension_numbers = #tpu.dot_dimension_numbers<[1], [0], [0], [1], [0, 0, 1, 1], [], []>} : vector<2x3xf32>, vector<3x8xf32>, vector<2x8xf32> -> vector<2x8xf32>
    %226 = arith.addf %223, %225 : vector<2x8xf32>
    %227 = vector.broadcast %34 : vector<2x1xf32> to vector<2x8xf32>
    %228 = arith.addf %226, %227 : vector<2x8xf32>
    %cst_150 = arith.constant 0.000000e+00 : f32
    %229 = vector.broadcast %cst_150 : f32 to vector<2x8xf32>
    %230 = arith.maximumf %228, %229 : vector<2x8xf32>
    %c26 = arith.constant 26 : index
    %c1_151 = arith.constant 1 : index
    %231 = vector.load %arg11[%c26, %c1_151] : memref<36x10xf32, #tpu.memory_space<vmem>>, vector<2x8xf32>
    tpu.vector_store %arg11[%c26, %c1_151], %230 {strides = array<i32>} : memref<36x10xf32, #tpu.memory_space<vmem>>, vector<2x8xf32>,
    %c0_152 = arith.constant 0 : index
    %c13 = arith.constant 13 : index
    %c0_153 = arith.constant 0 : index
    %232 = vector.load %arg1[%c0_152, %c13, %c0_153] : memref<1x18x10xf32, #tpu.memory_space<vmem>>, vector<1x3x10xf32>
    %233 = vector.shape_cast %232 : vector<1x3x10xf32> to vector<3x10xf32>
    %234 = vector.extract_strided_slice %233 {offsets = [0, 0], sizes = [3, 8], strides = [1, 1]} : vector<3x10xf32> to vector<3x8xf32>
    %cst_154 = arith.constant dense<0.000000e+00> : vector<2x8xf32>
    %235 = tpu.matmul %17, %234, %cst_154 {dimension_numbers = #tpu.dot_dimension_numbers<[1], [0], [0], [1], [0, 0, 1, 1], [], []>} : vector<2x3xf32>, vector<3x8xf32>, vector<2x8xf32> -> vector<2x8xf32>
    %236 = vector.extract_strided_slice %233 {offsets = [0, 1], sizes = [3, 8], strides = [1, 1]} : vector<3x10xf32> to vector<3x8xf32>
    %cst_155 = arith.constant dense<0.000000e+00> : vector<2x8xf32>
    %237 = tpu.matmul %19, %236, %cst_155 {dimension_numbers = #tpu.dot_dimension_numbers<[1], [0], [0], [1], [0, 0, 1, 1], [], []>} : vector<2x3xf32>, vector<3x8xf32>, vector<2x8xf32> -> vector<2x8xf32>
    %238 = arith.addf %235, %237 : vector<2x8xf32>
    %239 = vector.extract_strided_slice %233 {offsets = [0, 2], sizes = [3, 8], strides = [1, 1]} : vector<3x10xf32> to vector<3x8xf32>
    %cst_156 = arith.constant dense<0.000000e+00> : vector<2x8xf32>
    %240 = tpu.matmul %21, %239, %cst_156 {dimension_numbers = #tpu.dot_dimension_numbers<[1], [0], [0], [1], [0, 0, 1, 1], [], []>} : vector<2x3xf32>, vector<3x8xf32>, vector<2x8xf32> -> vector<2x8xf32>
    %241 = arith.addf %238, %240 : vector<2x8xf32>
    %242 = vector.broadcast %34 : vector<2x1xf32> to vector<2x8xf32>
    %243 = arith.addf %241, %242 : vector<2x8xf32>
    %cst_157 = arith.constant 0.000000e+00 : f32
    %244 = vector.broadcast %cst_157 : f32 to vector<2x8xf32>
    %245 = arith.maximumf %243, %244 : vector<2x8xf32>
    %c28 = arith.constant 28 : index
    %c1_158 = arith.constant 1 : index
    %246 = vector.load %arg11[%c28, %c1_158] : memref<36x10xf32, #tpu.memory_space<vmem>>, vector<2x8xf32>
    tpu.vector_store %arg11[%c28, %c1_158], %245 {strides = array<i32>} : memref<36x10xf32, #tpu.memory_space<vmem>>, vector<2x8xf32>,
    %c0_159 = arith.constant 0 : index
    %c14_160 = arith.constant 14 : index
    %c0_161 = arith.constant 0 : index
    %247 = vector.load %arg1[%c0_159, %c14_160, %c0_161] : memref<1x18x10xf32, #tpu.memory_space<vmem>>, vector<1x3x10xf32>
    %248 = vector.shape_cast %247 : vector<1x3x10xf32> to vector<3x10xf32>
    %249 = vector.extract_strided_slice %248 {offsets = [0, 0], sizes = [3, 8], strides = [1, 1]} : vector<3x10xf32> to vector<3x8xf32>
    %cst_162 = arith.constant dense<0.000000e+00> : vector<2x8xf32>
    %250 = tpu.matmul %17, %249, %cst_162 {dimension_numbers = #tpu.dot_dimension_numbers<[1], [0], [0], [1], [0, 0, 1, 1], [], []>} : vector<2x3xf32>, vector<3x8xf32>, vector<2x8xf32> -> vector<2x8xf32>
    %251 = vector.extract_strided_slice %248 {offsets = [0, 1], sizes = [3, 8], strides = [1, 1]} : vector<3x10xf32> to vector<3x8xf32>
    %cst_163 = arith.constant dense<0.000000e+00> : vector<2x8xf32>
    %252 = tpu.matmul %19, %251, %cst_163 {dimension_numbers = #tpu.dot_dimension_numbers<[1], [0], [0], [1], [0, 0, 1, 1], [], []>} : vector<2x3xf32>, vector<3x8xf32>, vector<2x8xf32> -> vector<2x8xf32>
    %253 = arith.addf %250, %252 : vector<2x8xf32>
    %254 = vector.extract_strided_slice %248 {offsets = [0, 2], sizes = [3, 8], strides = [1, 1]} : vector<3x10xf32> to vector<3x8xf32>
    %cst_164 = arith.constant dense<0.000000e+00> : vector<2x8xf32>
    %255 = tpu.matmul %21, %254, %cst_164 {dimension_numbers = #tpu.dot_dimension_numbers<[1], [0], [0], [1], [0, 0, 1, 1], [], []>} : vector<2x3xf32>, vector<3x8xf32>, vector<2x8xf32> -> vector<2x8xf32>
    %256 = arith.addf %253, %255 : vector<2x8xf32>
    %257 = vector.broadcast %34 : vector<2x1xf32> to vector<2x8xf32>
    %258 = arith.addf %256, %257 : vector<2x8xf32>
    %cst_165 = arith.constant 0.000000e+00 : f32
    %259 = vector.broadcast %cst_165 : f32 to vector<2x8xf32>
    %260 = arith.maximumf %258, %259 : vector<2x8xf32>
    %c30 = arith.constant 30 : index
    %c1_166 = arith.constant 1 : index
    %261 = vector.load %arg11[%c30, %c1_166] : memref<36x10xf32, #tpu.memory_space<vmem>>, vector<2x8xf32>
    tpu.vector_store %arg11[%c30, %c1_166], %260 {strides = array<i32>} : memref<36x10xf32, #tpu.memory_space<vmem>>, vector<2x8xf32>,
    %c0_167 = arith.constant 0 : index
    %c15 = arith.constant 15 : index
    %c0_168 = arith.constant 0 : index
    %262 = vector.load %arg1[%c0_167, %c15, %c0_168] : memref<1x18x10xf32, #tpu.memory_space<vmem>>, vector<1x3x10xf32>
    %263 = vector.shape_cast %262 : vector<1x3x10xf32> to vector<3x10xf32>
    %264 = vector.extract_strided_slice %263 {offsets = [0, 0], sizes = [3, 8], strides = [1, 1]} : vector<3x10xf32> to vector<3x8xf32>
    %cst_169 = arith.constant dense<0.000000e+00> : vector<2x8xf32>
    %265 = tpu.matmul %17, %264, %cst_169 {dimension_numbers = #tpu.dot_dimension_numbers<[1], [0], [0], [1], [0, 0, 1, 1], [], []>} : vector<2x3xf32>, vector<3x8xf32>, vector<2x8xf32> -> vector<2x8xf32>
    %266 = vector.extract_strided_slice %263 {offsets = [0, 1], sizes = [3, 8], strides = [1, 1]} : vector<3x10xf32> to vector<3x8xf32>
    %cst_170 = arith.constant dense<0.000000e+00> : vector<2x8xf32>
    %267 = tpu.matmul %19, %266, %cst_170 {dimension_numbers = #tpu.dot_dimension_numbers<[1], [0], [0], [1], [0, 0, 1, 1], [], []>} : vector<2x3xf32>, vector<3x8xf32>, vector<2x8xf32> -> vector<2x8xf32>
    %268 = arith.addf %265, %267 : vector<2x8xf32>
    %269 = vector.extract_strided_slice %263 {offsets = [0, 2], sizes = [3, 8], strides = [1, 1]} : vector<3x10xf32> to vector<3x8xf32>
    %cst_171 = arith.constant dense<0.000000e+00> : vector<2x8xf32>
    %270 = tpu.matmul %21, %269, %cst_171 {dimension_numbers = #tpu.dot_dimension_numbers<[1], [0], [0], [1], [0, 0, 1, 1], [], []>} : vector<2x3xf32>, vector<3x8xf32>, vector<2x8xf32> -> vector<2x8xf32>
    %271 = arith.addf %268, %270 : vector<2x8xf32>
    %272 = vector.broadcast %34 : vector<2x1xf32> to vector<2x8xf32>
    %273 = arith.addf %271, %272 : vector<2x8xf32>
    %cst_172 = arith.constant 0.000000e+00 : f32
    %274 = vector.broadcast %cst_172 : f32 to vector<2x8xf32>
    %275 = arith.maximumf %273, %274 : vector<2x8xf32>
    %c32 = arith.constant 32 : index
    %c1_173 = arith.constant 1 : index
    %276 = vector.load %arg11[%c32, %c1_173] : memref<36x10xf32, #tpu.memory_space<vmem>>, vector<2x8xf32>
    tpu.vector_store %arg11[%c32, %c1_173], %275 {strides = array<i32>} : memref<36x10xf32, #tpu.memory_space<vmem>>, vector<2x8xf32>,
    %c0_174 = arith.constant 0 : index
    %c0_175 = arith.constant 0 : index
    %277 = vector.load %arg11[%c0_174, %c0_175] : memref<36x10xf32, #tpu.memory_space<vmem>>, vector<6x10xf32>
    %278 = arith.truncf %277 : vector<6x10xf32> to vector<6x10xbf16>
    %279 = vector.extract_strided_slice %278 {offsets = [0, 0], sizes = [6, 8], strides = [1, 1]} : vector<6x10xbf16> to vector<6x8xbf16>
    %cst_176 = arith.constant dense<0.000000e+00> : vector<2x8xf32>
    %280 = tpu.matmul %23, %279, %cst_176 {dimension_numbers = #tpu.dot_dimension_numbers<[1], [0], [0], [1], [0, 0, 1, 1], [], []>} : vector<2x6xbf16>, vector<6x8xbf16>, vector<2x8xf32> -> vector<2x8xf32>
    %281 = vector.extract_strided_slice %278 {offsets = [0, 1], sizes = [6, 8], strides = [1, 1]} : vector<6x10xbf16> to vector<6x8xbf16>
    %cst_177 = arith.constant dense<0.000000e+00> : vector<2x8xf32>
    %282 = tpu.matmul %25, %281, %cst_177 {dimension_numbers = #tpu.dot_dimension_numbers<[1], [0], [0], [1], [0, 0, 1, 1], [], []>} : vector<2x6xbf16>, vector<6x8xbf16>, vector<2x8xf32> -> vector<2x8xf32>
    %283 = arith.addf %280, %282 : vector<2x8xf32>
    %284 = vector.extract_strided_slice %278 {offsets = [0, 2], sizes = [6, 8], strides = [1, 1]} : vector<6x10xbf16> to vector<6x8xbf16>
    %cst_178 = arith.constant dense<0.000000e+00> : vector<2x8xf32>
    %285 = tpu.matmul %27, %284, %cst_178 {dimension_numbers = #tpu.dot_dimension_numbers<[1], [0], [0], [1], [0, 0, 1, 1], [], []>} : vector<2x6xbf16>, vector<6x8xbf16>, vector<2x8xf32> -> vector<2x8xf32>
    %286 = arith.addf %283, %285 : vector<2x8xf32>
    %c2_179 = arith.constant 2 : index
    %c0_180 = arith.constant 0 : index
    %287 = vector.load %arg11[%c2_179, %c0_180] : memref<36x10xf32, #tpu.memory_space<vmem>>, vector<6x10xf32>
    %288 = arith.truncf %287 : vector<6x10xf32> to vector<6x10xbf16>
    %289 = vector.extract_strided_slice %288 {offsets = [0, 0], sizes = [6, 8], strides = [1, 1]} : vector<6x10xbf16> to vector<6x8xbf16>
    %cst_181 = arith.constant dense<0.000000e+00> : vector<2x8xf32>
    %290 = tpu.matmul %23, %289, %cst_181 {dimension_numbers = #tpu.dot_dimension_numbers<[1], [0], [0], [1], [0, 0, 1, 1], [], []>} : vector<2x6xbf16>, vector<6x8xbf16>, vector<2x8xf32> -> vector<2x8xf32>
    %291 = vector.extract_strided_slice %288 {offsets = [0, 1], sizes = [6, 8], strides = [1, 1]} : vector<6x10xbf16> to vector<6x8xbf16>
    %cst_182 = arith.constant dense<0.000000e+00> : vector<2x8xf32>
    %292 = tpu.matmul %25, %291, %cst_182 {dimension_numbers = #tpu.dot_dimension_numbers<[1], [0], [0], [1], [0, 0, 1, 1], [], []>} : vector<2x6xbf16>, vector<6x8xbf16>, vector<2x8xf32> -> vector<2x8xf32>
    %293 = arith.addf %290, %292 : vector<2x8xf32>
    %294 = vector.extract_strided_slice %288 {offsets = [0, 2], sizes = [6, 8], strides = [1, 1]} : vector<6x10xbf16> to vector<6x8xbf16>
    %cst_183 = arith.constant dense<0.000000e+00> : vector<2x8xf32>
    %295 = tpu.matmul %27, %294, %cst_183 {dimension_numbers = #tpu.dot_dimension_numbers<[1], [0], [0], [1], [0, 0, 1, 1], [], []>} : vector<2x6xbf16>, vector<6x8xbf16>, vector<2x8xf32> -> vector<2x8xf32>
    %296 = arith.addf %293, %295 : vector<2x8xf32>
    %297 = arith.maximumf %286, %296 : vector<2x8xf32>
    %298 = vector.broadcast %35 : vector<2x1xf32> to vector<2x8xf32>
    %299 = arith.addf %297, %298 : vector<2x8xf32>
    %cst_184 = arith.constant 0.000000e+00 : f32
    %300 = vector.broadcast %cst_184 : f32 to vector<2x8xf32>
    %301 = arith.maximumf %299, %300 : vector<2x8xf32>
    %c2_185 = arith.constant 2 : index
    %c1_186 = arith.constant 1 : index
    %302 = vector.load %arg12[%c2_185, %c1_186] : memref<20x10xf32, #tpu.memory_space<vmem>>, vector<2x8xf32>
    tpu.vector_store %arg12[%c2_185, %c1_186], %301 {strides = array<i32>} : memref<20x10xf32, #tpu.memory_space<vmem>>, vector<2x8xf32>,
    %c4_187 = arith.constant 4 : index
    %c0_188 = arith.constant 0 : index
    %303 = vector.load %arg11[%c4_187, %c0_188] : memref<36x10xf32, #tpu.memory_space<vmem>>, vector<6x10xf32>
    %304 = arith.truncf %303 : vector<6x10xf32> to vector<6x10xbf16>
    %305 = vector.extract_strided_slice %304 {offsets = [0, 0], sizes = [6, 8], strides = [1, 1]} : vector<6x10xbf16> to vector<6x8xbf16>
    %cst_189 = arith.constant dense<0.000000e+00> : vector<2x8xf32>
    %306 = tpu.matmul %23, %305, %cst_189 {dimension_numbers = #tpu.dot_dimension_numbers<[1], [0], [0], [1], [0, 0, 1, 1], [], []>} : vector<2x6xbf16>, vector<6x8xbf16>, vector<2x8xf32> -> vector<2x8xf32>
    %307 = vector.extract_strided_slice %304 {offsets = [0, 1], sizes = [6, 8], strides = [1, 1]} : vector<6x10xbf16> to vector<6x8xbf16>
    %cst_190 = arith.constant dense<0.000000e+00> : vector<2x8xf32>
    %308 = tpu.matmul %25, %307, %cst_190 {dimension_numbers = #tpu.dot_dimension_numbers<[1], [0], [0], [1], [0, 0, 1, 1], [], []>} : vector<2x6xbf16>, vector<6x8xbf16>, vector<2x8xf32> -> vector<2x8xf32>
    %309 = arith.addf %306, %308 : vector<2x8xf32>
    %310 = vector.extract_strided_slice %304 {offsets = [0, 2], sizes = [6, 8], strides = [1, 1]} : vector<6x10xbf16> to vector<6x8xbf16>
    %cst_191 = arith.constant dense<0.000000e+00> : vector<2x8xf32>
    %311 = tpu.matmul %27, %310, %cst_191 {dimension_numbers = #tpu.dot_dimension_numbers<[1], [0], [0], [1], [0, 0, 1, 1], [], []>} : vector<2x6xbf16>, vector<6x8xbf16>, vector<2x8xf32> -> vector<2x8xf32>
    %312 = arith.addf %309, %311 : vector<2x8xf32>
    %c6_192 = arith.constant 6 : index
    %c0_193 = arith.constant 0 : index
    %313 = vector.load %arg11[%c6_192, %c0_193] : memref<36x10xf32, #tpu.memory_space<vmem>>, vector<6x10xf32>
    %314 = arith.truncf %313 : vector<6x10xf32> to vector<6x10xbf16>
    %315 = vector.extract_strided_slice %314 {offsets = [0, 0], sizes = [6, 8], strides = [1, 1]} : vector<6x10xbf16> to vector<6x8xbf16>
    %cst_194 = arith.constant dense<0.000000e+00> : vector<2x8xf32>
    %316 = tpu.matmul %23, %315, %cst_194 {dimension_numbers = #tpu.dot_dimension_numbers<[1], [0], [0], [1], [0, 0, 1, 1], [], []>} : vector<2x6xbf16>, vector<6x8xbf16>, vector<2x8xf32> -> vector<2x8xf32>
    %317 = vector.extract_strided_slice %314 {offsets = [0, 1], sizes = [6, 8], strides = [1, 1]} : vector<6x10xbf16> to vector<6x8xbf16>
    %cst_195 = arith.constant dense<0.000000e+00> : vector<2x8xf32>
    %318 = tpu.matmul %25, %317, %cst_195 {dimension_numbers = #tpu.dot_dimension_numbers<[1], [0], [0], [1], [0, 0, 1, 1], [], []>} : vector<2x6xbf16>, vector<6x8xbf16>, vector<2x8xf32> -> vector<2x8xf32>
    %319 = arith.addf %316, %318 : vector<2x8xf32>
    %320 = vector.extract_strided_slice %314 {offsets = [0, 2], sizes = [6, 8], strides = [1, 1]} : vector<6x10xbf16> to vector<6x8xbf16>
    %cst_196 = arith.constant dense<0.000000e+00> : vector<2x8xf32>
    %321 = tpu.matmul %27, %320, %cst_196 {dimension_numbers = #tpu.dot_dimension_numbers<[1], [0], [0], [1], [0, 0, 1, 1], [], []>} : vector<2x6xbf16>, vector<6x8xbf16>, vector<2x8xf32> -> vector<2x8xf32>
    %322 = arith.addf %319, %321 : vector<2x8xf32>
    %323 = arith.maximumf %312, %322 : vector<2x8xf32>
    %324 = vector.broadcast %35 : vector<2x1xf32> to vector<2x8xf32>
    %325 = arith.addf %323, %324 : vector<2x8xf32>
    %cst_197 = arith.constant 0.000000e+00 : f32
    %326 = vector.broadcast %cst_197 : f32 to vector<2x8xf32>
    %327 = arith.maximumf %325, %326 : vector<2x8xf32>
    %c4_198 = arith.constant 4 : index
    %c1_199 = arith.constant 1 : index
    %328 = vector.load %arg12[%c4_198, %c1_199] : memref<20x10xf32, #tpu.memory_space<vmem>>, vector<2x8xf32>
    tpu.vector_store %arg12[%c4_198, %c1_199], %327 {strides = array<i32>} : memref<20x10xf32, #tpu.memory_space<vmem>>, vector<2x8xf32>,
    %c8_200 = arith.constant 8 : index
    %c0_201 = arith.constant 0 : index
    %329 = vector.load %arg11[%c8_200, %c0_201] : memref<36x10xf32, #tpu.memory_space<vmem>>, vector<6x10xf32>
    %330 = arith.truncf %329 : vector<6x10xf32> to vector<6x10xbf16>
    %331 = vector.extract_strided_slice %330 {offsets = [0, 0], sizes = [6, 8], strides = [1, 1]} : vector<6x10xbf16> to vector<6x8xbf16>
    %cst_202 = arith.constant dense<0.000000e+00> : vector<2x8xf32>
    %332 = tpu.matmul %23, %331, %cst_202 {dimension_numbers = #tpu.dot_dimension_numbers<[1], [0], [0], [1], [0, 0, 1, 1], [], []>} : vector<2x6xbf16>, vector<6x8xbf16>, vector<2x8xf32> -> vector<2x8xf32>
    %333 = vector.extract_strided_slice %330 {offsets = [0, 1], sizes = [6, 8], strides = [1, 1]} : vector<6x10xbf16> to vector<6x8xbf16>
    %cst_203 = arith.constant dense<0.000000e+00> : vector<2x8xf32>
    %334 = tpu.matmul %25, %333, %cst_203 {dimension_numbers = #tpu.dot_dimension_numbers<[1], [0], [0], [1], [0, 0, 1, 1], [], []>} : vector<2x6xbf16>, vector<6x8xbf16>, vector<2x8xf32> -> vector<2x8xf32>
    %335 = arith.addf %332, %334 : vector<2x8xf32>
    %336 = vector.extract_strided_slice %330 {offsets = [0, 2], sizes = [6, 8], strides = [1, 1]} : vector<6x10xbf16> to vector<6x8xbf16>
    %cst_204 = arith.constant dense<0.000000e+00> : vector<2x8xf32>
    %337 = tpu.matmul %27, %336, %cst_204 {dimension_numbers = #tpu.dot_dimension_numbers<[1], [0], [0], [1], [0, 0, 1, 1], [], []>} : vector<2x6xbf16>, vector<6x8xbf16>, vector<2x8xf32> -> vector<2x8xf32>
    %338 = arith.addf %335, %337 : vector<2x8xf32>
    %c10_205 = arith.constant 10 : index
    %c0_206 = arith.constant 0 : index
    %339 = vector.load %arg11[%c10_205, %c0_206] : memref<36x10xf32, #tpu.memory_space<vmem>>, vector<6x10xf32>
    %340 = arith.truncf %339 : vector<6x10xf32> to vector<6x10xbf16>
    %341 = vector.extract_strided_slice %340 {offsets = [0, 0], sizes = [6, 8], strides = [1, 1]} : vector<6x10xbf16> to vector<6x8xbf16>
    %cst_207 = arith.constant dense<0.000000e+00> : vector<2x8xf32>
    %342 = tpu.matmul %23, %341, %cst_207 {dimension_numbers = #tpu.dot_dimension_numbers<[1], [0], [0], [1], [0, 0, 1, 1], [], []>} : vector<2x6xbf16>, vector<6x8xbf16>, vector<2x8xf32> -> vector<2x8xf32>
    %343 = vector.extract_strided_slice %340 {offsets = [0, 1], sizes = [6, 8], strides = [1, 1]} : vector<6x10xbf16> to vector<6x8xbf16>
    %cst_208 = arith.constant dense<0.000000e+00> : vector<2x8xf32>
    %344 = tpu.matmul %25, %343, %cst_208 {dimension_numbers = #tpu.dot_dimension_numbers<[1], [0], [0], [1], [0, 0, 1, 1], [], []>} : vector<2x6xbf16>, vector<6x8xbf16>, vector<2x8xf32> -> vector<2x8xf32>
    %345 = arith.addf %342, %344 : vector<2x8xf32>
    %346 = vector.extract_strided_slice %340 {offsets = [0, 2], sizes = [6, 8], strides = [1, 1]} : vector<6x10xbf16> to vector<6x8xbf16>
    %cst_209 = arith.constant dense<0.000000e+00> : vector<2x8xf32>
    %347 = tpu.matmul %27, %346, %cst_209 {dimension_numbers = #tpu.dot_dimension_numbers<[1], [0], [0], [1], [0, 0, 1, 1], [], []>} : vector<2x6xbf16>, vector<6x8xbf16>, vector<2x8xf32> -> vector<2x8xf32>
    %348 = arith.addf %345, %347 : vector<2x8xf32>
    %349 = arith.maximumf %338, %348 : vector<2x8xf32>
    %350 = vector.broadcast %35 : vector<2x1xf32> to vector<2x8xf32>
    %351 = arith.addf %349, %350 : vector<2x8xf32>
    %cst_210 = arith.constant 0.000000e+00 : f32
    %352 = vector.broadcast %cst_210 : f32 to vector<2x8xf32>
    %353 = arith.maximumf %351, %352 : vector<2x8xf32>
    %c6_211 = arith.constant 6 : index
    %c1_212 = arith.constant 1 : index
    %354 = vector.load %arg12[%c6_211, %c1_212] : memref<20x10xf32, #tpu.memory_space<vmem>>, vector<2x8xf32>
    tpu.vector_store %arg12[%c6_211, %c1_212], %353 {strides = array<i32>} : memref<20x10xf32, #tpu.memory_space<vmem>>, vector<2x8xf32>,
    %c12_213 = arith.constant 12 : index
    %c0_214 = arith.constant 0 : index
    %355 = vector.load %arg11[%c12_213, %c0_214] : memref<36x10xf32, #tpu.memory_space<vmem>>, vector<6x10xf32>
    %356 = arith.truncf %355 : vector<6x10xf32> to vector<6x10xbf16>
    %357 = vector.extract_strided_slice %356 {offsets = [0, 0], sizes = [6, 8], strides = [1, 1]} : vector<6x10xbf16> to vector<6x8xbf16>
    %cst_215 = arith.constant dense<0.000000e+00> : vector<2x8xf32>
    %358 = tpu.matmul %23, %357, %cst_215 {dimension_numbers = #tpu.dot_dimension_numbers<[1], [0], [0], [1], [0, 0, 1, 1], [], []>} : vector<2x6xbf16>, vector<6x8xbf16>, vector<2x8xf32> -> vector<2x8xf32>
    %359 = vector.extract_strided_slice %356 {offsets = [0, 1], sizes = [6, 8], strides = [1, 1]} : vector<6x10xbf16> to vector<6x8xbf16>
    %cst_216 = arith.constant dense<0.000000e+00> : vector<2x8xf32>
    %360 = tpu.matmul %25, %359, %cst_216 {dimension_numbers = #tpu.dot_dimension_numbers<[1], [0], [0], [1], [0, 0, 1, 1], [], []>} : vector<2x6xbf16>, vector<6x8xbf16>, vector<2x8xf32> -> vector<2x8xf32>
    %361 = arith.addf %358, %360 : vector<2x8xf32>
    %362 = vector.extract_strided_slice %356 {offsets = [0, 2], sizes = [6, 8], strides = [1, 1]} : vector<6x10xbf16> to vector<6x8xbf16>
    %cst_217 = arith.constant dense<0.000000e+00> : vector<2x8xf32>
    %363 = tpu.matmul %27, %362, %cst_217 {dimension_numbers = #tpu.dot_dimension_numbers<[1], [0], [0], [1], [0, 0, 1, 1], [], []>} : vector<2x6xbf16>, vector<6x8xbf16>, vector<2x8xf32> -> vector<2x8xf32>
    %364 = arith.addf %361, %363 : vector<2x8xf32>
    %c14_218 = arith.constant 14 : index
    %c0_219 = arith.constant 0 : index
    %365 = vector.load %arg11[%c14_218, %c0_219] : memref<36x10xf32, #tpu.memory_space<vmem>>, vector<6x10xf32>
    %366 = arith.truncf %365 : vector<6x10xf32> to vector<6x10xbf16>
    %367 = vector.extract_strided_slice %366 {offsets = [0, 0], sizes = [6, 8], strides = [1, 1]} : vector<6x10xbf16> to vector<6x8xbf16>
    %cst_220 = arith.constant dense<0.000000e+00> : vector<2x8xf32>
    %368 = tpu.matmul %23, %367, %cst_220 {dimension_numbers = #tpu.dot_dimension_numbers<[1], [0], [0], [1], [0, 0, 1, 1], [], []>} : vector<2x6xbf16>, vector<6x8xbf16>, vector<2x8xf32> -> vector<2x8xf32>
    %369 = vector.extract_strided_slice %366 {offsets = [0, 1], sizes = [6, 8], strides = [1, 1]} : vector<6x10xbf16> to vector<6x8xbf16>
    %cst_221 = arith.constant dense<0.000000e+00> : vector<2x8xf32>
    %370 = tpu.matmul %25, %369, %cst_221 {dimension_numbers = #tpu.dot_dimension_numbers<[1], [0], [0], [1], [0, 0, 1, 1], [], []>} : vector<2x6xbf16>, vector<6x8xbf16>, vector<2x8xf32> -> vector<2x8xf32>
    %371 = arith.addf %368, %370 : vector<2x8xf32>
    %372 = vector.extract_strided_slice %366 {offsets = [0, 2], sizes = [6, 8], strides = [1, 1]} : vector<6x10xbf16> to vector<6x8xbf16>
    %cst_222 = arith.constant dense<0.000000e+00> : vector<2x8xf32>
    %373 = tpu.matmul %27, %372, %cst_222 {dimension_numbers = #tpu.dot_dimension_numbers<[1], [0], [0], [1], [0, 0, 1, 1], [], []>} : vector<2x6xbf16>, vector<6x8xbf16>, vector<2x8xf32> -> vector<2x8xf32>
    %374 = arith.addf %371, %373 : vector<2x8xf32>
    %375 = arith.maximumf %364, %374 : vector<2x8xf32>
    %376 = vector.broadcast %35 : vector<2x1xf32> to vector<2x8xf32>
    %377 = arith.addf %375, %376 : vector<2x8xf32>
    %cst_223 = arith.constant 0.000000e+00 : f32
    %378 = vector.broadcast %cst_223 : f32 to vector<2x8xf32>
    %379 = arith.maximumf %377, %378 : vector<2x8xf32>
    %c8_224 = arith.constant 8 : index
    %c1_225 = arith.constant 1 : index
    %380 = vector.load %arg12[%c8_224, %c1_225] : memref<20x10xf32, #tpu.memory_space<vmem>>, vector<2x8xf32>
    tpu.vector_store %arg12[%c8_224, %c1_225], %379 {strides = array<i32>} : memref<20x10xf32, #tpu.memory_space<vmem>>, vector<2x8xf32>,
    %c16_226 = arith.constant 16 : index
    %c0_227 = arith.constant 0 : index
    %381 = vector.load %arg11[%c16_226, %c0_227] : memref<36x10xf32, #tpu.memory_space<vmem>>, vector<6x10xf32>
    %382 = arith.truncf %381 : vector<6x10xf32> to vector<6x10xbf16>
    %383 = vector.extract_strided_slice %382 {offsets = [0, 0], sizes = [6, 8], strides = [1, 1]} : vector<6x10xbf16> to vector<6x8xbf16>
    %cst_228 = arith.constant dense<0.000000e+00> : vector<2x8xf32>
    %384 = tpu.matmul %23, %383, %cst_228 {dimension_numbers = #tpu.dot_dimension_numbers<[1], [0], [0], [1], [0, 0, 1, 1], [], []>} : vector<2x6xbf16>, vector<6x8xbf16>, vector<2x8xf32> -> vector<2x8xf32>
    %385 = vector.extract_strided_slice %382 {offsets = [0, 1], sizes = [6, 8], strides = [1, 1]} : vector<6x10xbf16> to vector<6x8xbf16>
    %cst_229 = arith.constant dense<0.000000e+00> : vector<2x8xf32>
    %386 = tpu.matmul %25, %385, %cst_229 {dimension_numbers = #tpu.dot_dimension_numbers<[1], [0], [0], [1], [0, 0, 1, 1], [], []>} : vector<2x6xbf16>, vector<6x8xbf16>, vector<2x8xf32> -> vector<2x8xf32>
    %387 = arith.addf %384, %386 : vector<2x8xf32>
    %388 = vector.extract_strided_slice %382 {offsets = [0, 2], sizes = [6, 8], strides = [1, 1]} : vector<6x10xbf16> to vector<6x8xbf16>
    %cst_230 = arith.constant dense<0.000000e+00> : vector<2x8xf32>
    %389 = tpu.matmul %27, %388, %cst_230 {dimension_numbers = #tpu.dot_dimension_numbers<[1], [0], [0], [1], [0, 0, 1, 1], [], []>} : vector<2x6xbf16>, vector<6x8xbf16>, vector<2x8xf32> -> vector<2x8xf32>
    %390 = arith.addf %387, %389 : vector<2x8xf32>
    %c18_231 = arith.constant 18 : index
    %c0_232 = arith.constant 0 : index
    %391 = vector.load %arg11[%c18_231, %c0_232] : memref<36x10xf32, #tpu.memory_space<vmem>>, vector<6x10xf32>
    %392 = arith.truncf %391 : vector<6x10xf32> to vector<6x10xbf16>
    %393 = vector.extract_strided_slice %392 {offsets = [0, 0], sizes = [6, 8], strides = [1, 1]} : vector<6x10xbf16> to vector<6x8xbf16>
    %cst_233 = arith.constant dense<0.000000e+00> : vector<2x8xf32>
    %394 = tpu.matmul %23, %393, %cst_233 {dimension_numbers = #tpu.dot_dimension_numbers<[1], [0], [0], [1], [0, 0, 1, 1], [], []>} : vector<2x6xbf16>, vector<6x8xbf16>, vector<2x8xf32> -> vector<2x8xf32>
    %395 = vector.extract_strided_slice %392 {offsets = [0, 1], sizes = [6, 8], strides = [1, 1]} : vector<6x10xbf16> to vector<6x8xbf16>
    %cst_234 = arith.constant dense<0.000000e+00> : vector<2x8xf32>
    %396 = tpu.matmul %25, %395, %cst_234 {dimension_numbers = #tpu.dot_dimension_numbers<[1], [0], [0], [1], [0, 0, 1, 1], [], []>} : vector<2x6xbf16>, vector<6x8xbf16>, vector<2x8xf32> -> vector<2x8xf32>
    %397 = arith.addf %394, %396 : vector<2x8xf32>
    %398 = vector.extract_strided_slice %392 {offsets = [0, 2], sizes = [6, 8], strides = [1, 1]} : vector<6x10xbf16> to vector<6x8xbf16>
    %cst_235 = arith.constant dense<0.000000e+00> : vector<2x8xf32>
    %399 = tpu.matmul %27, %398, %cst_235 {dimension_numbers = #tpu.dot_dimension_numbers<[1], [0], [0], [1], [0, 0, 1, 1], [], []>} : vector<2x6xbf16>, vector<6x8xbf16>, vector<2x8xf32> -> vector<2x8xf32>
    %400 = arith.addf %397, %399 : vector<2x8xf32>
    %401 = arith.maximumf %390, %400 : vector<2x8xf32>
    %402 = vector.broadcast %35 : vector<2x1xf32> to vector<2x8xf32>
    %403 = arith.addf %401, %402 : vector<2x8xf32>
    %cst_236 = arith.constant 0.000000e+00 : f32
    %404 = vector.broadcast %cst_236 : f32 to vector<2x8xf32>
    %405 = arith.maximumf %403, %404 : vector<2x8xf32>
    %c10_237 = arith.constant 10 : index
    %c1_238 = arith.constant 1 : index
    %406 = vector.load %arg12[%c10_237, %c1_238] : memref<20x10xf32, #tpu.memory_space<vmem>>, vector<2x8xf32>
    tpu.vector_store %arg12[%c10_237, %c1_238], %405 {strides = array<i32>} : memref<20x10xf32, #tpu.memory_space<vmem>>, vector<2x8xf32>,
    %c20_239 = arith.constant 20 : index
    %c0_240 = arith.constant 0 : index
    %407 = vector.load %arg11[%c20_239, %c0_240] : memref<36x10xf32, #tpu.memory_space<vmem>>, vector<6x10xf32>
    %408 = arith.truncf %407 : vector<6x10xf32> to vector<6x10xbf16>
    %409 = vector.extract_strided_slice %408 {offsets = [0, 0], sizes = [6, 8], strides = [1, 1]} : vector<6x10xbf16> to vector<6x8xbf16>
    %cst_241 = arith.constant dense<0.000000e+00> : vector<2x8xf32>
    %410 = tpu.matmul %23, %409, %cst_241 {dimension_numbers = #tpu.dot_dimension_numbers<[1], [0], [0], [1], [0, 0, 1, 1], [], []>} : vector<2x6xbf16>, vector<6x8xbf16>, vector<2x8xf32> -> vector<2x8xf32>
    %411 = vector.extract_strided_slice %408 {offsets = [0, 1], sizes = [6, 8], strides = [1, 1]} : vector<6x10xbf16> to vector<6x8xbf16>
    %cst_242 = arith.constant dense<0.000000e+00> : vector<2x8xf32>
    %412 = tpu.matmul %25, %411, %cst_242 {dimension_numbers = #tpu.dot_dimension_numbers<[1], [0], [0], [1], [0, 0, 1, 1], [], []>} : vector<2x6xbf16>, vector<6x8xbf16>, vector<2x8xf32> -> vector<2x8xf32>
    %413 = arith.addf %410, %412 : vector<2x8xf32>
    %414 = vector.extract_strided_slice %408 {offsets = [0, 2], sizes = [6, 8], strides = [1, 1]} : vector<6x10xbf16> to vector<6x8xbf16>
    %cst_243 = arith.constant dense<0.000000e+00> : vector<2x8xf32>
    %415 = tpu.matmul %27, %414, %cst_243 {dimension_numbers = #tpu.dot_dimension_numbers<[1], [0], [0], [1], [0, 0, 1, 1], [], []>} : vector<2x6xbf16>, vector<6x8xbf16>, vector<2x8xf32> -> vector<2x8xf32>
    %416 = arith.addf %413, %415 : vector<2x8xf32>
    %c22_244 = arith.constant 22 : index
    %c0_245 = arith.constant 0 : index
    %417 = vector.load %arg11[%c22_244, %c0_245] : memref<36x10xf32, #tpu.memory_space<vmem>>, vector<6x10xf32>
    %418 = arith.truncf %417 : vector<6x10xf32> to vector<6x10xbf16>
    %419 = vector.extract_strided_slice %418 {offsets = [0, 0], sizes = [6, 8], strides = [1, 1]} : vector<6x10xbf16> to vector<6x8xbf16>
    %cst_246 = arith.constant dense<0.000000e+00> : vector<2x8xf32>
    %420 = tpu.matmul %23, %419, %cst_246 {dimension_numbers = #tpu.dot_dimension_numbers<[1], [0], [0], [1], [0, 0, 1, 1], [], []>} : vector<2x6xbf16>, vector<6x8xbf16>, vector<2x8xf32> -> vector<2x8xf32>
    %421 = vector.extract_strided_slice %418 {offsets = [0, 1], sizes = [6, 8], strides = [1, 1]} : vector<6x10xbf16> to vector<6x8xbf16>
    %cst_247 = arith.constant dense<0.000000e+00> : vector<2x8xf32>
    %422 = tpu.matmul %25, %421, %cst_247 {dimension_numbers = #tpu.dot_dimension_numbers<[1], [0], [0], [1], [0, 0, 1, 1], [], []>} : vector<2x6xbf16>, vector<6x8xbf16>, vector<2x8xf32> -> vector<2x8xf32>
    %423 = arith.addf %420, %422 : vector<2x8xf32>
    %424 = vector.extract_strided_slice %418 {offsets = [0, 2], sizes = [6, 8], strides = [1, 1]} : vector<6x10xbf16> to vector<6x8xbf16>
    %cst_248 = arith.constant dense<0.000000e+00> : vector<2x8xf32>
    %425 = tpu.matmul %27, %424, %cst_248 {dimension_numbers = #tpu.dot_dimension_numbers<[1], [0], [0], [1], [0, 0, 1, 1], [], []>} : vector<2x6xbf16>, vector<6x8xbf16>, vector<2x8xf32> -> vector<2x8xf32>
    %426 = arith.addf %423, %425 : vector<2x8xf32>
    %427 = arith.maximumf %416, %426 : vector<2x8xf32>
    %428 = vector.broadcast %35 : vector<2x1xf32> to vector<2x8xf32>
    %429 = arith.addf %427, %428 : vector<2x8xf32>
    %cst_249 = arith.constant 0.000000e+00 : f32
    %430 = vector.broadcast %cst_249 : f32 to vector<2x8xf32>
    %431 = arith.maximumf %429, %430 : vector<2x8xf32>
    %c12_250 = arith.constant 12 : index
    %c1_251 = arith.constant 1 : index
    %432 = vector.load %arg12[%c12_250, %c1_251] : memref<20x10xf32, #tpu.memory_space<vmem>>, vector<2x8xf32>
    tpu.vector_store %arg12[%c12_250, %c1_251], %431 {strides = array<i32>} : memref<20x10xf32, #tpu.memory_space<vmem>>, vector<2x8xf32>,
    %c24_252 = arith.constant 24 : index
    %c0_253 = arith.constant 0 : index
    %433 = vector.load %arg11[%c24_252, %c0_253] : memref<36x10xf32, #tpu.memory_space<vmem>>, vector<6x10xf32>
    %434 = arith.truncf %433 : vector<6x10xf32> to vector<6x10xbf16>
    %435 = vector.extract_strided_slice %434 {offsets = [0, 0], sizes = [6, 8], strides = [1, 1]} : vector<6x10xbf16> to vector<6x8xbf16>
    %cst_254 = arith.constant dense<0.000000e+00> : vector<2x8xf32>
    %436 = tpu.matmul %23, %435, %cst_254 {dimension_numbers = #tpu.dot_dimension_numbers<[1], [0], [0], [1], [0, 0, 1, 1], [], []>} : vector<2x6xbf16>, vector<6x8xbf16>, vector<2x8xf32> -> vector<2x8xf32>
    %437 = vector.extract_strided_slice %434 {offsets = [0, 1], sizes = [6, 8], strides = [1, 1]} : vector<6x10xbf16> to vector<6x8xbf16>
    %cst_255 = arith.constant dense<0.000000e+00> : vector<2x8xf32>
    %438 = tpu.matmul %25, %437, %cst_255 {dimension_numbers = #tpu.dot_dimension_numbers<[1], [0], [0], [1], [0, 0, 1, 1], [], []>} : vector<2x6xbf16>, vector<6x8xbf16>, vector<2x8xf32> -> vector<2x8xf32>
    %439 = arith.addf %436, %438 : vector<2x8xf32>
    %440 = vector.extract_strided_slice %434 {offsets = [0, 2], sizes = [6, 8], strides = [1, 1]} : vector<6x10xbf16> to vector<6x8xbf16>
    %cst_256 = arith.constant dense<0.000000e+00> : vector<2x8xf32>
    %441 = tpu.matmul %27, %440, %cst_256 {dimension_numbers = #tpu.dot_dimension_numbers<[1], [0], [0], [1], [0, 0, 1, 1], [], []>} : vector<2x6xbf16>, vector<6x8xbf16>, vector<2x8xf32> -> vector<2x8xf32>
    %442 = arith.addf %439, %441 : vector<2x8xf32>
    %c26_257 = arith.constant 26 : index
    %c0_258 = arith.constant 0 : index
    %443 = vector.load %arg11[%c26_257, %c0_258] : memref<36x10xf32, #tpu.memory_space<vmem>>, vector<6x10xf32>
    %444 = arith.truncf %443 : vector<6x10xf32> to vector<6x10xbf16>
    %445 = vector.extract_strided_slice %444 {offsets = [0, 0], sizes = [6, 8], strides = [1, 1]} : vector<6x10xbf16> to vector<6x8xbf16>
    %cst_259 = arith.constant dense<0.000000e+00> : vector<2x8xf32>
    %446 = tpu.matmul %23, %445, %cst_259 {dimension_numbers = #tpu.dot_dimension_numbers<[1], [0], [0], [1], [0, 0, 1, 1], [], []>} : vector<2x6xbf16>, vector<6x8xbf16>, vector<2x8xf32> -> vector<2x8xf32>
    %447 = vector.extract_strided_slice %444 {offsets = [0, 1], sizes = [6, 8], strides = [1, 1]} : vector<6x10xbf16> to vector<6x8xbf16>
    %cst_260 = arith.constant dense<0.000000e+00> : vector<2x8xf32>
    %448 = tpu.matmul %25, %447, %cst_260 {dimension_numbers = #tpu.dot_dimension_numbers<[1], [0], [0], [1], [0, 0, 1, 1], [], []>} : vector<2x6xbf16>, vector<6x8xbf16>, vector<2x8xf32> -> vector<2x8xf32>
    %449 = arith.addf %446, %448 : vector<2x8xf32>
    %450 = vector.extract_strided_slice %444 {offsets = [0, 2], sizes = [6, 8], strides = [1, 1]} : vector<6x10xbf16> to vector<6x8xbf16>
    %cst_261 = arith.constant dense<0.000000e+00> : vector<2x8xf32>
    %451 = tpu.matmul %27, %450, %cst_261 {dimension_numbers = #tpu.dot_dimension_numbers<[1], [0], [0], [1], [0, 0, 1, 1], [], []>} : vector<2x6xbf16>, vector<6x8xbf16>, vector<2x8xf32> -> vector<2x8xf32>
    %452 = arith.addf %449, %451 : vector<2x8xf32>
    %453 = arith.maximumf %442, %452 : vector<2x8xf32>
    %454 = vector.broadcast %35 : vector<2x1xf32> to vector<2x8xf32>
    %455 = arith.addf %453, %454 : vector<2x8xf32>
    %cst_262 = arith.constant 0.000000e+00 : f32
    %456 = vector.broadcast %cst_262 : f32 to vector<2x8xf32>
    %457 = arith.maximumf %455, %456 : vector<2x8xf32>
    %c14_263 = arith.constant 14 : index
    %c1_264 = arith.constant 1 : index
    %458 = vector.load %arg12[%c14_263, %c1_264] : memref<20x10xf32, #tpu.memory_space<vmem>>, vector<2x8xf32>
    tpu.vector_store %arg12[%c14_263, %c1_264], %457 {strides = array<i32>} : memref<20x10xf32, #tpu.memory_space<vmem>>, vector<2x8xf32>,
    %c28_265 = arith.constant 28 : index
    %c0_266 = arith.constant 0 : index
    %459 = vector.load %arg11[%c28_265, %c0_266] : memref<36x10xf32, #tpu.memory_space<vmem>>, vector<6x10xf32>
    %460 = arith.truncf %459 : vector<6x10xf32> to vector<6x10xbf16>
    %461 = vector.extract_strided_slice %460 {offsets = [0, 0], sizes = [6, 8], strides = [1, 1]} : vector<6x10xbf16> to vector<6x8xbf16>
    %cst_267 = arith.constant dense<0.000000e+00> : vector<2x8xf32>
    %462 = tpu.matmul %23, %461, %cst_267 {dimension_numbers = #tpu.dot_dimension_numbers<[1], [0], [0], [1], [0, 0, 1, 1], [], []>} : vector<2x6xbf16>, vector<6x8xbf16>, vector<2x8xf32> -> vector<2x8xf32>
    %463 = vector.extract_strided_slice %460 {offsets = [0, 1], sizes = [6, 8], strides = [1, 1]} : vector<6x10xbf16> to vector<6x8xbf16>
    %cst_268 = arith.constant dense<0.000000e+00> : vector<2x8xf32>
    %464 = tpu.matmul %25, %463, %cst_268 {dimension_numbers = #tpu.dot_dimension_numbers<[1], [0], [0], [1], [0, 0, 1, 1], [], []>} : vector<2x6xbf16>, vector<6x8xbf16>, vector<2x8xf32> -> vector<2x8xf32>
    %465 = arith.addf %462, %464 : vector<2x8xf32>
    %466 = vector.extract_strided_slice %460 {offsets = [0, 2], sizes = [6, 8], strides = [1, 1]} : vector<6x10xbf16> to vector<6x8xbf16>
    %cst_269 = arith.constant dense<0.000000e+00> : vector<2x8xf32>
    %467 = tpu.matmul %27, %466, %cst_269 {dimension_numbers = #tpu.dot_dimension_numbers<[1], [0], [0], [1], [0, 0, 1, 1], [], []>} : vector<2x6xbf16>, vector<6x8xbf16>, vector<2x8xf32> -> vector<2x8xf32>
    %468 = arith.addf %465, %467 : vector<2x8xf32>
    %c30_270 = arith.constant 30 : index
    %c0_271 = arith.constant 0 : index
    %469 = vector.load %arg11[%c30_270, %c0_271] : memref<36x10xf32, #tpu.memory_space<vmem>>, vector<6x10xf32>
    %470 = arith.truncf %469 : vector<6x10xf32> to vector<6x10xbf16>
    %471 = vector.extract_strided_slice %470 {offsets = [0, 0], sizes = [6, 8], strides = [1, 1]} : vector<6x10xbf16> to vector<6x8xbf16>
    %cst_272 = arith.constant dense<0.000000e+00> : vector<2x8xf32>
    %472 = tpu.matmul %23, %471, %cst_272 {dimension_numbers = #tpu.dot_dimension_numbers<[1], [0], [0], [1], [0, 0, 1, 1], [], []>} : vector<2x6xbf16>, vector<6x8xbf16>, vector<2x8xf32> -> vector<2x8xf32>
    %473 = vector.extract_strided_slice %470 {offsets = [0, 1], sizes = [6, 8], strides = [1, 1]} : vector<6x10xbf16> to vector<6x8xbf16>
    %cst_273 = arith.constant dense<0.000000e+00> : vector<2x8xf32>
    %474 = tpu.matmul %25, %473, %cst_273 {dimension_numbers = #tpu.dot_dimension_numbers<[1], [0], [0], [1], [0, 0, 1, 1], [], []>} : vector<2x6xbf16>, vector<6x8xbf16>, vector<2x8xf32> -> vector<2x8xf32>
    %475 = arith.addf %472, %474 : vector<2x8xf32>
    %476 = vector.extract_strided_slice %470 {offsets = [0, 2], sizes = [6, 8], strides = [1, 1]} : vector<6x10xbf16> to vector<6x8xbf16>
    %cst_274 = arith.constant dense<0.000000e+00> : vector<2x8xf32>
    %477 = tpu.matmul %27, %476, %cst_274 {dimension_numbers = #tpu.dot_dimension_numbers<[1], [0], [0], [1], [0, 0, 1, 1], [], []>} : vector<2x6xbf16>, vector<6x8xbf16>, vector<2x8xf32> -> vector<2x8xf32>
    %478 = arith.addf %475, %477 : vector<2x8xf32>
    %479 = arith.maximumf %468, %478 : vector<2x8xf32>
    %480 = vector.broadcast %35 : vector<2x1xf32> to vector<2x8xf32>
    %481 = arith.addf %479, %480 : vector<2x8xf32>
    %cst_275 = arith.constant 0.000000e+00 : f32
    %482 = vector.broadcast %cst_275 : f32 to vector<2x8xf32>
    %483 = arith.maximumf %481, %482 : vector<2x8xf32>
    %c16_276 = arith.constant 16 : index
    %c1_277 = arith.constant 1 : index
    %484 = vector.load %arg12[%c16_276, %c1_277] : memref<20x10xf32, #tpu.memory_space<vmem>>, vector<2x8xf32>
    tpu.vector_store %arg12[%c16_276, %c1_277], %483 {strides = array<i32>} : memref<20x10xf32, #tpu.memory_space<vmem>>, vector<2x8xf32>,
    %c0_278 = arith.constant 0 : index
    %c0_279 = arith.constant 0 : index
    %485 = vector.load %arg12[%c0_278, %c0_279] : memref<20x10xf32, #tpu.memory_space<vmem>>, vector<6x10xf32>
    %486 = arith.truncf %485 : vector<6x10xf32> to vector<6x10xbf16>
    %487 = vector.extract_strided_slice %486 {offsets = [0, 0], sizes = [6, 8], strides = [1, 1]} : vector<6x10xbf16> to vector<6x8xbf16>
    %cst_280 = arith.constant dense<0.000000e+00> : vector<4x8xf32>
    %488 = tpu.matmul %29, %487, %cst_280 {dimension_numbers = #tpu.dot_dimension_numbers<[1], [0], [0], [1], [0, 0, 1, 1], [], []>} : vector<4x6xbf16>, vector<6x8xbf16>, vector<4x8xf32> -> vector<4x8xf32>
    %489 = vector.extract_strided_slice %486 {offsets = [0, 1], sizes = [6, 8], strides = [1, 1]} : vector<6x10xbf16> to vector<6x8xbf16>
    %cst_281 = arith.constant dense<0.000000e+00> : vector<4x8xf32>
    %490 = tpu.matmul %31, %489, %cst_281 {dimension_numbers = #tpu.dot_dimension_numbers<[1], [0], [0], [1], [0, 0, 1, 1], [], []>} : vector<4x6xbf16>, vector<6x8xbf16>, vector<4x8xf32> -> vector<4x8xf32>
    %491 = arith.addf %488, %490 : vector<4x8xf32>
    %492 = vector.extract_strided_slice %486 {offsets = [0, 2], sizes = [6, 8], strides = [1, 1]} : vector<6x10xbf16> to vector<6x8xbf16>
    %cst_282 = arith.constant dense<0.000000e+00> : vector<4x8xf32>
    %493 = tpu.matmul %33, %492, %cst_282 {dimension_numbers = #tpu.dot_dimension_numbers<[1], [0], [0], [1], [0, 0, 1, 1], [], []>} : vector<4x6xbf16>, vector<6x8xbf16>, vector<4x8xf32> -> vector<4x8xf32>
    %494 = arith.addf %491, %493 : vector<4x8xf32>
    %c2_283 = arith.constant 2 : index
    %c0_284 = arith.constant 0 : index
    %495 = vector.load %arg12[%c2_283, %c0_284] : memref<20x10xf32, #tpu.memory_space<vmem>>, vector<6x10xf32>
    %496 = arith.truncf %495 : vector<6x10xf32> to vector<6x10xbf16>
    %497 = vector.extract_strided_slice %496 {offsets = [0, 0], sizes = [6, 8], strides = [1, 1]} : vector<6x10xbf16> to vector<6x8xbf16>
    %cst_285 = arith.constant dense<0.000000e+00> : vector<4x8xf32>
    %498 = tpu.matmul %29, %497, %cst_285 {dimension_numbers = #tpu.dot_dimension_numbers<[1], [0], [0], [1], [0, 0, 1, 1], [], []>} : vector<4x6xbf16>, vector<6x8xbf16>, vector<4x8xf32> -> vector<4x8xf32>
    %499 = vector.extract_strided_slice %496 {offsets = [0, 1], sizes = [6, 8], strides = [1, 1]} : vector<6x10xbf16> to vector<6x8xbf16>
    %cst_286 = arith.constant dense<0.000000e+00> : vector<4x8xf32>
    %500 = tpu.matmul %31, %499, %cst_286 {dimension_numbers = #tpu.dot_dimension_numbers<[1], [0], [0], [1], [0, 0, 1, 1], [], []>} : vector<4x6xbf16>, vector<6x8xbf16>, vector<4x8xf32> -> vector<4x8xf32>
    %501 = arith.addf %498, %500 : vector<4x8xf32>
    %502 = vector.extract_strided_slice %496 {offsets = [0, 2], sizes = [6, 8], strides = [1, 1]} : vector<6x10xbf16> to vector<6x8xbf16>
    %cst_287 = arith.constant dense<0.000000e+00> : vector<4x8xf32>
    %503 = tpu.matmul %33, %502, %cst_287 {dimension_numbers = #tpu.dot_dimension_numbers<[1], [0], [0], [1], [0, 0, 1, 1], [], []>} : vector<4x6xbf16>, vector<6x8xbf16>, vector<4x8xf32> -> vector<4x8xf32>
    %504 = arith.addf %501, %503 : vector<4x8xf32>
    %505 = arith.maximumf %494, %504 : vector<4x8xf32>
    %506 = vector.broadcast %36 : vector<4x1xf32> to vector<4x8xf32>
    %507 = arith.addf %505, %506 : vector<4x8xf32>
    %cst_288 = arith.constant 0.000000e+00 : f32
    %508 = vector.broadcast %cst_288 : f32 to vector<4x8xf32>
    %509 = arith.maximumf %507, %508 : vector<4x8xf32>
    %c0_289 = arith.constant 0 : index
    %c0_290 = arith.constant 0 : index
    %510 = vector.load %arg13[%c0_289, %c0_290] : memref<16x8xf32, #tpu.memory_space<vmem>>, vector<4x8xf32>
    tpu.vector_store %arg13[%c0_289, %c0_290], %509 {strides = array<i32>} : memref<16x8xf32, #tpu.memory_space<vmem>>, vector<4x8xf32>,
    %c4_291 = arith.constant 4 : index
    %c0_292 = arith.constant 0 : index
    %511 = vector.load %arg12[%c4_291, %c0_292] : memref<20x10xf32, #tpu.memory_space<vmem>>, vector<6x10xf32>
    %512 = arith.truncf %511 : vector<6x10xf32> to vector<6x10xbf16>
    %513 = vector.extract_strided_slice %512 {offsets = [0, 0], sizes = [6, 8], strides = [1, 1]} : vector<6x10xbf16> to vector<6x8xbf16>
    %cst_293 = arith.constant dense<0.000000e+00> : vector<4x8xf32>
    %514 = tpu.matmul %29, %513, %cst_293 {dimension_numbers = #tpu.dot_dimension_numbers<[1], [0], [0], [1], [0, 0, 1, 1], [], []>} : vector<4x6xbf16>, vector<6x8xbf16>, vector<4x8xf32> -> vector<4x8xf32>
    %515 = vector.extract_strided_slice %512 {offsets = [0, 1], sizes = [6, 8], strides = [1, 1]} : vector<6x10xbf16> to vector<6x8xbf16>
    %cst_294 = arith.constant dense<0.000000e+00> : vector<4x8xf32>
    %516 = tpu.matmul %31, %515, %cst_294 {dimension_numbers = #tpu.dot_dimension_numbers<[1], [0], [0], [1], [0, 0, 1, 1], [], []>} : vector<4x6xbf16>, vector<6x8xbf16>, vector<4x8xf32> -> vector<4x8xf32>
    %517 = arith.addf %514, %516 : vector<4x8xf32>
    %518 = vector.extract_strided_slice %512 {offsets = [0, 2], sizes = [6, 8], strides = [1, 1]} : vector<6x10xbf16> to vector<6x8xbf16>
    %cst_295 = arith.constant dense<0.000000e+00> : vector<4x8xf32>
    %519 = tpu.matmul %33, %518, %cst_295 {dimension_numbers = #tpu.dot_dimension_numbers<[1], [0], [0], [1], [0, 0, 1, 1], [], []>} : vector<4x6xbf16>, vector<6x8xbf16>, vector<4x8xf32> -> vector<4x8xf32>
    %520 = arith.addf %517, %519 : vector<4x8xf32>
    %c6_296 = arith.constant 6 : index
    %c0_297 = arith.constant 0 : index
    %521 = vector.load %arg12[%c6_296, %c0_297] : memref<20x10xf32, #tpu.memory_space<vmem>>, vector<6x10xf32>
    %522 = arith.truncf %521 : vector<6x10xf32> to vector<6x10xbf16>
    %523 = vector.extract_strided_slice %522 {offsets = [0, 0], sizes = [6, 8], strides = [1, 1]} : vector<6x10xbf16> to vector<6x8xbf16>
    %cst_298 = arith.constant dense<0.000000e+00> : vector<4x8xf32>
    %524 = tpu.matmul %29, %523, %cst_298 {dimension_numbers = #tpu.dot_dimension_numbers<[1], [0], [0], [1], [0, 0, 1, 1], [], []>} : vector<4x6xbf16>, vector<6x8xbf16>, vector<4x8xf32> -> vector<4x8xf32>
    %525 = vector.extract_strided_slice %522 {offsets = [0, 1], sizes = [6, 8], strides = [1, 1]} : vector<6x10xbf16> to vector<6x8xbf16>
    %cst_299 = arith.constant dense<0.000000e+00> : vector<4x8xf32>
    %526 = tpu.matmul %31, %525, %cst_299 {dimension_numbers = #tpu.dot_dimension_numbers<[1], [0], [0], [1], [0, 0, 1, 1], [], []>} : vector<4x6xbf16>, vector<6x8xbf16>, vector<4x8xf32> -> vector<4x8xf32>
    %527 = arith.addf %524, %526 : vector<4x8xf32>
    %528 = vector.extract_strided_slice %522 {offsets = [0, 2], sizes = [6, 8], strides = [1, 1]} : vector<6x10xbf16> to vector<6x8xbf16>
    %cst_300 = arith.constant dense<0.000000e+00> : vector<4x8xf32>
    %529 = tpu.matmul %33, %528, %cst_300 {dimension_numbers = #tpu.dot_dimension_numbers<[1], [0], [0], [1], [0, 0, 1, 1], [], []>} : vector<4x6xbf16>, vector<6x8xbf16>, vector<4x8xf32> -> vector<4x8xf32>
    %530 = arith.addf %527, %529 : vector<4x8xf32>
    %531 = arith.maximumf %520, %530 : vector<4x8xf32>
    %532 = vector.broadcast %36 : vector<4x1xf32> to vector<4x8xf32>
    %533 = arith.addf %531, %532 : vector<4x8xf32>
    %cst_301 = arith.constant 0.000000e+00 : f32
    %534 = vector.broadcast %cst_301 : f32 to vector<4x8xf32>
    %535 = arith.maximumf %533, %534 : vector<4x8xf32>
    %c4_302 = arith.constant 4 : index
    %c0_303 = arith.constant 0 : index
    %536 = vector.load %arg13[%c4_302, %c0_303] : memref<16x8xf32, #tpu.memory_space<vmem>>, vector<4x8xf32>
    tpu.vector_store %arg13[%c4_302, %c0_303], %535 {strides = array<i32>} : memref<16x8xf32, #tpu.memory_space<vmem>>, vector<4x8xf32>,
    %c8_304 = arith.constant 8 : index
    %c0_305 = arith.constant 0 : index
    %537 = vector.load %arg12[%c8_304, %c0_305] : memref<20x10xf32, #tpu.memory_space<vmem>>, vector<6x10xf32>
    %538 = arith.truncf %537 : vector<6x10xf32> to vector<6x10xbf16>
    %539 = vector.extract_strided_slice %538 {offsets = [0, 0], sizes = [6, 8], strides = [1, 1]} : vector<6x10xbf16> to vector<6x8xbf16>
    %cst_306 = arith.constant dense<0.000000e+00> : vector<4x8xf32>
    %540 = tpu.matmul %29, %539, %cst_306 {dimension_numbers = #tpu.dot_dimension_numbers<[1], [0], [0], [1], [0, 0, 1, 1], [], []>} : vector<4x6xbf16>, vector<6x8xbf16>, vector<4x8xf32> -> vector<4x8xf32>
    %541 = vector.extract_strided_slice %538 {offsets = [0, 1], sizes = [6, 8], strides = [1, 1]} : vector<6x10xbf16> to vector<6x8xbf16>
    %cst_307 = arith.constant dense<0.000000e+00> : vector<4x8xf32>
    %542 = tpu.matmul %31, %541, %cst_307 {dimension_numbers = #tpu.dot_dimension_numbers<[1], [0], [0], [1], [0, 0, 1, 1], [], []>} : vector<4x6xbf16>, vector<6x8xbf16>, vector<4x8xf32> -> vector<4x8xf32>
    %543 = arith.addf %540, %542 : vector<4x8xf32>
    %544 = vector.extract_strided_slice %538 {offsets = [0, 2], sizes = [6, 8], strides = [1, 1]} : vector<6x10xbf16> to vector<6x8xbf16>
    %cst_308 = arith.constant dense<0.000000e+00> : vector<4x8xf32>
    %545 = tpu.matmul %33, %544, %cst_308 {dimension_numbers = #tpu.dot_dimension_numbers<[1], [0], [0], [1], [0, 0, 1, 1], [], []>} : vector<4x6xbf16>, vector<6x8xbf16>, vector<4x8xf32> -> vector<4x8xf32>
    %546 = arith.addf %543, %545 : vector<4x8xf32>
    %c10_309 = arith.constant 10 : index
    %c0_310 = arith.constant 0 : index
    %547 = vector.load %arg12[%c10_309, %c0_310] : memref<20x10xf32, #tpu.memory_space<vmem>>, vector<6x10xf32>
    %548 = arith.truncf %547 : vector<6x10xf32> to vector<6x10xbf16>
    %549 = vector.extract_strided_slice %548 {offsets = [0, 0], sizes = [6, 8], strides = [1, 1]} : vector<6x10xbf16> to vector<6x8xbf16>
    %cst_311 = arith.constant dense<0.000000e+00> : vector<4x8xf32>
    %550 = tpu.matmul %29, %549, %cst_311 {dimension_numbers = #tpu.dot_dimension_numbers<[1], [0], [0], [1], [0, 0, 1, 1], [], []>} : vector<4x6xbf16>, vector<6x8xbf16>, vector<4x8xf32> -> vector<4x8xf32>
    %551 = vector.extract_strided_slice %548 {offsets = [0, 1], sizes = [6, 8], strides = [1, 1]} : vector<6x10xbf16> to vector<6x8xbf16>
    %cst_312 = arith.constant dense<0.000000e+00> : vector<4x8xf32>
    %552 = tpu.matmul %31, %551, %cst_312 {dimension_numbers = #tpu.dot_dimension_numbers<[1], [0], [0], [1], [0, 0, 1, 1], [], []>} : vector<4x6xbf16>, vector<6x8xbf16>, vector<4x8xf32> -> vector<4x8xf32>
    %553 = arith.addf %550, %552 : vector<4x8xf32>
    %554 = vector.extract_strided_slice %548 {offsets = [0, 2], sizes = [6, 8], strides = [1, 1]} : vector<6x10xbf16> to vector<6x8xbf16>
    %cst_313 = arith.constant dense<0.000000e+00> : vector<4x8xf32>
    %555 = tpu.matmul %33, %554, %cst_313 {dimension_numbers = #tpu.dot_dimension_numbers<[1], [0], [0], [1], [0, 0, 1, 1], [], []>} : vector<4x6xbf16>, vector<6x8xbf16>, vector<4x8xf32> -> vector<4x8xf32>
    %556 = arith.addf %553, %555 : vector<4x8xf32>
    %557 = arith.maximumf %546, %556 : vector<4x8xf32>
    %558 = vector.broadcast %36 : vector<4x1xf32> to vector<4x8xf32>
    %559 = arith.addf %557, %558 : vector<4x8xf32>
    %cst_314 = arith.constant 0.000000e+00 : f32
    %560 = vector.broadcast %cst_314 : f32 to vector<4x8xf32>
    %561 = arith.maximumf %559, %560 : vector<4x8xf32>
    %c8_315 = arith.constant 8 : index
    %c0_316 = arith.constant 0 : index
    %562 = vector.load %arg13[%c8_315, %c0_316] : memref<16x8xf32, #tpu.memory_space<vmem>>, vector<4x8xf32>
    tpu.vector_store %arg13[%c8_315, %c0_316], %561 {strides = array<i32>} : memref<16x8xf32, #tpu.memory_space<vmem>>, vector<4x8xf32>,
    %c12_317 = arith.constant 12 : index
    %c0_318 = arith.constant 0 : index
    %563 = vector.load %arg12[%c12_317, %c0_318] : memref<20x10xf32, #tpu.memory_space<vmem>>, vector<6x10xf32>
    %564 = arith.truncf %563 : vector<6x10xf32> to vector<6x10xbf16>
    %565 = vector.extract_strided_slice %564 {offsets = [0, 0], sizes = [6, 8], strides = [1, 1]} : vector<6x10xbf16> to vector<6x8xbf16>
    %cst_319 = arith.constant dense<0.000000e+00> : vector<4x8xf32>
    %566 = tpu.matmul %29, %565, %cst_319 {dimension_numbers = #tpu.dot_dimension_numbers<[1], [0], [0], [1], [0, 0, 1, 1], [], []>} : vector<4x6xbf16>, vector<6x8xbf16>, vector<4x8xf32> -> vector<4x8xf32>
    %567 = vector.extract_strided_slice %564 {offsets = [0, 1], sizes = [6, 8], strides = [1, 1]} : vector<6x10xbf16> to vector<6x8xbf16>
    %cst_320 = arith.constant dense<0.000000e+00> : vector<4x8xf32>
    %568 = tpu.matmul %31, %567, %cst_320 {dimension_numbers = #tpu.dot_dimension_numbers<[1], [0], [0], [1], [0, 0, 1, 1], [], []>} : vector<4x6xbf16>, vector<6x8xbf16>, vector<4x8xf32> -> vector<4x8xf32>
    %569 = arith.addf %566, %568 : vector<4x8xf32>
    %570 = vector.extract_strided_slice %564 {offsets = [0, 2], sizes = [6, 8], strides = [1, 1]} : vector<6x10xbf16> to vector<6x8xbf16>
    %cst_321 = arith.constant dense<0.000000e+00> : vector<4x8xf32>
    %571 = tpu.matmul %33, %570, %cst_321 {dimension_numbers = #tpu.dot_dimension_numbers<[1], [0], [0], [1], [0, 0, 1, 1], [], []>} : vector<4x6xbf16>, vector<6x8xbf16>, vector<4x8xf32> -> vector<4x8xf32>
    %572 = arith.addf %569, %571 : vector<4x8xf32>
    %c14_322 = arith.constant 14 : index
    %c0_323 = arith.constant 0 : index
    %573 = vector.load %arg12[%c14_322, %c0_323] : memref<20x10xf32, #tpu.memory_space<vmem>>, vector<6x10xf32>
    %574 = arith.truncf %573 : vector<6x10xf32> to vector<6x10xbf16>
    %575 = vector.extract_strided_slice %574 {offsets = [0, 0], sizes = [6, 8], strides = [1, 1]} : vector<6x10xbf16> to vector<6x8xbf16>
    %cst_324 = arith.constant dense<0.000000e+00> : vector<4x8xf32>
    %576 = tpu.matmul %29, %575, %cst_324 {dimension_numbers = #tpu.dot_dimension_numbers<[1], [0], [0], [1], [0, 0, 1, 1], [], []>} : vector<4x6xbf16>, vector<6x8xbf16>, vector<4x8xf32> -> vector<4x8xf32>
    %577 = vector.extract_strided_slice %574 {offsets = [0, 1], sizes = [6, 8], strides = [1, 1]} : vector<6x10xbf16> to vector<6x8xbf16>
    %cst_325 = arith.constant dense<0.000000e+00> : vector<4x8xf32>
    %578 = tpu.matmul %31, %577, %cst_325 {dimension_numbers = #tpu.dot_dimension_numbers<[1], [0], [0], [1], [0, 0, 1, 1], [], []>} : vector<4x6xbf16>, vector<6x8xbf16>, vector<4x8xf32> -> vector<4x8xf32>
    %579 = arith.addf %576, %578 : vector<4x8xf32>
    %580 = vector.extract_strided_slice %574 {offsets = [0, 2], sizes = [6, 8], strides = [1, 1]} : vector<6x10xbf16> to vector<6x8xbf16>
    %cst_326 = arith.constant dense<0.000000e+00> : vector<4x8xf32>
    %581 = tpu.matmul %33, %580, %cst_326 {dimension_numbers = #tpu.dot_dimension_numbers<[1], [0], [0], [1], [0, 0, 1, 1], [], []>} : vector<4x6xbf16>, vector<6x8xbf16>, vector<4x8xf32> -> vector<4x8xf32>
    %582 = arith.addf %579, %581 : vector<4x8xf32>
    %583 = arith.maximumf %572, %582 : vector<4x8xf32>
    %584 = vector.broadcast %36 : vector<4x1xf32> to vector<4x8xf32>
    %585 = arith.addf %583, %584 : vector<4x8xf32>
    %cst_327 = arith.constant 0.000000e+00 : f32
    %586 = vector.broadcast %cst_327 : f32 to vector<4x8xf32>
    %587 = arith.maximumf %585, %586 : vector<4x8xf32>
    %c12_328 = arith.constant 12 : index
    %c0_329 = arith.constant 0 : index
    %588 = vector.load %arg13[%c12_328, %c0_329] : memref<16x8xf32, #tpu.memory_space<vmem>>, vector<4x8xf32>
    tpu.vector_store %arg13[%c12_328, %c0_329], %587 {strides = array<i32>} : memref<16x8xf32, #tpu.memory_space<vmem>>, vector<4x8xf32>,
    %c0_330 = arith.constant 0 : index
    %c0_331 = arith.constant 0 : index
    %589 = vector.load %arg8[%c0_330, %c0_331] : memref<32x16xbf16, #tpu.memory_space<vmem>>, vector<32x16xbf16>
    %c0_332 = arith.constant 0 : index
    %c0_333 = arith.constant 0 : index
    %590 = vector.load %arg13[%c0_332, %c0_333] : memref<16x8xf32, #tpu.memory_space<vmem>>, vector<16x8xf32>
    %591 = arith.truncf %590 : vector<16x8xf32> to vector<16x8xbf16>
    %cst_334 = arith.constant dense<0.000000e+00> : vector<32x8xf32>
    %592 = tpu.matmul %589, %591, %cst_334 {dimension_numbers = #tpu.dot_dimension_numbers<[1], [0], [0], [1], [0, 0, 1, 1], [], []>} : vector<32x16xbf16>, vector<16x8xbf16>, vector<32x8xf32> -> vector<32x8xf32>
    %c0_335 = arith.constant 0 : index
    %c0_336 = arith.constant 0 : index
    %593 = vector.load %arg9[%c0_335, %c0_336] : memref<32x1xf32, #tpu.memory_space<vmem>>, vector<32x1xf32>
    %594 = vector.broadcast %593 : vector<32x1xf32> to vector<32x8xf32>
    %595 = arith.addf %592, %594 : vector<32x8xf32>
    %c0_337 = arith.constant 0 : index
    %c0_338 = arith.constant 0 : index
    %c0_339 = arith.constant 0 : index
    %596 = vector.load %arg10[%c0_337, %c0_338, %c0_339] : memref<1x32x8xf32, #tpu.memory_space<vmem>>, vector<1x32x8xf32>
    %597 = vector.shape_cast %596 : vector<1x32x8xf32> to vector<32x8xf32>
    %598 = vector.shape_cast %595 : vector<32x8xf32> to vector<1x32x8xf32>
    tpu.vector_store %arg10[%c0_337, %c0_338, %c0_339], %598 {strides = array<i32>} : memref<1x32x8xf32, #tpu.memory_space<vmem>>, vector<1x32x8xf32>,
    return
  }
  func.func @transform_0(%arg0: i32) -> (i32, i32, i32) {
    %c0_i32 = arith.constant 0 : i32
    %c0_i32_0 = arith.constant 0 : i32
    %c0_i32_1 = arith.constant 0 : i32
    return %arg0, %c0_i32, %c0_i32_0 : i32, i32, i32
  }
  func.func @transform_1(%arg0: i32) -> (i32, i32, i32) {
    %c0_i32 = arith.constant 0 : i32
    %c0_i32_0 = arith.constant 0 : i32
    %c0_i32_1 = arith.constant 0 : i32
    %c0_i32_2 = arith.constant 0 : i32
    return %c0_i32, %c0_i32_0, %c0_i32_1 : i32, i32, i32
  }
  func.func @transform_2(%arg0: i32) -> (i32, i32) {
    %c0_i32 = arith.constant 0 : i32
    %c0_i32_0 = arith.constant 0 : i32
    %c0_i32_1 = arith.constant 0 : i32
    return %c0_i32, %c0_i32_0 : i32, i32
  }
  func.func @transform_3(%arg0: i32) -> (i32, i32, i32) {
    %c0_i32 = arith.constant 0 : i32
    %c0_i32_0 = arith.constant 0 : i32
    %c0_i32_1 = arith.constant 0 : i32
    %c0_i32_2 = arith.constant 0 : i32
    return %c0_i32, %c0_i32_0, %c0_i32_1 : i32, i32, i32
  }
  func.func @transform_4(%arg0: i32) -> (i32, i32) {
    %c0_i32 = arith.constant 0 : i32
    %c0_i32_0 = arith.constant 0 : i32
    %c0_i32_1 = arith.constant 0 : i32
    return %c0_i32, %c0_i32_0 : i32, i32
  }
  func.func @transform_5(%arg0: i32) -> (i32, i32, i32) {
    %c0_i32 = arith.constant 0 : i32
    %c0_i32_0 = arith.constant 0 : i32
    %c0_i32_1 = arith.constant 0 : i32
    %c0_i32_2 = arith.constant 0 : i32
    return %c0_i32, %c0_i32_0, %c0_i32_1 : i32, i32, i32
  }
  func.func @transform_6(%arg0: i32) -> (i32, i32) {
    %c0_i32 = arith.constant 0 : i32
    %c0_i32_0 = arith.constant 0 : i32
    %c0_i32_1 = arith.constant 0 : i32
    return %c0_i32, %c0_i32_0 : i32, i32
  }
  func.func @transform_7(%arg0: i32) -> (i32, i32) {
    %c0_i32 = arith.constant 0 : i32
    %c0_i32_0 = arith.constant 0 : i32
    %c0_i32_1 = arith.constant 0 : i32
    return %c0_i32, %c0_i32_0 : i32, i32
  }
  func.func @transform_8(%arg0: i32) -> (i32, i32) {
    %c0_i32 = arith.constant 0 : i32
    %c0_i32_0 = arith.constant 0 : i32
    %c0_i32_1 = arith.constant 0 : i32
    return %c0_i32, %c0_i32_0 : i32, i32
  }
  func.func @transform_9(%arg0: i32) -> (i32, i32, i32) {
    %c0_i32 = arith.constant 0 : i32
    %c0_i32_0 = arith.constant 0 : i32
    %c0_i32_1 = arith.constant 0 : i32
    return %arg0, %c0_i32, %c0_i32_0 : i32, i32, i32
  }
}

</mosaic_0001>

<llo_original>
// kernel: convstack_forward.1
$region0: #{convstack_forward.1}
  #allocation0 [shape = 'u32[]', space=smem, size = 0x4, offset = 0x4, fixed_abs, tag = 'smem constant byte address 0x4 - core index']
  #allocation1 [shape = 'u32[72,128]{1,0:T(1,128)}', space=vmem, size = 0x9000, scoped, tag = 'internal scratch']
  #allocation2 [shape = 'f32[36,10]{1,0:T(8,128)}', space=vmem, size = 0x5000, scoped, tag = 'scratch operand']
  #allocation3 [shape = 'f32[20,10]{1,0:T(8,128)}', space=vmem, size = 0x3000, scoped, tag = 'scratch operand']
  #allocation4 [shape = 'f32[16,8]{1,0:T(8,128)}', space=vmem, size = 0x2000, scoped, tag = 'scratch operand']
  %s0 = inlined_call_operand.vmem [shape: f32[2,18,10], index: 0, kind: input, shape index: {}]
  %s1 = inlined_call_operand.vmem [shape: f32[3,2,3], index: 1, kind: input, shape index: {}]
  %s2 = inlined_call_operand.vmem [shape: f32[2,1], index: 2, kind: input, shape index: {}]
  %s3 = inlined_call_operand.vmem [shape: bf16[3,2,6], index: 3, kind: input, shape index: {}]
  %s4 = inlined_call_operand.vmem [shape: f32[2,1], index: 4, kind: input, shape index: {}]
  %s5 = inlined_call_operand.vmem [shape: bf16[3,4,6], index: 5, kind: input, shape index: {}]
  %s6 = inlined_call_operand.vmem [shape: f32[4,1], index: 6, kind: input, shape index: {}]
  %s7 = inlined_call_operand.vmem [shape: bf16[32,16], index: 7, kind: input, shape index: {}]
  %s8 = inlined_call_operand.vmem [shape: f32[32,1], index: 8, kind: input, shape index: {}]
  %s9 = inlined_call_operand.vmem [shape: f32[2,32,8], index: 9, kind: output, shape index: {}]
  %s10 = sld [smem:[#allocation0]]
  $region69: #{convstack_forward.1} parent=0
    _
  %s12 = ssub.s32 1, %s10
  %s13 = scalar_select 0, %s12, %s10
  loop: start=0, step=1, limit=4
  $region2: #{convstack_forward.1} parent=0 // loop_pre_header
    _
  $region3: #{convstack_forward.1} parent=0 // loop_header
    %s15 = sphi 0, %s19
    %p16 = scmp.ge.s32.totalorder %s15, 4
    %s25 = sphi 0, %s27
    %s28 = sphi 0, %s25
    %s29 = sphi 0, %s28
    %s45 = sphi 0, %s29
    %s49 = sphi 0, %s49
    %s51 = sphi 0, %s49
    %s52 = sphi 0, %s51
    %s66 = sphi 0, %s52
    %s70 = sphi 0, %s70
    %s72 = sphi 0, %s70
    %s73 = sphi 0, %s72
    %s87 = sphi 0, %s73
    %s91 = sphi 0, %s91
    %s93 = sphi 0, %s91
    %s94 = sphi 0, %s93
    %s108 = sphi 0, %s94
    %s112 = sphi 0, %s112
    %s114 = sphi 0, %s112
    %s115 = sphi 0, %s114
    %s129 = sphi 0, %s115
    %s133 = sphi 0, %s133
    %s135 = sphi 0, %s133
    %s136 = sphi 0, %s135
    %s150 = sphi 0, %s136
    %s154 = sphi 0, %s154
    %s156 = sphi 0, %s154
    %s157 = sphi 0, %s156
    %s171 = sphi 0, %s157
    %s175 = sphi 0, %s175
    %s177 = sphi 0, %s175
    %s178 = sphi 0, %s177
    %s192 = sphi 0, %s178
    %s196 = sphi 0, %s196
    %s198 = sphi 0, %s196
    %s199 = sphi 0, %s198
    %s213 = sphi 0, %s199
    %s219 = sphi 0, %s221
    %s222 = sphi 0, %s219
    %s223 = sphi 0, %s222
    %s239 = sphi 0, %s223
  $region4: #{convstack_forward.1} parent=0 // loop_header_branch
    %18 = sbr.rel (%p16) target = $region8
  $region5: #{convstack_forward.1} parent=0 // loop_body
    %s20 = ssub.s32 %s15, 1
    %s21 = ssub.s32 %s15, 2
    %s22 = sadd.s32 %s15, 1
    %s23 = ssub.s32 %s15, %s22
    %p24 = scmp.eq.s32.totalorder %s23, 0
    %s26 = sadd.s32 %s25, 1
    %s27 = scalar_select %p24, %s25, %s26
    %p30 = pneg %p24
    %p31 = scmp.eq.s32.totalorder %s15, 1
    %p32 = por %p30, %p31
    %p33 = scmp.ne.s32.totalorder %s25, %s28
    %p34 = scmp.eq.s32.totalorder %s15, 0
    %p35 = por %p33, %p34
    %p36 = scmp.ne.s32.totalorder %s25, %s28
    %p37 = scmp.eq.s32.totalorder %s20, 1
    %p38 = por %p36, %p37
    %p39 = scmp.ne.s32.totalorder %s28, %s29
    %p40 = scmp.eq.s32.totalorder %s20, 0
    %p41 = por %p39, %p40
    %p42 = scmp.ne.s32.totalorder %s28, %s29
    %p43 = scmp.eq.s32.totalorder %s21, 1
    %p44 = por %p42, %p43
    %p46 = scmp.ne.s32.totalorder %s29, %s45
    %p47 = scmp.eq.s32.totalorder %s21, 0
    %p48 = por %p46, %p47
    %s50 = sadd.s32 %s49, 1
    %p53 = scmp.eq.s32.totalorder %s15, 1
    %p54 = scmp.ne.s32.totalorder %s49, %s51
    %p55 = scmp.eq.s32.totalorder %s15, 0
    %p56 = por %p54, %p55
    %p57 = scmp.ne.s32.totalorder %s49, %s51
    %p58 = scmp.eq.s32.totalorder %s20, 1
    %p59 = por %p57, %p58
    %p60 = scmp.ne.s32.totalorder %s51, %s52
    %p61 = scmp.eq.s32.totalorder %s20, 0
    %p62 = por %p60, %p61
    %p63 = scmp.ne.s32.totalorder %s51, %s52
    %p64 = scmp.eq.s32.totalorder %s21, 1
    %p65 = por %p63, %p64
    %p67 = scmp.ne.s32.totalorder %s52, %s66
    %p68 = scmp.eq.s32.totalorder %s21, 0
    %p69 = por %p67, %p68
    %s71 = sadd.s32 %s70, 1
    %p74 = scmp.eq.s32.totalorder %s15, 1
    %p75 = scmp.ne.s32.totalorder %s70, %s72
    %p76 = scmp.eq.s32.totalorder %s15, 0
    %p77 = por %p75, %p76
    %p78 = scmp.ne.s32.totalorder %s70, %s72
    %p79 = scmp.eq.s32.totalorder %s20, 1
    %p80 = por %p78, %p79
    %p81 = scmp.ne.s32.totalorder %s72, %s73
    %p82 = scmp.eq.s32.totalorder %s20, 0
    %p83 = por %p81, %p82
    %p84 = scmp.ne.s32.totalorder %s72, %s73
    %p85 = scmp.eq.s32.totalorder %s21, 1
    %p86 = por %p84, %p85
    %p88 = scmp.ne.s32.totalorder %s73, %s87
    %p89 = scmp.eq.s32.totalorder %s21, 0
    %p90 = por %p88, %p89
    %s92 = sadd.s32 %s91, 1
    %p95 = scmp.eq.s32.totalorder %s15, 1
    %p96 = scmp.ne.s32.totalorder %s91, %s93
    %p97 = scmp.eq.s32.totalorder %s15, 0
    %p98 = por %p96, %p97
    %p99 = scmp.ne.s32.totalorder %s91, %s93
    %p100 = scmp.eq.s32.totalorder %s20, 1
    %p101 = por %p99, %p100
    %p102 = scmp.ne.s32.totalorder %s93, %s94
    %p103 = scmp.eq.s32.totalorder %s20, 0
    %p104 = por %p102, %p103
    %p105 = scmp.ne.s32.totalorder %s93, %s94
    %p106 = scmp.eq.s32.totalorder %s21, 1
    %p107 = por %p105, %p106
    %p109 = scmp.ne.s32.totalorder %s94, %s108
    %p110 = scmp.eq.s32.totalorder %s21, 0
    %p111 = por %p109, %p110
    %s113 = sadd.s32 %s112, 1
    %p116 = scmp.eq.s32.totalorder %s15, 1
    %p117 = scmp.ne.s32.totalorder %s112, %s114
    %p118 = scmp.eq.s32.totalorder %s15, 0
    %p119 = por %p117, %p118
    %p120 = scmp.ne.s32.totalorder %s112, %s114
    %p121 = scmp.eq.s32.totalorder %s20, 1
    %p122 = por %p120, %p121
    %p123 = scmp.ne.s32.totalorder %s114, %s115
    %p124 = scmp.eq.s32.totalorder %s20, 0
    %p125 = por %p123, %p124
    %p126 = scmp.ne.s32.totalorder %s114, %s115
    %p127 = scmp.eq.s32.totalorder %s21, 1
    %p128 = por %p126, %p127
    %p130 = scmp.ne.s32.totalorder %s115, %s129
    %p131 = scmp.eq.s32.totalorder %s21, 0
    %p132 = por %p130, %p131
    %s134 = sadd.s32 %s133, 1
    %p137 = scmp.eq.s32.totalorder %s15, 1
    %p138 = scmp.ne.s32.totalorder %s133, %s135
    %p139 = scmp.eq.s32.totalorder %s15, 0
    %p140 = por %p138, %p139
    %p141 = scmp.ne.s32.totalorder %s133, %s135
    %p142 = scmp.eq.s32.totalorder %s20, 1
    %p143 = por %p141, %p142
    %p144 = scmp.ne.s32.totalorder %s135, %s136
    %p145 = scmp.eq.s32.totalorder %s20, 0
    %p146 = por %p144, %p145
    %p147 = scmp.ne.s32.totalorder %s135, %s136
    %p148 = scmp.eq.s32.totalorder %s21, 1
    %p149 = por %p147, %p148
    %p151 = scmp.ne.s32.totalorder %s136, %s150
    %p152 = scmp.eq.s32.totalorder %s21, 0
    %p153 = por %p151, %p152
    %s155 = sadd.s32 %s154, 1
    %p158 = scmp.eq.s32.totalorder %s15, 1
    %p159 = scmp.ne.s32.totalorder %s154, %s156
    %p160 = scmp.eq.s32.totalorder %s15, 0
    %p161 = por %p159, %p160
    %p162 = scmp.ne.s32.totalorder %s154, %s156
    %p163 = scmp.eq.s32.totalorder %s20, 1
    %p164 = por %p162, %p163
    %p165 = scmp.ne.s32.totalorder %s156, %s157
    %p166 = scmp.eq.s32.totalorder %s20, 0
    %p167 = por %p165, %p166
    %p168 = scmp.ne.s32.totalorder %s156, %s157
    %p169 = scmp.eq.s32.totalorder %s21, 1
    %p170 = por %p168, %p169
    %p172 = scmp.ne.s32.totalorder %s157, %s171
    %p173 = scmp.eq.s32.totalorder %s21, 0
    %p174 = por %p172, %p173
    %s176 = sadd.s32 %s175, 1
    %p179 = scmp.eq.s32.totalorder %s15, 1
    %p180 = scmp.ne.s32.totalorder %s175, %s177
    %p181 = scmp.eq.s32.totalorder %s15, 0
    %p182 = por %p180, %p181
    %p183 = scmp.ne.s32.totalorder %s175, %s177
    %p184 = scmp.eq.s32.totalorder %s20, 1
    %p185 = por %p183, %p184
    %p186 = scmp.ne.s32.totalorder %s177, %s178
    %p187 = scmp.eq.s32.totalorder %s20, 0
    %p188 = por %p186, %p187
    %p189 = scmp.ne.s32.totalorder %s177, %s178
    %p190 = scmp.eq.s32.totalorder %s21, 1
    %p191 = por %p189, %p190
    %p193 = scmp.ne.s32.totalorder %s178, %s192
    %p194 = scmp.eq.s32.totalorder %s21, 0
    %p195 = por %p193, %p194
    %s197 = sadd.s32 %s196, 1
    %p200 = scmp.eq.s32.totalorder %s15, 1
    %p201 = scmp.ne.s32.totalorder %s196, %s198
    %p202 = scmp.eq.s32.totalorder %s15, 0
    %p203 = por %p201, %p202
    %p204 = scmp.ne.s32.totalorder %s196, %s198
    %p205 = scmp.eq.s32.totalorder %s20, 1
    %p206 = por %p204, %p205
    %p207 = scmp.ne.s32.totalorder %s198, %s199
    %p208 = scmp.eq.s32.totalorder %s20, 0
    %p209 = por %p207, %p208
    %p210 = scmp.ne.s32.totalorder %s198, %s199
    %p211 = scmp.eq.s32.totalorder %s21, 1
    %p212 = por %p210, %p211
    %p214 = scmp.ne.s32.totalorder %s199, %s213
    %p215 = scmp.eq.s32.totalorder %s21, 0
    %p216 = por %p214, %p215
    %s217 = ssub.s32 %s15, %s22
    %p218 = scmp.eq.s32.totalorder %s217, 0
    %s220 = sadd.s32 %s219, 1
    %s221 = scalar_select %p218, %s219, %s220
    %p224 = pneg %p218
    %p225 = scmp.eq.s32.totalorder %s15, 1
    %p226 = por %p224, %p225
    %p227 = scmp.ne.s32.totalorder %s219, %s222
    %p228 = scmp.eq.s32.totalorder %s15, 0
    %p229 = por %p227, %p228
    %p230 = scmp.ne.s32.totalorder %s219, %s222
    %p231 = scmp.eq.s32.totalorder %s20, 1
    %p232 = por %p230, %p231
    %p233 = scmp.ne.s32.totalorder %s222, %s223
    %p234 = scmp.eq.s32.totalorder %s20, 0
    %p235 = por %p233, %p234
    %p236 = scmp.ne.s32.totalorder %s222, %s223
    %p237 = scmp.eq.s32.totalorder %s21, 1
    %p238 = por %p236, %p237
    %p240 = scmp.ne.s32.totalorder %s223, %s239
    %p241 = scmp.eq.s32.totalorder %s21, 0
    %p242 = por %p240, %p241
    %p243 = scmp.le.s32.totalorder 1, %s15
    %p244 = scmp.lt.s32.totalorder %s15, 3
    %p245 = pnand %p243, %p244
    %p246 = pneg %p245
    // Predicated region
    $region9: #{convstack_forward.1} parent=5 // pred_check
      _
    $region10: #{convstack_forward.1} parent=5 // pred_check_branch
      %248 = sbr.rel (%p245) target = $region12
    $region11: #{convstack_forward.1} parent=5 // pred_region
      %s249 = ssub.s32 %s15, 1
      // Predicated region
      $region13: #{convstack_forward.1} parent=11 // pred_check
        %p250 = pneg %p62
      $region14: #{convstack_forward.1} parent=11 // pred_check_branch
        %252 = sbr.rel (%p250) target = $region16
      $region15: #{convstack_forward.1} parent=11 // pred_region
        _
      $region16: #{convstack_forward.1} parent=11 // pred_fallthru
        _
      // Predicated region
      $region17: #{convstack_forward.1} parent=11 // pred_check
        %p253 = pneg %p83
      $region18: #{convstack_forward.1} parent=11 // pred_check_branch
        %255 = sbr.rel (%p253) target = $region20
      $region19: #{convstack_forward.1} parent=11 // pred_region
        _
      $region20: #{convstack_forward.1} parent=11 // pred_fallthru
        _
      // Predicated region
      $region21: #{convstack_forward.1} parent=11 // pred_check
        %p256 = pneg %p104
      $region22: #{convstack_forward.1} parent=11 // pred_check_branch
        %258 = sbr.rel (%p256) target = $region24
      $region23: #{convstack_forward.1} parent=11 // pred_region
        _
      $region24: #{convstack_forward.1} parent=11 // pred_fallthru
        _
      // Predicated region
      $region25: #{convstack_forward.1} parent=11 // pred_check
        %p259 = pneg %p125
      $region26: #{convstack_forward.1} parent=11 // pred_check_branch
        %261 = sbr.rel (%p259) target = $region28
      $region27: #{convstack_forward.1} parent=11 // pred_region
        _
      $region28: #{convstack_forward.1} parent=11 // pred_fallthru
        _
      // Predicated region
      $region29: #{convstack_forward.1} parent=11 // pred_check
        %p262 = pneg %p146
      $region30: #{convstack_forward.1} parent=11 // pred_check_branch
        %264 = sbr.rel (%p262) target = $region32
      $region31: #{convstack_forward.1} parent=11 // pred_region
        _
      $region32: #{convstack_forward.1} parent=11 // pred_fallthru
        _
      // Predicated region
      $region33: #{convstack_forward.1} parent=11 // pred_check
        %p265 = pneg %p167
      $region34: #{convstack_forward.1} parent=11 // pred_check_branch
        %267 = sbr.rel (%p265) target = $region36
      $region35: #{convstack_forward.1} parent=11 // pred_region
        _
      $region36: #{convstack_forward.1} parent=11 // pred_fallthru
        _
      // Predicated region
      $region37: #{convstack_forward.1} parent=11 // pred_check
        %p268 = pneg %p188
      $region38: #{convstack_forward.1} parent=11 // pred_check_branch
        %270 = sbr.rel (%p268) target = $region40
      $region39: #{convstack_forward.1} parent=11 // pred_region
        _
      $region40: #{convstack_forward.1} parent=11 // pred_fallthru
        _
      // Predicated region
      $region41: #{convstack_forward.1} parent=11 // pred_check
        %p271 = pneg %p209
      $region42: #{convstack_forward.1} parent=11 // pred_check_branch
        %273 = sbr.rel (%p271) target = $region44
      $region43: #{convstack_forward.1} parent=11 // pred_region
        _
      $region44: #{convstack_forward.1} parent=11 // pred_fallthru
        _
    $region12: #{convstack_forward.1} parent=5 // pred_fallthru
      _
    %p274 = scmp.lt.s32.totalorder %s15, 2
    // Predicated region
    $region45: #{convstack_forward.1} parent=5 // pred_check
      %p275 = pneg %p274
    $region46: #{convstack_forward.1} parent=5 // pred_check_branch
      %277 = sbr.rel (%p275) target = $region48
    $region47: #{convstack_forward.1} parent=5 // pred_region
      // Predicated region
      $region49: #{convstack_forward.1} parent=47 // pred_check
        %p278 = pneg %p35
      $region50: #{convstack_forward.1} parent=47 // pred_check_branch
        %280 = sbr.rel (%p278) target = $region52
      $region51: #{convstack_forward.1} parent=47 // pred_region
        %p281 = scmp.lt.s32.totalorder %s15, 1
        %s282 = scalar_select %p281, %s15, 1
        %s283 = smul.addr %s282, 3
        %s284 = smul.addr %s283, 8
        %s285 = scalar_lea.vmem %s0, %s284
      $region52: #{convstack_forward.1} parent=47 // pred_fallthru
        _
    $region48: #{convstack_forward.1} parent=5 // pred_fallthru
      _
    %p286 = scmp.le.s32.totalorder 1, %s15
    %p287 = scmp.lt.s32.totalorder %s15, 3
    %p288 = pnand %p286, %p287
    %p289 = pneg %p288
    // Predicated region
    $region53: #{convstack_forward.1} parent=5 // pred_check
      _
    $region54: #{convstack_forward.1} parent=5 // pred_check_branch
      %291 = sbr.rel (%p288) target = $region56
    $region55: #{convstack_forward.1} parent=5 // pred_region
      %s292 = ssub.s32 %s15, 1
      %p293 = scmp.lt.s32.totalorder %s20, 1
      %s294 = scalar_select %p293, %s20, 1
      %s295 = smul.addr %s294, 3
      %s296 = smul.addr %s295, 8
      %s297 = scalar_lea.vmem %s0, %s296
      %p298 = pneg %p41
      %p299 = pneg %p38
      %p300 = pneg %p62
      %p301 = pneg %p59
      %p302 = pneg %p83
      %p303 = pneg %p80
      %p304 = pneg %p104
      %p305 = pneg %p101
      %p306 = pneg %p125
      %p307 = pneg %p122
      %p308 = pneg %p146
      %p309 = pneg %p143
      %p310 = pneg %p167
      %p311 = pneg %p164
      %p312 = pneg %p188
      %p313 = pneg %p185
      %p314 = pneg %p209
      %p315 = pneg %p206
      %p316 = pneg %p235
      %p317 = pneg %p232
      %p318 = scmp.lt.s32.totalorder %s20, 1
      %s319 = scalar_select %p318, %s20, 1
      %s320 = smul.addr %s319, 4
      %s321 = smul.addr %s320, 8
      %s322 = scalar_lea.vmem %s9, %s321
      %p323 = scmp.lt.s32.totalorder %s20, 1
      %s324 = scalar_select %p323, %s20, 1
      %s325 = smul.addr %s324, 3
      %s326 = smul.addr %s325, 8
      %s327 = scalar_lea.vmem %s0, %s326
      %p328 = scmp.lt.s32.totalorder %s20, 1
      %s329 = scalar_select %p328, %s20, 1
      %s330 = smul.addr %s329, 4
      %s331 = smul.addr %s330, 8
      %s332 = scalar_lea.vmem %s9, %s331
      %vm334 = vcmask 74752
      %335 = vst.msk [vmem:[#allocation2] sm:$0x3] %vm334, 0.0
      %336 = vst.msk [vmem:[#allocation2 + $0x22] sm:$0x3] %vm334, 0.0
      %vm337 = vcmask 7168
      %338 = vst.msk [vmem:[#allocation2] sm:$0xff] %vm337, 0.0
      %339 = vst.msk [vmem:[#allocation2 + $0x8] sm:$0xff] %vm337, 0.0
      %340 = vst.msk [vmem:[#allocation2 + $0x10] sm:$0xff] %vm337, 0.0
      %341 = vst.msk [vmem:[#allocation2 + $0x18] sm:$0xff] %vm337, 0.0
      %vm342 = vcmask 3072
      %343 = vst.msk [vmem:[#allocation2 + $0x20] sm:$0xf] %vm342, 0.0
      %vm344 = vcmask 80968
      %345 = vst.msk [vmem:[#allocation2] sm:$0xff] %vm344, 0.0
      %346 = vst.msk [vmem:[#allocation2 + $0x8] sm:$0xff] %vm344, 0.0
      %347 = vst.msk [vmem:[#allocation2 + $0x10] sm:$0xff] %vm344, 0.0
      %348 = vst.msk [vmem:[#allocation2 + $0x18] sm:$0xff] %vm344, 0.0
      %vm349 = vcmask 76872
      %350 = vst.msk [vmem:[#allocation2 + $0x20] sm:$0xf] %vm349, 0.0
      %351 = vst.msk [vmem:[#allocation3] sm:$0x3] %vm334, 0.0
      %352 = vst.msk [vmem:[#allocation3 + $0x12] sm:$0x3] %vm334, 0.0
      %353 = vst.msk [vmem:[#allocation3] sm:$0xff] %vm337, 0.0
      %354 = vst.msk [vmem:[#allocation3 + $0x8] sm:$0xff] %vm337, 0.0
      %355 = vst.msk [vmem:[#allocation3 + $0x10] sm:$0xf] %vm342, 0.0
      %356 = vst.msk [vmem:[#allocation3] sm:$0xff] %vm344, 0.0
      %357 = vst.msk [vmem:[#allocation3 + $0x8] sm:$0xff] %vm344, 0.0
      %358 = vst.msk [vmem:[#allocation3 + $0x10] sm:$0xf] %vm349, 0.0
      %v359 = vld [vmem:[%s1] sm:$0x3]
      %s360 = scalar_lea.vmem %s1, 2
      %v361 = vld [vmem:[%s360] sm:$0x3]
      %s362 = scalar_lea.vmem %s1, 4
      %v363 = vld [vmem:[%s362] sm:$0x3]
      %v364 = vld [vmem:[%s3] sm:$0x1]
      %s365 = scalar_lea.vmem %s3, 1
      %v366 = vld [vmem:[%s365] sm:$0x1]
      %s367 = scalar_lea.vmem %s3, 2
      %v368 = vld [vmem:[%s367] sm:$0x1]
      %v369 = vld [vmem:[%s5] sm:$0x3]
      %s370 = scalar_lea.vmem %s5, 2
      %v371 = vld [vmem:[%s370] sm:$0x3]
      %s372 = scalar_lea.vmem %s5, 4
      %v373 = vld [vmem:[%s372] sm:$0x3]
      %v374 = vld [vmem:[%s2] sm:$0x3]
      %v375 = vld [vmem:[%s4] sm:$0x3]
      %v376 = vld [vmem:[%s6] sm:$0xf]
      %v377 = vld [vmem:[%s327] sm:$0x7]
      %379 = vrot.lane.b32.xlu0 %v377, 127
      %v380 = vpop.permute.xlu0 %379
      %vm381 = vcmask 23552
      %v383 = vsel %vm381, %v361, 0
      %vm385 = vcmask 1042432
      %v386 = vsel %vm385, %v380, 0
      %388 = vmatpush.msra.mxu0 0.0
      %389 = vmatpush.msra.mxu0 0.0
      %390 = vmatpush.msra.mxu0 0.0
      %391 = vmatpush.msra.mxu0 0.0
      %392 = vmatpush.msra.mxu0 0.0
      %393 = vmatpush.msra.mxu0 0.0
      %394 = vmatpush.msra.mxu0 0.0
      %395 = vmatpush.msra.mxu0 0.0
      %396 = vmatpush.msra.mxu0 0.0
      %397 = vmatpush.msra.mxu0 0.0
      %398 = vmatpush.msra.mxu0 0.0
      %399 = vmatpush.msra.mxu0 0.0
      %400 = vmatpush.msra.mxu0 0.0
      %401 = vmatpush.msra.mxu0 0.0
      %402 = vmatpush.msra.mxu0 0.0
      %403 = vmatpush.msra.mxu0 %v386
      %404 = vmatmul.f32.gmra.mxu0 %v383
      %v405 = vpop.f32.mrf.mxu0
      %v406 = vadd.f32 0.0, %v405
      %407 = vdwg.mxu0
      %v409 = vsel %vm381, %v359, 0
      %v411 = vsel %vm385, %v377, 0
      %413 = vmatpush.msra.mxu0 0.0
      %414 = vmatpush.msra.mxu0 0.0
      %415 = vmatpush.msra.mxu0 0.0
      %416 = vmatpush.msra.mxu0 0.0
      %417 = vmatpush.msra.mxu0 0.0
      %418 = vmatpush.msra.mxu0 0.0
      %419 = vmatpush.msra.mxu0 0.0
      %420 = vmatpush.msra.mxu0 0.0
      %421 = vmatpush.msra.mxu0 0.0
      %422 = vmatpush.msra.mxu0 0.0
      %423 = vmatpush.msra.mxu0 0.0
      %424 = vmatpush.msra.mxu0 0.0
      %425 = vmatpush.msra.mxu0 0.0
      %426 = vmatpush.msra.mxu0 0.0
      %427 = vmatpush.msra.mxu0 0.0
      %428 = vmatpush.msra.mxu0 %v411
      %429 = vmatmul.f32.gmra.mxu0 %v409
      %v430 = vpop.f32.mrf.mxu0
      %v431 = vadd.f32 %v406, %v430
      %432 = vdwg.mxu0
      %433 = vrot.lane.b32.xlu0 %v377, 126
      %v434 = vpop.permute.xlu0 %433
      %v436 = vsel %vm381, %v363, 0
      %v438 = vsel %vm385, %v434, 0
      %440 = vmatpush.msra.mxu0 0.0
      %441 = vmatpush.msra.mxu0 0.0
      %442 = vmatpush.msra.mxu0 0.0
      %443 = vmatpush.msra.mxu0 0.0
      %444 = vmatpush.msra.mxu0 0.0
      %445 = vmatpush.msra.mxu0 0.0
      %446 = vmatpush.msra.mxu0 0.0
      %447 = vmatpush.msra.mxu0 0.0
      %448 = vmatpush.msra.mxu0 0.0
      %449 = vmatpush.msra.mxu0 0.0
      %450 = vmatpush.msra.mxu0 0.0
      %451 = vmatpush.msra.mxu0 0.0
      %452 = vmatpush.msra.mxu0 0.0
      %453 = vmatpush.msra.mxu0 0.0
      %454 = vmatpush.msra.mxu0 0.0
      %455 = vmatpush.msra.mxu0 %v438
      %456 = vmatmul.f32.gmra.mxu0 %v436
      %v457 = vpop.f32.mrf.mxu0
      %v458 = vadd.f32 0.0, %v457
      %459 = vdwg.mxu0
      %v460 = vadd.f32 %v431, %v458
      %462 = vset.pattern.permute.xlu0 0
      %463 = vperm.xlu0 %462, %v374
      %v464 = vpop.permute.xlu0 %463
      %v466 = vadd.f32 %v460, %v464
      %v467 = vmax.f32 %v466, 0.0
      %469 = vrot.lane.b32.xlu0 %v467, 1
      %v470 = vpop.permute.xlu0 %469
      %vm472 = vcmask 66568
      %473 = vst.msk [vmem:[#allocation2 + $0x2] sm:$0x3] %vm472, %v470
      %v474 = vld [vmem:[%s327 + $0x1] sm:$0x7]
      %476 = vrot.lane.b32.xlu0 %v474, 127
      %v477 = vpop.permute.xlu0 %476
      %v478 = vsel %vm385, %v477, 0
      %480 = vmatpush.msra.mxu0 0.0
      %481 = vmatpush.msra.mxu0 0.0
      %482 = vmatpush.msra.mxu0 0.0
      %483 = vmatpush.msra.mxu0 0.0
      %484 = vmatpush.msra.mxu0 0.0
      %485 = vmatpush.msra.mxu0 0.0
      %486 = vmatpush.msra.mxu0 0.0
      %487 = vmatpush.msra.mxu0 0.0
      %488 = vmatpush.msra.mxu0 0.0
      %489 = vmatpush.msra.mxu0 0.0
      %490 = vmatpush.msra.mxu0 0.0
      %491 = vmatpush.msra.mxu0 0.0
      %492 = vmatpush.msra.mxu0 0.0
      %493 = vmatpush.msra.mxu0 0.0
      %494 = vmatpush.msra.mxu0 0.0
      %495 = vmatpush.msra.mxu0 %v478
      %496 = vmatmul.f32.gmra.mxu0 %v383
      %v497 = vpop.f32.mrf.mxu0
      %v498 = vadd.f32 0.0, %v497
      %499 = vdwg.mxu0
      %v500 = vsel %vm385, %v474, 0
      %502 = vmatpush.msra.mxu0 0.0
      %503 = vmatpush.msra.mxu0 0.0
      %504 = vmatpush.msra.mxu0 0.0
      %505 = vmatpush.msra.mxu0 0.0
      %506 = vmatpush.msra.mxu0 0.0
      %507 = vmatpush.msra.mxu0 0.0
      %508 = vmatpush.msra.mxu0 0.0
      %509 = vmatpush.msra.mxu0 0.0
      %510 = vmatpush.msra.mxu0 0.0
      %511 = vmatpush.msra.mxu0 0.0
      %512 = vmatpush.msra.mxu0 0.0
      %513 = vmatpush.msra.mxu0 0.0
      %514 = vmatpush.msra.mxu0 0.0
      %515 = vmatpush.msra.mxu0 0.0
      %516 = vmatpush.msra.mxu0 0.0
      %517 = vmatpush.msra.mxu0 %v500
      %518 = vmatmul.f32.gmra.mxu0 %v409
      %v519 = vpop.f32.mrf.mxu0
      %v520 = vadd.f32 %v498, %v519
      %521 = vdwg.mxu0
      %522 = vrot.lane.b32.xlu0 %v474, 126
      %v523 = vpop.permute.xlu0 %522
      %v524 = vsel %vm385, %v523, 0
      %526 = vmatpush.msra.mxu0 0.0
      %527 = vmatpush.msra.mxu0 0.0
      %528 = vmatpush.msra.mxu0 0.0
      %529 = vmatpush.msra.mxu0 0.0
      %530 = vmatpush.msra.mxu0 0.0
      %531 = vmatpush.msra.mxu0 0.0
      %532 = vmatpush.msra.mxu0 0.0
      %533 = vmatpush.msra.mxu0 0.0
      %534 = vmatpush.msra.mxu0 0.0
      %535 = vmatpush.msra.mxu0 0.0
      %536 = vmatpush.msra.mxu0 0.0
      %537 = vmatpush.msra.mxu0 0.0
      %538 = vmatpush.msra.mxu0 0.0
      %539 = vmatpush.msra.mxu0 0.0
      %540 = vmatpush.msra.mxu0 0.0
      %541 = vmatpush.msra.mxu0 %v524
      %542 = vmatmul.f32.gmra.mxu0 %v436
      %v543 = vpop.f32.mrf.mxu0
      %v544 = vadd.f32 0.0, %v543
      %545 = vdwg.mxu0
      %v546 = vadd.f32 %v520, %v544
      %v547 = vadd.f32 %v546, %v464
      %v548 = vmax.f32 %v547, 0.0
      %550 = vrot.lane.b32.xlu0 %v548, 1
      %v551 = vpop.permute.xlu0 %550
      %553 = vst.msk [vmem:[#allocation2 + $0x4] sm:$0x3] %vm472, %v551
      %v554 = vld [vmem:[%s327 + $0x2] sm:$0x7]
      %556 = vrot.lane.b32.xlu0 %v554, 127
      %v557 = vpop.permute.xlu0 %556
      %v558 = vsel %vm385, %v557, 0
      %560 = vmatpush.msra.mxu0 0.0
      %561 = vmatpush.msra.mxu0 0.0
      %562 = vmatpush.msra.mxu0 0.0
      %563 = vmatpush.msra.mxu0 0.0
      %564 = vmatpush.msra.mxu0 0.0
      %565 = vmatpush.msra.mxu0 0.0
      %566 = vmatpush.msra.mxu0 0.0
      %567 = vmatpush.msra.mxu0 0.0
      %568 = vmatpush.msra.mxu0 0.0
      %569 = vmatpush.msra.mxu0 0.0
      %570 = vmatpush.msra.mxu0 0.0
      %571 = vmatpush.msra.mxu0 0.0
      %572 = vmatpush.msra.mxu0 0.0
      %573 = vmatpush.msra.mxu0 0.0
      %574 = vmatpush.msra.mxu0 0.0
      %575 = vmatpush.msra.mxu0 %v558
      %576 = vmatmul.f32.gmra.mxu0 %v383
      %v577 = vpop.f32.mrf.mxu0
      %v578 = vadd.f32 0.0, %v577
      %579 = vdwg.mxu0
      %v580 = vsel %vm385, %v554, 0
      %582 = vmatpush.msra.mxu0 0.0
      %583 = vmatpush.msra.mxu0 0.0
      %584 = vmatpush.msra.mxu0 0.0
      %585 = vmatpush.msra.mxu0 0.0
      %586 = vmatpush.msra.mxu0 0.0
      %587 = vmatpush.msra.mxu0 0.0
      %588 = vmatpush.msra.mxu0 0.0
      %589 = vmatpush.msra.mxu0 0.0
      %590 = vmatpush.msra.mxu0 0.0
      %591 = vmatpush.msra.mxu0 0.0
      %592 = vmatpush.msra.mxu0 0.0
      %593 = vmatpush.msra.mxu0 0.0
      %594 = vmatpush.msra.mxu0 0.0
      %595 = vmatpush.msra.mxu0 0.0
      %596 = vmatpush.msra.mxu0 0.0
      %597 = vmatpush.msra.mxu0 %v580
      %598 = vmatmul.f32.gmra.mxu0 %v409
      %v599 = vpop.f32.mrf.mxu0
      %v600 = vadd.f32 %v578, %v599
      %601 = vdwg.mxu0
      %602 = vrot.lane.b32.xlu0 %v554, 126
      %v603 = vpop.permute.xlu0 %602
      %v604 = vsel %vm385, %v603, 0
      %606 = vmatpush.msra.mxu0 0.0
      %607 = vmatpush.msra.mxu0 0.0
      %608 = vmatpush.msra.mxu0 0.0
      %609 = vmatpush.msra.mxu0 0.0
      %610 = vmatpush.msra.mxu0 0.0
      %611 = vmatpush.msra.mxu0 0.0
      %612 = vmatpush.msra.mxu0 0.0
      %613 = vmatpush.msra.mxu0 0.0
      %614 = vmatpush.msra.mxu0 0.0
      %615 = vmatpush.msra.mxu0 0.0
      %616 = vmatpush.msra.mxu0 0.0
      %617 = vmatpush.msra.mxu0 0.0
      %618 = vmatpush.msra.mxu0 0.0
      %619 = vmatpush.msra.mxu0 0.0
      %620 = vmatpush.msra.mxu0 0.0
      %621 = vmatpush.msra.mxu0 %v604
      %622 = vmatmul.f32.gmra.mxu0 %v436
      %v623 = vpop.f32.mrf.mxu0
      %v624 = vadd.f32 0.0, %v623
      %625 = vdwg.mxu0
      %v626 = vadd.f32 %v600, %v624
      %v627 = vadd.f32 %v626, %v464
      %v628 = vmax.f32 %v627, 0.0
      %630 = vrot.lane.b32.xlu0 %v628, 1
      %v631 = vpop.permute.xlu0 %630
      %633 = vst.msk [vmem:[#allocation2 + $0x6] sm:$0x3] %vm472, %v631
      %v634 = vld [vmem:[%s327 + $0x3] sm:$0x7]
      %636 = vrot.lane.b32.xlu0 %v634, 127
      %v637 = vpop.permute.xlu0 %636
      %v638 = vsel %vm385, %v637, 0
      %640 = vmatpush.msra.mxu0 0.0
      %641 = vmatpush.msra.mxu0 0.0
      %642 = vmatpush.msra.mxu0 0.0
      %643 = vmatpush.msra.mxu0 0.0
      %644 = vmatpush.msra.mxu0 0.0
      %645 = vmatpush.msra.mxu0 0.0
      %646 = vmatpush.msra.mxu0 0.0
      %647 = vmatpush.msra.mxu0 0.0
      %648 = vmatpush.msra.mxu0 0.0
      %649 = vmatpush.msra.mxu0 0.0
      %650 = vmatpush.msra.mxu0 0.0
      %651 = vmatpush.msra.mxu0 0.0
      %652 = vmatpush.msra.mxu0 0.0
      %653 = vmatpush.msra.mxu0 0.0
      %654 = vmatpush.msra.mxu0 0.0
      %655 = vmatpush.msra.mxu0 %v638
      %656 = vmatmul.f32.gmra.mxu0 %v383
      %v657 = vpop.f32.mrf.mxu0
      %v658 = vadd.f32 0.0, %v657
      %659 = vdwg.mxu0
      %v660 = vsel %vm385, %v634, 0
      %662 = vmatpush.msra.mxu0 0.0
      %663 = vmatpush.msra.mxu0 0.0
      %664 = vmatpush.msra.mxu0 0.0
      %665 = vmatpush.msra.mxu0 0.0
      %666 = vmatpush.msra.mxu0 0.0
      %667 = vmatpush.msra.mxu0 0.0
      %668 = vmatpush.msra.mxu0 0.0
      %669 = vmatpush.msra.mxu0 0.0
      %670 = vmatpush.msra.mxu0 0.0
      %671 = vmatpush.msra.mxu0 0.0
      %672 = vmatpush.msra.mxu0 0.0
      %673 = vmatpush.msra.mxu0 0.0
      %674 = vmatpush.msra.mxu0 0.0
      %675 = vmatpush.msra.mxu0 0.0
      %676 = vmatpush.msra.mxu0 0.0
      %677 = vmatpush.msra.mxu0 %v660
      %678 = vmatmul.f32.gmra.mxu0 %v409
      %v679 = vpop.f32.mrf.mxu0
      %v680 = vadd.f32 %v658, %v679
      %681 = vdwg.mxu0
      %682 = vrot.lane.b32.xlu0 %v634, 126
      %v683 = vpop.permute.xlu0 %682
      %v684 = vsel %vm385, %v683, 0
      %686 = vmatpush.msra.mxu0 0.0
      %687 = vmatpush.msra.mxu0 0.0
      %688 = vmatpush.msra.mxu0 0.0
      %689 = vmatpush.msra.mxu0 0.0
      %690 = vmatpush.msra.mxu0 0.0
      %691 = vmatpush.msra.mxu0 0.0
      %692 = vmatpush.msra.mxu0 0.0
      %693 = vmatpush.msra.mxu0 0.0
      %694 = vmatpush.msra.mxu0 0.0
      %695 = vmatpush.msra.mxu0 0.0
      %696 = vmatpush.msra.mxu0 0.0
      %697 = vmatpush.msra.mxu0 0.0
      %698 = vmatpush.msra.mxu0 0.0
      %699 = vmatpush.msra.mxu0 0.0
      %700 = vmatpush.msra.mxu0 0.0
      %701 = vmatpush.msra.mxu0 %v684
      %702 = vmatmul.f32.gmra.mxu0 %v436
      %v703 = vpop.f32.mrf.mxu0
      %v704 = vadd.f32 0.0, %v703
      %705 = vdwg.mxu0
      %v706 = vadd.f32 %v680, %v704
      %v707 = vadd.f32 %v706, %v464
      %v708 = vmax.f32 %v707, 0.0
      %710 = vrot.lane.b32.xlu0 %v708, 1
      %v711 = vpop.permute.xlu0 %710
      %713 = vst.msk [vmem:[#allocation2 + $0x8] sm:$0x3] %vm472, %v711
      %v714 = vld [vmem:[%s327 + $0x4] sm:$0x7]
      %716 = vrot.lane.b32.xlu0 %v714, 127
      %v717 = vpop.permute.xlu0 %716
      %v718 = vsel %vm385, %v717, 0
      %720 = vmatpush.msra.mxu0 0.0
      %721 = vmatpush.msra.mxu0 0.0
      %722 = vmatpush.msra.mxu0 0.0
      %723 = vmatpush.msra.mxu0 0.0
      %724 = vmatpush.msra.mxu0 0.0
      %725 = vmatpush.msra.mxu0 0.0
      %726 = vmatpush.msra.mxu0 0.0
      %727 = vmatpush.msra.mxu0 0.0
      %728 = vmatpush.msra.mxu0 0.0
      %729 = vmatpush.msra.mxu0 0.0
      %730 = vmatpush.msra.mxu0 0.0
      %731 = vmatpush.msra.mxu0 0.0
      %732 = vmatpush.msra.mxu0 0.0
      %733 = vmatpush.msra.mxu0 0.0
      %734 = vmatpush.msra.mxu0 0.0
      %735 = vmatpush.msra.mxu0 %v718
      %736 = vmatmul.f32.gmra.mxu0 %v383
      %v737 = vpop.f32.mrf.mxu0
      %v738 = vadd.f32 0.0, %v737
      %739 = vdwg.mxu0
      %v740 = vsel %vm385, %v714, 0
      %742 = vmatpush.msra.mxu0 0.0
      %743 = vmatpush.msra.mxu0 0.0
      %744 = vmatpush.msra.mxu0 0.0
      %745 = vmatpush.msra.mxu0 0.0
      %746 = vmatpush.msra.mxu0 0.0
      %747 = vmatpush.msra.mxu0 0.0
      %748 = vmatpush.msra.mxu0 0.0
      %749 = vmatpush.msra.mxu0 0.0
      %750 = vmatpush.msra.mxu0 0.0
      %751 = vmatpush.msra.mxu0 0.0
      %752 = vmatpush.msra.mxu0 0.0
      %753 = vmatpush.msra.mxu0 0.0
      %754 = vmatpush.msra.mxu0 0.0
      %755 = vmatpush.msra.mxu0 0.0
      %756 = vmatpush.msra.mxu0 0.0
      %757 = vmatpush.msra.mxu0 %v740
      %758 = vmatmul.f32.gmra.mxu0 %v409
      %v759 = vpop.f32.mrf.mxu0
      %v760 = vadd.f32 %v738, %v759
      %761 = vdwg.mxu0
      %762 = vrot.lane.b32.xlu0 %v714, 126
      %v763 = vpop.permute.xlu0 %762
      %v764 = vsel %vm385, %v763, 0
      %766 = vmatpush.msra.mxu0 0.0
      %767 = vmatpush.msra.mxu0 0.0
      %768 = vmatpush.msra.mxu0 0.0
      %769 = vmatpush.msra.mxu0 0.0
      %770 = vmatpush.msra.mxu0 0.0
      %771 = vmatpush.msra.mxu0 0.0
      %772 = vmatpush.msra.mxu0 0.0
      %773 = vmatpush.msra.mxu0 0.0
      %774 = vmatpush.msra.mxu0 0.0
      %775 = vmatpush.msra.mxu0 0.0
      %776 = vmatpush.msra.mxu0 0.0
      %777 = vmatpush.msra.mxu0 0.0
      %778 = vmatpush.msra.mxu0 0.0
      %779 = vmatpush.msra.mxu0 0.0
      %780 = vmatpush.msra.mxu0 0.0
      %781 = vmatpush.msra.mxu0 %v764
      %782 = vmatmul.f32.gmra.mxu0 %v436
      %v783 = vpop.f32.mrf.mxu0
      %v784 = vadd.f32 0.0, %v783
      %785 = vdwg.mxu0
      %v786 = vadd.f32 %v760, %v784
      %v787 = vadd.f32 %v786, %v464
      %v788 = vmax.f32 %v787, 0.0
      %790 = vrot.lane.b32.xlu0 %v788, 1
      %v791 = vpop.permute.xlu0 %790
      %793 = vst.msk [vmem:[#allocation2 + $0xa] sm:$0x3] %vm472, %v791
      %v794 = vld [vmem:[%s327 + $0x5] sm:$0x7]
      %796 = vrot.lane.b32.xlu0 %v794, 127
      %v797 = vpop.permute.xlu0 %796
      %v798 = vsel %vm385, %v797, 0
      %800 = vmatpush.msra.mxu0 0.0
      %801 = vmatpush.msra.mxu0 0.0
      %802 = vmatpush.msra.mxu0 0.0
      %803 = vmatpush.msra.mxu0 0.0
      %804 = vmatpush.msra.mxu0 0.0
      %805 = vmatpush.msra.mxu0 0.0
      %806 = vmatpush.msra.mxu0 0.0
      %807 = vmatpush.msra.mxu0 0.0
      %808 = vmatpush.msra.mxu0 0.0
      %809 = vmatpush.msra.mxu0 0.0
      %810 = vmatpush.msra.mxu0 0.0
      %811 = vmatpush.msra.mxu0 0.0
      %812 = vmatpush.msra.mxu0 0.0
      %813 = vmatpush.msra.mxu0 0.0
      %814 = vmatpush.msra.mxu0 0.0
      %815 = vmatpush.msra.mxu0 %v798
      %816 = vmatmul.f32.gmra.mxu0 %v383
      %v817 = vpop.f32.mrf.mxu0
      %v818 = vadd.f32 0.0, %v817
      %819 = vdwg.mxu0
      %v820 = vsel %vm385, %v794, 0
      %822 = vmatpush.msra.mxu0 0.0
      %823 = vmatpush.msra.mxu0 0.0
      %824 = vmatpush.msra.mxu0 0.0
      %825 = vmatpush.msra.mxu0 0.0
      %826 = vmatpush.msra.mxu0 0.0
      %827 = vmatpush.msra.mxu0 0.0
      %828 = vmatpush.msra.mxu0 0.0
      %829 = vmatpush.msra.mxu0 0.0
      %830 = vmatpush.msra.mxu0 0.0
      %831 = vmatpush.msra.mxu0 0.0
      %832 = vmatpush.msra.mxu0 0.0
      %833 = vmatpush.msra.mxu0 0.0
      %834 = vmatpush.msra.mxu0 0.0
      %835 = vmatpush.msra.mxu0 0.0
      %836 = vmatpush.msra.mxu0 0.0
      %837 = vmatpush.msra.mxu0 %v820
      %838 = vmatmul.f32.gmra.mxu0 %v409
      %v839 = vpop.f32.mrf.mxu0
      %v840 = vadd.f32 %v818, %v839
      %841 = vdwg.mxu0
      %842 = vrot.lane.b32.xlu0 %v794, 126
      %v843 = vpop.permute.xlu0 %842
      %v844 = vsel %vm385, %v843, 0
      %846 = vmatpush.msra.mxu0 0.0
      %847 = vmatpush.msra.mxu0 0.0
      %848 = vmatpush.msra.mxu0 0.0
      %849 = vmatpush.msra.mxu0 0.0
      %850 = vmatpush.msra.mxu0 0.0
      %851 = vmatpush.msra.mxu0 0.0
      %852 = vmatpush.msra.mxu0 0.0
      %853 = vmatpush.msra.mxu0 0.0
      %854 = vmatpush.msra.mxu0 0.0
      %855 = vmatpush.msra.mxu0 0.0
      %856 = vmatpush.msra.mxu0 0.0
      %857 = vmatpush.msra.mxu0 0.0
      %858 = vmatpush.msra.mxu0 0.0
      %859 = vmatpush.msra.mxu0 0.0
      %860 = vmatpush.msra.mxu0 0.0
      %861 = vmatpush.msra.mxu0 %v844
      %862 = vmatmul.f32.gmra.mxu0 %v436
      %v863 = vpop.f32.mrf.mxu0
      %v864 = vadd.f32 0.0, %v863
      %865 = vdwg.mxu0
      %v866 = vadd.f32 %v840, %v864
      %v867 = vadd.f32 %v866, %v464
      %v868 = vmax.f32 %v867, 0.0
      %870 = vrot.lane.b32.xlu0 %v868, 1
      %v871 = vpop.permute.xlu0 %870
      %873 = vst.msk [vmem:[#allocation2 + $0xc] sm:$0x3] %vm472, %v871
      %v874 = vld [vmem:[%s327 + $0x6] sm:$0x7]
      %876 = vrot.lane.b32.xlu0 %v874, 127
      %v877 = vpop.permute.xlu0 %876
      %v878 = vsel %vm385, %v877, 0
      %880 = vmatpush.msra.mxu0 0.0
      %881 = vmatpush.msra.mxu0 0.0
      %882 = vmatpush.msra.mxu0 0.0
      %883 = vmatpush.msra.mxu0 0.0
      %884 = vmatpush.msra.mxu0 0.0
      %885 = vmatpush.msra.mxu0 0.0
      %886 = vmatpush.msra.mxu0 0.0
      %887 = vmatpush.msra.mxu0 0.0
      %888 = vmatpush.msra.mxu0 0.0
      %889 = vmatpush.msra.mxu0 0.0
      %890 = vmatpush.msra.mxu0 0.0
      %891 = vmatpush.msra.mxu0 0.0
      %892 = vmatpush.msra.mxu0 0.0
      %893 = vmatpush.msra.mxu0 0.0
      %894 = vmatpush.msra.mxu0 0.0
      %895 = vmatpush.msra.mxu0 %v878
      %896 = vmatmul.f32.gmra.mxu0 %v383
      %v897 = vpop.f32.mrf.mxu0
      %v898 = vadd.f32 0.0, %v897
      %899 = vdwg.mxu0
      %v900 = vsel %vm385, %v874, 0
      %902 = vmatpush.msra.mxu0 0.0
      %903 = vmatpush.msra.mxu0 0.0
      %904 = vmatpush.msra.mxu0 0.0
      %905 = vmatpush.msra.mxu0 0.0
      %906 = vmatpush.msra.mxu0 0.0
      %907 = vmatpush.msra.mxu0 0.0
      %908 = vmatpush.msra.mxu0 0.0
      %909 = vmatpush.msra.mxu0 0.0
      %910 = vmatpush.msra.mxu0 0.0
      %911 = vmatpush.msra.mxu0 0.0
      %912 = vmatpush.msra.mxu0 0.0
      %913 = vmatpush.msra.mxu0 0.0
      %914 = vmatpush.msra.mxu0 0.0
      %915 = vmatpush.msra.mxu0 0.0
      %916 = vmatpush.msra.mxu0 0.0
      %917 = vmatpush.msra.mxu0 %v900
      %918 = vmatmul.f32.gmra.mxu0 %v409
      %v919 = vpop.f32.mrf.mxu0
      %v920 = vadd.f32 %v898, %v919
      %921 = vdwg.mxu0
      %922 = vrot.lane.b32.xlu0 %v874, 126
      %v923 = vpop.permute.xlu0 %922
      %v924 = vsel %vm385, %v923, 0
      %926 = vmatpush.msra.mxu0 0.0
      %927 = vmatpush.msra.mxu0 0.0
      %928 = vmatpush.msra.mxu0 0.0
      %929 = vmatpush.msra.mxu0 0.0
      %930 = vmatpush.msra.mxu0 0.0
      %931 = vmatpush.msra.mxu0 0.0
      %932 = vmatpush.msra.mxu0 0.0
      %933 = vmatpush.msra.mxu0 0.0
      %934 = vmatpush.msra.mxu0 0.0
      %935 = vmatpush.msra.mxu0 0.0
      %936 = vmatpush.msra.mxu0 0.0
      %937 = vmatpush.msra.mxu0 0.0
      %938 = vmatpush.msra.mxu0 0.0
      %939 = vmatpush.msra.mxu0 0.0
      %940 = vmatpush.msra.mxu0 0.0
      %941 = vmatpush.msra.mxu0 %v924
      %942 = vmatmul.f32.gmra.mxu0 %v436
      %v943 = vpop.f32.mrf.mxu0
      %v944 = vadd.f32 0.0, %v943
      %945 = vdwg.mxu0
      %v946 = vadd.f32 %v920, %v944
      %v947 = vadd.f32 %v946, %v464
      %v948 = vmax.f32 %v947, 0.0
      %950 = vrot.lane.b32.xlu0 %v948, 1
      %v951 = vpop.permute.xlu0 %950
      %953 = vst.msk [vmem:[#allocation2 + $0xe] sm:$0x3] %vm472, %v951
      %v954 = vld [vmem:[%s327 + $0x7] sm:$0x7]
      %956 = vrot.lane.b32.xlu0 %v954, 127
      %v957 = vpop.permute.xlu0 %956
      %v958 = vsel %vm385, %v957, 0
      %960 = vmatpush.msra.mxu0 0.0
      %961 = vmatpush.msra.mxu0 0.0
      %962 = vmatpush.msra.mxu0 0.0
      %963 = vmatpush.msra.mxu0 0.0
      %964 = vmatpush.msra.mxu0 0.0
      %965 = vmatpush.msra.mxu0 0.0
      %966 = vmatpush.msra.mxu0 0.0
      %967 = vmatpush.msra.mxu0 0.0
      %968 = vmatpush.msra.mxu0 0.0
      %969 = vmatpush.msra.mxu0 0.0
      %970 = vmatpush.msra.mxu0 0.0
      %971 = vmatpush.msra.mxu0 0.0
      %972 = vmatpush.msra.mxu0 0.0
      %973 = vmatpush.msra.mxu0 0.0
      %974 = vmatpush.msra.mxu0 0.0
      %975 = vmatpush.msra.mxu0 %v958
      %976 = vmatmul.f32.gmra.mxu0 %v383
      %v977 = vpop.f32.mrf.mxu0
      %v978 = vadd.f32 0.0, %v977
      %979 = vdwg.mxu0
      %v980 = vsel %vm385, %v954, 0
      %982 = vmatpush.msra.mxu0 0.0
      %983 = vmatpush.msra.mxu0 0.0
      %984 = vmatpush.msra.mxu0 0.0
      %985 = vmatpush.msra.mxu0 0.0
      %986 = vmatpush.msra.mxu0 0.0
      %987 = vmatpush.msra.mxu0 0.0
      %988 = vmatpush.msra.mxu0 0.0
      %989 = vmatpush.msra.mxu0 0.0
      %990 = vmatpush.msra.mxu0 0.0
      %991 = vmatpush.msra.mxu0 0.0
      %992 = vmatpush.msra.mxu0 0.0
      %993 = vmatpush.msra.mxu0 0.0
      %994 = vmatpush.msra.mxu0 0.0
      %995 = vmatpush.msra.mxu0 0.0
      %996 = vmatpush.msra.mxu0 0.0
      %997 = vmatpush.msra.mxu0 %v980
      %998 = vmatmul.f32.gmra.mxu0 %v409
      %v999 = vpop.f32.mrf.mxu0
      %v1000 = vadd.f32 %v978, %v999
      %1001 = vdwg.mxu0
      %1002 = vrot.lane.b32.xlu0 %v954, 126
      %v1003 = vpop.permute.xlu0 %1002
      %v1004 = vsel %vm385, %v1003, 0
      %1006 = vmatpush.msra.mxu0 0.0
      %1007 = vmatpush.msra.mxu0 0.0
      %1008 = vmatpush.msra.mxu0 0.0
      %1009 = vmatpush.msra.mxu0 0.0
      %1010 = vmatpush.msra.mxu0 0.0
      %1011 = vmatpush.msra.mxu0 0.0
      %1012 = vmatpush.msra.mxu0 0.0
      %1013 = vmatpush.msra.mxu0 0.0
      %1014 = vmatpush.msra.mxu0 0.0
      %1015 = vmatpush.msra.mxu0 0.0
      %1016 = vmatpush.msra.mxu0 0.0
      %1017 = vmatpush.msra.mxu0 0.0
      %1018 = vmatpush.msra.mxu0 0.0
      %1019 = vmatpush.msra.mxu0 0.0
      %1020 = vmatpush.msra.mxu0 0.0
      %1021 = vmatpush.msra.mxu0 %v1004
      %1022 = vmatmul.f32.gmra.mxu0 %v436
      %v1023 = vpop.f32.mrf.mxu0
      %v1024 = vadd.f32 0.0, %v1023
      %1025 = vdwg.mxu0
      %v1026 = vadd.f32 %v1000, %v1024
      %v1027 = vadd.f32 %v1026, %v464
      %v1028 = vmax.f32 %v1027, 0.0
      %1030 = vrot.lane.b32.xlu0 %v1028, 1
      %v1031 = vpop.permute.xlu0 %1030
      %1033 = vst.msk [vmem:[#allocation2 + $0x10] sm:$0x3] %vm472, %v1031
      %v1034 = vld [vmem:[%s327 + $0x8] sm:$0x7]
      %1036 = vrot.lane.b32.xlu0 %v1034, 127
      %v1037 = vpop.permute.xlu0 %1036
      %v1038 = vsel %vm385, %v1037, 0
      %1040 = vmatpush.msra.mxu0 0.0
      %1041 = vmatpush.msra.mxu0 0.0
      %1042 = vmatpush.msra.mxu0 0.0
      %1043 = vmatpush.msra.mxu0 0.0
      %1044 = vmatpush.msra.mxu0 0.0
      %1045 = vmatpush.msra.mxu0 0.0
      %1046 = vmatpush.msra.mxu0 0.0
      %1047 = vmatpush.msra.mxu0 0.0
      %1048 = vmatpush.msra.mxu0 0.0
      %1049 = vmatpush.msra.mxu0 0.0
      %1050 = vmatpush.msra.mxu0 0.0
      %1051 = vmatpush.msra.mxu0 0.0
      %1052 = vmatpush.msra.mxu0 0.0
      %1053 = vmatpush.msra.mxu0 0.0
      %1054 = vmatpush.msra.mxu0 0.0
      %1055 = vmatpush.msra.mxu0 %v1038
      %1056 = vmatmul.f32.gmra.mxu0 %v383
      %v1057 = vpop.f32.mrf.mxu0
      %v1058 = vadd.f32 0.0, %v1057
      %1059 = vdwg.mxu0
      %v1060 = vsel %vm385, %v1034, 0
      %1062 = vmatpush.msra.mxu0 0.0
      %1063 = vmatpush.msra.mxu0 0.0
      %1064 = vmatpush.msra.mxu0 0.0
      %1065 = vmatpush.msra.mxu0 0.0
      %1066 = vmatpush.msra.mxu0 0.0
      %1067 = vmatpush.msra.mxu0 0.0
      %1068 = vmatpush.msra.mxu0 0.0
      %1069 = vmatpush.msra.mxu0 0.0
      %1070 = vmatpush.msra.mxu0 0.0
      %1071 = vmatpush.msra.mxu0 0.0
      %1072 = vmatpush.msra.mxu0 0.0
      %1073 = vmatpush.msra.mxu0 0.0
      %1074 = vmatpush.msra.mxu0 0.0
      %1075 = vmatpush.msra.mxu0 0.0
      %1076 = vmatpush.msra.mxu0 0.0
      %1077 = vmatpush.msra.mxu0 %v1060
      %1078 = vmatmul.f32.gmra.mxu0 %v409
      %v1079 = vpop.f32.mrf.mxu0
      %v1080 = vadd.f32 %v1058, %v1079
      %1081 = vdwg.mxu0
      %1082 = vrot.lane.b32.xlu0 %v1034, 126
      %v1083 = vpop.permute.xlu0 %1082
      %v1084 = vsel %vm385, %v1083, 0
      %1086 = vmatpush.msra.mxu0 0.0
      %1087 = vmatpush.msra.mxu0 0.0
      %1088 = vmatpush.msra.mxu0 0.0
      %1089 = vmatpush.msra.mxu0 0.0
      %1090 = vmatpush.msra.mxu0 0.0
      %1091 = vmatpush.msra.mxu0 0.0
      %1092 = vmatpush.msra.mxu0 0.0
      %1093 = vmatpush.msra.mxu0 0.0
      %1094 = vmatpush.msra.mxu0 0.0
      %1095 = vmatpush.msra.mxu0 0.0
      %1096 = vmatpush.msra.mxu0 0.0
      %1097 = vmatpush.msra.mxu0 0.0
      %1098 = vmatpush.msra.mxu0 0.0
      %1099 = vmatpush.msra.mxu0 0.0
      %1100 = vmatpush.msra.mxu0 0.0
      %1101 = vmatpush.msra.mxu0 %v1084
      %1102 = vmatmul.f32.gmra.mxu0 %v436
      %v1103 = vpop.f32.mrf.mxu0
      %v1104 = vadd.f32 0.0, %v1103
      %1105 = vdwg.mxu0
      %v1106 = vadd.f32 %v1080, %v1104
      %v1107 = vadd.f32 %v1106, %v464
      %v1108 = vmax.f32 %v1107, 0.0
      %1110 = vrot.lane.b32.xlu0 %v1108, 1
      %v1111 = vpop.permute.xlu0 %1110
      %1113 = vst.msk [vmem:[#allocation2 + $0x12] sm:$0x3] %vm472, %v1111
      %v1114 = vld [vmem:[%s327 + $0x9] sm:$0x7]
      %1116 = vrot.lane.b32.xlu0 %v1114, 127
      %v1117 = vpop.permute.xlu0 %1116
      %v1118 = vsel %vm385, %v1117, 0
      %1120 = vmatpush.msra.mxu0 0.0
      %1121 = vmatpush.msra.mxu0 0.0
      %1122 = vmatpush.msra.mxu0 0.0
      %1123 = vmatpush.msra.mxu0 0.0
      %1124 = vmatpush.msra.mxu0 0.0
      %1125 = vmatpush.msra.mxu0 0.0
      %1126 = vmatpush.msra.mxu0 0.0
      %1127 = vmatpush.msra.mxu0 0.0
      %1128 = vmatpush.msra.mxu0 0.0
      %1129 = vmatpush.msra.mxu0 0.0
      %1130 = vmatpush.msra.mxu0 0.0
      %1131 = vmatpush.msra.mxu0 0.0
      %1132 = vmatpush.msra.mxu0 0.0
      %1133 = vmatpush.msra.mxu0 0.0
      %1134 = vmatpush.msra.mxu0 0.0
      %1135 = vmatpush.msra.mxu0 %v1118
      %1136 = vmatmul.f32.gmra.mxu0 %v383
      %v1137 = vpop.f32.mrf.mxu0
      %v1138 = vadd.f32 0.0, %v1137
      %1139 = vdwg.mxu0
      %v1140 = vsel %vm385, %v1114, 0
      %1142 = vmatpush.msra.mxu0 0.0
      %1143 = vmatpush.msra.mxu0 0.0
      %1144 = vmatpush.msra.mxu0 0.0
      %1145 = vmatpush.msra.mxu0 0.0
      %1146 = vmatpush.msra.mxu0 0.0
      %1147 = vmatpush.msra.mxu0 0.0
      %1148 = vmatpush.msra.mxu0 0.0
      %1149 = vmatpush.msra.mxu0 0.0
      %1150 = vmatpush.msra.mxu0 0.0
      %1151 = vmatpush.msra.mxu0 0.0
      %1152 = vmatpush.msra.mxu0 0.0
      %1153 = vmatpush.msra.mxu0 0.0
      %1154 = vmatpush.msra.mxu0 0.0
      %1155 = vmatpush.msra.mxu0 0.0
      %1156 = vmatpush.msra.mxu0 0.0
      %1157 = vmatpush.msra.mxu0 %v1140
      %1158 = vmatmul.f32.gmra.mxu0 %v409
      %v1159 = vpop.f32.mrf.mxu0
      %v1160 = vadd.f32 %v1138, %v1159
      %1161 = vdwg.mxu0
      %1162 = vrot.lane.b32.xlu0 %v1114, 126
      %v1163 = vpop.permute.xlu0 %1162
      %v1164 = vsel %vm385, %v1163, 0
      %1166 = vmatpush.msra.mxu0 0.0
      %1167 = vmatpush.msra.mxu0 0.0
      %1168 = vmatpush.msra.mxu0 0.0
      %1169 = vmatpush.msra.mxu0 0.0
      %1170 = vmatpush.msra.mxu0 0.0
      %1171 = vmatpush.msra.mxu0 0.0
      %1172 = vmatpush.msra.mxu0 0.0
      %1173 = vmatpush.msra.mxu0 0.0
      %1174 = vmatpush.msra.mxu0 0.0
      %1175 = vmatpush.msra.mxu0 0.0
      %1176 = vmatpush.msra.mxu0 0.0
      %1177 = vmatpush.msra.mxu0 0.0
      %1178 = vmatpush.msra.mxu0 0.0
      %1179 = vmatpush.msra.mxu0 0.0
      %1180 = vmatpush.msra.mxu0 0.0
      %1181 = vmatpush.msra.mxu0 %v1164
      %1182 = vmatmul.f32.gmra.mxu0 %v436
      %v1183 = vpop.f32.mrf.mxu0
      %v1184 = vadd.f32 0.0, %v1183
      %1185 = vdwg.mxu0
      %v1186 = vadd.f32 %v1160, %v1184
      %v1187 = vadd.f32 %v1186, %v464
      %v1188 = vmax.f32 %v1187, 0.0
      %1190 = vrot.lane.b32.xlu0 %v1188, 1
      %v1191 = vpop.permute.xlu0 %1190
      %1193 = vst.msk [vmem:[#allocation2 + $0x14] sm:$0x3] %vm472, %v1191
      %v1194 = vld [vmem:[%s327 + $0xa] sm:$0x7]
      %1196 = vrot.lane.b32.xlu0 %v1194, 127
      %v1197 = vpop.permute.xlu0 %1196
      %v1198 = vsel %vm385, %v1197, 0
      %1200 = vmatpush.msra.mxu0 0.0
      %1201 = vmatpush.msra.mxu0 0.0
      %1202 = vmatpush.msra.mxu0 0.0
      %1203 = vmatpush.msra.mxu0 0.0
      %1204 = vmatpush.msra.mxu0 0.0
      %1205 = vmatpush.msra.mxu0 0.0
      %1206 = vmatpush.msra.mxu0 0.0
      %1207 = vmatpush.msra.mxu0 0.0
      %1208 = vmatpush.msra.mxu0 0.0
      %1209 = vmatpush.msra.mxu0 0.0
      %1210 = vmatpush.msra.mxu0 0.0
      %1211 = vmatpush.msra.mxu0 0.0
      %1212 = vmatpush.msra.mxu0 0.0
      %1213 = vmatpush.msra.mxu0 0.0
      %1214 = vmatpush.msra.mxu0 0.0
      %1215 = vmatpush.msra.mxu0 %v1198
      %1216 = vmatmul.f32.gmra.mxu0 %v383
      %v1217 = vpop.f32.mrf.mxu0
      %v1218 = vadd.f32 0.0, %v1217
      %1219 = vdwg.mxu0
      %v1220 = vsel %vm385, %v1194, 0
      %1222 = vmatpush.msra.mxu0 0.0
      %1223 = vmatpush.msra.mxu0 0.0
      %1224 = vmatpush.msra.mxu0 0.0
      %1225 = vmatpush.msra.mxu0 0.0
      %1226 = vmatpush.msra.mxu0 0.0
      %1227 = vmatpush.msra.mxu0 0.0
      %1228 = vmatpush.msra.mxu0 0.0
      %1229 = vmatpush.msra.mxu0 0.0
      %1230 = vmatpush.msra.mxu0 0.0
      %1231 = vmatpush.msra.mxu0 0.0
      %1232 = vmatpush.msra.mxu0 0.0
      %1233 = vmatpush.msra.mxu0 0.0
      %1234 = vmatpush.msra.mxu0 0.0
      %1235 = vmatpush.msra.mxu0 0.0
      %1236 = vmatpush.msra.mxu0 0.0
      %1237 = vmatpush.msra.mxu0 %v1220
      %1238 = vmatmul.f32.gmra.mxu0 %v409
      %v1239 = vpop.f32.mrf.mxu0
      %v1240 = vadd.f32 %v1218, %v1239
      %1241 = vdwg.mxu0
      %1242 = vrot.lane.b32.xlu0 %v1194, 126
      %v1243 = vpop.permute.xlu0 %1242
      %v1244 = vsel %vm385, %v1243, 0
      %1246 = vmatpush.msra.mxu0 0.0
      %1247 = vmatpush.msra.mxu0 0.0
      %1248 = vmatpush.msra.mxu0 0.0
      %1249 = vmatpush.msra.mxu0 0.0
      %1250 = vmatpush.msra.mxu0 0.0
      %1251 = vmatpush.msra.mxu0 0.0
      %1252 = vmatpush.msra.mxu0 0.0
      %1253 = vmatpush.msra.mxu0 0.0
      %1254 = vmatpush.msra.mxu0 0.0
      %1255 = vmatpush.msra.mxu0 0.0
      %1256 = vmatpush.msra.mxu0 0.0
      %1257 = vmatpush.msra.mxu0 0.0
      %1258 = vmatpush.msra.mxu0 0.0
      %1259 = vmatpush.msra.mxu0 0.0
      %1260 = vmatpush.msra.mxu0 0.0
      %1261 = vmatpush.msra.mxu0 %v1244
      %1262 = vmatmul.f32.gmra.mxu0 %v436
      %v1263 = vpop.f32.mrf.mxu0
      %v1264 = vadd.f32 0.0, %v1263
      %1265 = vdwg.mxu0
      %v1266 = vadd.f32 %v1240, %v1264
      %v1267 = vadd.f32 %v1266, %v464
      %v1268 = vmax.f32 %v1267, 0.0
      %1270 = vrot.lane.b32.xlu0 %v1268, 1
      %v1271 = vpop.permute.xlu0 %1270
      %1273 = vst.msk [vmem:[#allocation2 + $0x16] sm:$0x3] %vm472, %v1271
      %v1274 = vld [vmem:[%s327 + $0xb] sm:$0x7]
      %1276 = vrot.lane.b32.xlu0 %v1274, 127
      %v1277 = vpop.permute.xlu0 %1276
      %v1278 = vsel %vm385, %v1277, 0
      %1280 = vmatpush.msra.mxu0 0.0
      %1281 = vmatpush.msra.mxu0 0.0
      %1282 = vmatpush.msra.mxu0 0.0
      %1283 = vmatpush.msra.mxu0 0.0
      %1284 = vmatpush.msra.mxu0 0.0
      %1285 = vmatpush.msra.mxu0 0.0
      %1286 = vmatpush.msra.mxu0 0.0
      %1287 = vmatpush.msra.mxu0 0.0
      %1288 = vmatpush.msra.mxu0 0.0
      %1289 = vmatpush.msra.mxu0 0.0
      %1290 = vmatpush.msra.mxu0 0.0
      %1291 = vmatpush.msra.mxu0 0.0
      %1292 = vmatpush.msra.mxu0 0.0
      %1293 = vmatpush.msra.mxu0 0.0
      %1294 = vmatpush.msra.mxu0 0.0
      %1295 = vmatpush.msra.mxu0 %v1278
      %1296 = vmatmul.f32.gmra.mxu0 %v383
      %v1297 = vpop.f32.mrf.mxu0
      %v1298 = vadd.f32 0.0, %v1297
      %1299 = vdwg.mxu0
      %v1300 = vsel %vm385, %v1274, 0
      %1302 = vmatpush.msra.mxu0 0.0
      %1303 = vmatpush.msra.mxu0 0.0
      %1304 = vmatpush.msra.mxu0 0.0
      %1305 = vmatpush.msra.mxu0 0.0
      %1306 = vmatpush.msra.mxu0 0.0
      %1307 = vmatpush.msra.mxu0 0.0
      %1308 = vmatpush.msra.mxu0 0.0
      %1309 = vmatpush.msra.mxu0 0.0
      %1310 = vmatpush.msra.mxu0 0.0
      %1311 = vmatpush.msra.mxu0 0.0
      %1312 = vmatpush.msra.mxu0 0.0
      %1313 = vmatpush.msra.mxu0 0.0
      %1314 = vmatpush.msra.mxu0 0.0
      %1315 = vmatpush.msra.mxu0 0.0
      %1316 = vmatpush.msra.mxu0 0.0
      %1317 = vmatpush.msra.mxu0 %v1300
      %1318 = vmatmul.f32.gmra.mxu0 %v409
      %v1319 = vpop.f32.mrf.mxu0
      %v1320 = vadd.f32 %v1298, %v1319
      %1321 = vdwg.mxu0
      %1322 = vrot.lane.b32.xlu0 %v1274, 126
      %v1323 = vpop.permute.xlu0 %1322
      %v1324 = vsel %vm385, %v1323, 0
      %1326 = vmatpush.msra.mxu0 0.0
      %1327 = vmatpush.msra.mxu0 0.0
      %1328 = vmatpush.msra.mxu0 0.0
      %1329 = vmatpush.msra.mxu0 0.0
      %1330 = vmatpush.msra.mxu0 0.0
      %1331 = vmatpush.msra.mxu0 0.0
      %1332 = vmatpush.msra.mxu0 0.0
      %1333 = vmatpush.msra.mxu0 0.0
      %1334 = vmatpush.msra.mxu0 0.0
      %1335 = vmatpush.msra.mxu0 0.0
      %1336 = vmatpush.msra.mxu0 0.0
      %1337 = vmatpush.msra.mxu0 0.0
      %1338 = vmatpush.msra.mxu0 0.0
      %1339 = vmatpush.msra.mxu0 0.0
      %1340 = vmatpush.msra.mxu0 0.0
      %1341 = vmatpush.msra.mxu0 %v1324
      %1342 = vmatmul.f32.gmra.mxu0 %v436
      %v1343 = vpop.f32.mrf.mxu0
      %v1344 = vadd.f32 0.0, %v1343
      %1345 = vdwg.mxu0
      %v1346 = vadd.f32 %v1320, %v1344
      %v1347 = vadd.f32 %v1346, %v464
      %v1348 = vmax.f32 %v1347, 0.0
      %1350 = vrot.lane.b32.xlu0 %v1348, 1
      %v1351 = vpop.permute.xlu0 %1350
      %1353 = vst.msk [vmem:[#allocation2 + $0x18] sm:$0x3] %vm472, %v1351
      %v1354 = vld [vmem:[%s327 + $0xc] sm:$0x7]
      %1356 = vrot.lane.b32.xlu0 %v1354, 127
      %v1357 = vpop.permute.xlu0 %1356
      %v1358 = vsel %vm385, %v1357, 0
      %1360 = vmatpush.msra.mxu0 0.0
      %1361 = vmatpush.msra.mxu0 0.0
      %1362 = vmatpush.msra.mxu0 0.0
      %1363 = vmatpush.msra.mxu0 0.0
      %1364 = vmatpush.msra.mxu0 0.0
      %1365 = vmatpush.msra.mxu0 0.0
      %1366 = vmatpush.msra.mxu0 0.0
      %1367 = vmatpush.msra.mxu0 0.0
      %1368 = vmatpush.msra.mxu0 0.0
      %1369 = vmatpush.msra.mxu0 0.0
      %1370 = vmatpush.msra.mxu0 0.0
      %1371 = vmatpush.msra.mxu0 0.0
      %1372 = vmatpush.msra.mxu0 0.0
      %1373 = vmatpush.msra.mxu0 0.0
      %1374 = vmatpush.msra.mxu0 0.0
      %1375 = vmatpush.msra.mxu0 %v1358
      %1376 = vmatmul.f32.gmra.mxu0 %v383
      %v1377 = vpop.f32.mrf.mxu0
      %v1378 = vadd.f32 0.0, %v1377
      %1379 = vdwg.mxu0
      %v1380 = vsel %vm385, %v1354, 0
      %1382 = vmatpush.msra.mxu0 0.0
      %1383 = vmatpush.msra.mxu0 0.0
      %1384 = vmatpush.msra.mxu0 0.0
      %1385 = vmatpush.msra.mxu0 0.0
      %1386 = vmatpush.msra.mxu0 0.0
      %1387 = vmatpush.msra.mxu0 0.0
      %1388 = vmatpush.msra.mxu0 0.0
      %1389 = vmatpush.msra.mxu0 0.0
      %1390 = vmatpush.msra.mxu0 0.0
      %1391 = vmatpush.msra.mxu0 0.0
      %1392 = vmatpush.msra.mxu0 0.0
      %1393 = vmatpush.msra.mxu0 0.0
      %1394 = vmatpush.msra.mxu0 0.0
      %1395 = vmatpush.msra.mxu0 0.0
      %1396 = vmatpush.msra.mxu0 0.0
      %1397 = vmatpush.msra.mxu0 %v1380
      %1398 = vmatmul.f32.gmra.mxu0 %v409
      %v1399 = vpop.f32.mrf.mxu0
      %v1400 = vadd.f32 %v1378, %v1399
      %1401 = vdwg.mxu0
      %1402 = vrot.lane.b32.xlu0 %v1354, 126
      %v1403 = vpop.permute.xlu0 %1402
      %v1404 = vsel %vm385, %v1403, 0
      %1406 = vmatpush.msra.mxu0 0.0
      %1407 = vmatpush.msra.mxu0 0.0
      %1408 = vmatpush.msra.mxu0 0.0
      %1409 = vmatpush.msra.mxu0 0.0
      %1410 = vmatpush.msra.mxu0 0.0
      %1411 = vmatpush.msra.mxu0 0.0
      %1412 = vmatpush.msra.mxu0 0.0
      %1413 = vmatpush.msra.mxu0 0.0
      %1414 = vmatpush.msra.mxu0 0.0
      %1415 = vmatpush.msra.mxu0 0.0
      %1416 = vmatpush.msra.mxu0 0.0
      %1417 = vmatpush.msra.mxu0 0.0
      %1418 = vmatpush.msra.mxu0 0.0
      %1419 = vmatpush.msra.mxu0 0.0
      %1420 = vmatpush.msra.mxu0 0.0
      %1421 = vmatpush.msra.mxu0 %v1404
      %1422 = vmatmul.f32.gmra.mxu0 %v436
      %v1423 = vpop.f32.mrf.mxu0
      %v1424 = vadd.f32 0.0, %v1423
      %1425 = vdwg.mxu0
      %v1426 = vadd.f32 %v1400, %v1424
      %v1427 = vadd.f32 %v1426, %v464
      %v1428 = vmax.f32 %v1427, 0.0
      %1430 = vrot.lane.b32.xlu0 %v1428, 1
      %v1431 = vpop.permute.xlu0 %1430
      %1433 = vst.msk [vmem:[#allocation2 + $0x1a] sm:$0x3] %vm472, %v1431
      %v1434 = vld [vmem:[%s327 + $0xd] sm:$0x7]
      %1436 = vrot.lane.b32.xlu0 %v1434, 127
      %v1437 = vpop.permute.xlu0 %1436
      %v1438 = vsel %vm385, %v1437, 0
      %1440 = vmatpush.msra.mxu0 0.0
      %1441 = vmatpush.msra.mxu0 0.0
      %1442 = vmatpush.msra.mxu0 0.0
      %1443 = vmatpush.msra.mxu0 0.0
      %1444 = vmatpush.msra.mxu0 0.0
      %1445 = vmatpush.msra.mxu0 0.0
      %1446 = vmatpush.msra.mxu0 0.0
      %1447 = vmatpush.msra.mxu0 0.0
      %1448 = vmatpush.msra.mxu0 0.0
      %1449 = vmatpush.msra.mxu0 0.0
      %1450 = vmatpush.msra.mxu0 0.0
      %1451 = vmatpush.msra.mxu0 0.0
      %1452 = vmatpush.msra.mxu0 0.0
      %1453 = vmatpush.msra.mxu0 0.0
      %1454 = vmatpush.msra.mxu0 0.0
      %1455 = vmatpush.msra.mxu0 %v1438
      %1456 = vmatmul.f32.gmra.mxu0 %v383
      %v1457 = vpop.f32.mrf.mxu0
      %v1458 = vadd.f32 0.0, %v1457
      %1459 = vdwg.mxu0
      %v1460 = vsel %vm385, %v1434, 0
      %1462 = vmatpush.msra.mxu0 0.0
      %1463 = vmatpush.msra.mxu0 0.0
      %1464 = vmatpush.msra.mxu0 0.0
      %1465 = vmatpush.msra.mxu0 0.0
      %1466 = vmatpush.msra.mxu0 0.0
      %1467 = vmatpush.msra.mxu0 0.0
      %1468 = vmatpush.msra.mxu0 0.0
      %1469 = vmatpush.msra.mxu0 0.0
      %1470 = vmatpush.msra.mxu0 0.0
      %1471 = vmatpush.msra.mxu0 0.0
      %1472 = vmatpush.msra.mxu0 0.0
      %1473 = vmatpush.msra.mxu0 0.0
      %1474 = vmatpush.msra.mxu0 0.0
      %1475 = vmatpush.msra.mxu0 0.0
      %1476 = vmatpush.msra.mxu0 0.0
      %1477 = vmatpush.msra.mxu0 %v1460
      %1478 = vmatmul.f32.gmra.mxu0 %v409
      %v1479 = vpop.f32.mrf.mxu0
      %v1480 = vadd.f32 %v1458, %v1479
      %1481 = vdwg.mxu0
      %1482 = vrot.lane.b32.xlu0 %v1434, 126
      %v1483 = vpop.permute.xlu0 %1482
      %v1484 = vsel %vm385, %v1483, 0
      %1486 = vmatpush.msra.mxu0 0.0
      %1487 = vmatpush.msra.mxu0 0.0
      %1488 = vmatpush.msra.mxu0 0.0
      %1489 = vmatpush.msra.mxu0 0.0
      %1490 = vmatpush.msra.mxu0 0.0
      %1491 = vmatpush.msra.mxu0 0.0
      %1492 = vmatpush.msra.mxu0 0.0
      %1493 = vmatpush.msra.mxu0 0.0
      %1494 = vmatpush.msra.mxu0 0.0
      %1495 = vmatpush.msra.mxu0 0.0
      %1496 = vmatpush.msra.mxu0 0.0
      %1497 = vmatpush.msra.mxu0 0.0
      %1498 = vmatpush.msra.mxu0 0.0
      %1499 = vmatpush.msra.mxu0 0.0
      %1500 = vmatpush.msra.mxu0 0.0
      %1501 = vmatpush.msra.mxu0 %v1484
      %1502 = vmatmul.f32.gmra.mxu0 %v436
      %v1503 = vpop.f32.mrf.mxu0
      %v1504 = vadd.f32 0.0, %v1503
      %1505 = vdwg.mxu0
      %v1506 = vadd.f32 %v1480, %v1504
      %v1507 = vadd.f32 %v1506, %v464
      %v1508 = vmax.f32 %v1507, 0.0
      %1510 = vrot.lane.b32.xlu0 %v1508, 1
      %v1511 = vpop.permute.xlu0 %1510
      %1513 = vst.msk [vmem:[#allocation2 + $0x1c] sm:$0x3] %vm472, %v1511
      %v1514 = vld [vmem:[%s327 + $0xe] sm:$0x7]
      %1516 = vrot.lane.b32.xlu0 %v1514, 127
      %v1517 = vpop.permute.xlu0 %1516
      %v1518 = vsel %vm385, %v1517, 0
      %1520 = vmatpush.msra.mxu0 0.0
      %1521 = vmatpush.msra.mxu0 0.0
      %1522 = vmatpush.msra.mxu0 0.0
      %1523 = vmatpush.msra.mxu0 0.0
      %1524 = vmatpush.msra.mxu0 0.0
      %1525 = vmatpush.msra.mxu0 0.0
      %1526 = vmatpush.msra.mxu0 0.0
      %1527 = vmatpush.msra.mxu0 0.0
      %1528 = vmatpush.msra.mxu0 0.0
      %1529 = vmatpush.msra.mxu0 0.0
      %1530 = vmatpush.msra.mxu0 0.0
      %1531 = vmatpush.msra.mxu0 0.0
      %1532 = vmatpush.msra.mxu0 0.0
      %1533 = vmatpush.msra.mxu0 0.0
      %1534 = vmatpush.msra.mxu0 0.0
      %1535 = vmatpush.msra.mxu0 %v1518
      %1536 = vmatmul.f32.gmra.mxu0 %v383
      %v1537 = vpop.f32.mrf.mxu0
      %v1538 = vadd.f32 0.0, %v1537
      %1539 = vdwg.mxu0
      %v1540 = vsel %vm385, %v1514, 0
      %1542 = vmatpush.msra.mxu0 0.0
      %1543 = vmatpush.msra.mxu0 0.0
      %1544 = vmatpush.msra.mxu0 0.0
      %1545 = vmatpush.msra.mxu0 0.0
      %1546 = vmatpush.msra.mxu0 0.0
      %1547 = vmatpush.msra.mxu0 0.0
      %1548 = vmatpush.msra.mxu0 0.0
      %1549 = vmatpush.msra.mxu0 0.0
      %1550 = vmatpush.msra.mxu0 0.0
      %1551 = vmatpush.msra.mxu0 0.0
      %1552 = vmatpush.msra.mxu0 0.0
      %1553 = vmatpush.msra.mxu0 0.0
      %1554 = vmatpush.msra.mxu0 0.0
      %1555 = vmatpush.msra.mxu0 0.0
      %1556 = vmatpush.msra.mxu0 0.0
      %1557 = vmatpush.msra.mxu0 %v1540
      %1558 = vmatmul.f32.gmra.mxu0 %v409
      %v1559 = vpop.f32.mrf.mxu0
      %v1560 = vadd.f32 %v1538, %v1559
      %1561 = vdwg.mxu0
      %1562 = vrot.lane.b32.xlu0 %v1514, 126
      %v1563 = vpop.permute.xlu0 %1562
      %v1564 = vsel %vm385, %v1563, 0
      %1566 = vmatpush.msra.mxu0 0.0
      %1567 = vmatpush.msra.mxu0 0.0
      %1568 = vmatpush.msra.mxu0 0.0
      %1569 = vmatpush.msra.mxu0 0.0
      %1570 = vmatpush.msra.mxu0 0.0
      %1571 = vmatpush.msra.mxu0 0.0
      %1572 = vmatpush.msra.mxu0 0.0
      %1573 = vmatpush.msra.mxu0 0.0
      %1574 = vmatpush.msra.mxu0 0.0
      %1575 = vmatpush.msra.mxu0 0.0
      %1576 = vmatpush.msra.mxu0 0.0
      %1577 = vmatpush.msra.mxu0 0.0
      %1578 = vmatpush.msra.mxu0 0.0
      %1579 = vmatpush.msra.mxu0 0.0
      %1580 = vmatpush.msra.mxu0 0.0
      %1581 = vmatpush.msra.mxu0 %v1564
      %1582 = vmatmul.f32.gmra.mxu0 %v436
      %v1583 = vpop.f32.mrf.mxu0
      %v1584 = vadd.f32 0.0, %v1583
      %1585 = vdwg.mxu0
      %v1586 = vadd.f32 %v1560, %v1584
      %v1587 = vadd.f32 %v1586, %v464
      %v1588 = vmax.f32 %v1587, 0.0
      %1590 = vrot.lane.b32.xlu0 %v1588, 1
      %v1591 = vpop.permute.xlu0 %1590
      %1593 = vst.msk [vmem:[#allocation2 + $0x1e] sm:$0x3] %vm472, %v1591
      %v1594 = vld [vmem:[%s327 + $0xf] sm:$0x7]
      %1596 = vrot.lane.b32.xlu0 %v1594, 127
      %v1597 = vpop.permute.xlu0 %1596
      %v1598 = vsel %vm385, %v1597, 0
      %1600 = vmatpush.msra.mxu0 0.0
      %1601 = vmatpush.msra.mxu0 0.0
      %1602 = vmatpush.msra.mxu0 0.0
      %1603 = vmatpush.msra.mxu0 0.0
      %1604 = vmatpush.msra.mxu0 0.0
      %1605 = vmatpush.msra.mxu0 0.0
      %1606 = vmatpush.msra.mxu0 0.0
      %1607 = vmatpush.msra.mxu0 0.0
      %1608 = vmatpush.msra.mxu0 0.0
      %1609 = vmatpush.msra.mxu0 0.0
      %1610 = vmatpush.msra.mxu0 0.0
      %1611 = vmatpush.msra.mxu0 0.0
      %1612 = vmatpush.msra.mxu0 0.0
      %1613 = vmatpush.msra.mxu0 0.0
      %1614 = vmatpush.msra.mxu0 0.0
      %1615 = vmatpush.msra.mxu0 %v1598
      %1616 = vmatmul.f32.gmra.mxu0 %v383
      %v1617 = vpop.f32.mrf.mxu0
      %v1618 = vadd.f32 0.0, %v1617
      %1619 = vdwg.mxu0
      %v1620 = vsel %vm385, %v1594, 0
      %1622 = vmatpush.msra.mxu0 0.0
      %1623 = vmatpush.msra.mxu0 0.0
      %1624 = vmatpush.msra.mxu0 0.0
      %1625 = vmatpush.msra.mxu0 0.0
      %1626 = vmatpush.msra.mxu0 0.0
      %1627 = vmatpush.msra.mxu0 0.0
      %1628 = vmatpush.msra.mxu0 0.0
      %1629 = vmatpush.msra.mxu0 0.0
      %1630 = vmatpush.msra.mxu0 0.0
      %1631 = vmatpush.msra.mxu0 0.0
      %1632 = vmatpush.msra.mxu0 0.0
      %1633 = vmatpush.msra.mxu0 0.0
      %1634 = vmatpush.msra.mxu0 0.0
      %1635 = vmatpush.msra.mxu0 0.0
      %1636 = vmatpush.msra.mxu0 0.0
      %1637 = vmatpush.msra.mxu0 %v1620
      %1638 = vmatmul.f32.gmra.mxu0 %v409
      %v1639 = vpop.f32.mrf.mxu0
      %v1640 = vadd.f32 %v1618, %v1639
      %1641 = vdwg.mxu0
      %1642 = vrot.lane.b32.xlu0 %v1594, 126
      %v1643 = vpop.permute.xlu0 %1642
      %v1644 = vsel %vm385, %v1643, 0
      %1646 = vmatpush.msra.mxu0 0.0
      %1647 = vmatpush.msra.mxu0 0.0
      %1648 = vmatpush.msra.mxu0 0.0
      %1649 = vmatpush.msra.mxu0 0.0
      %1650 = vmatpush.msra.mxu0 0.0
      %1651 = vmatpush.msra.mxu0 0.0
      %1652 = vmatpush.msra.mxu0 0.0
      %1653 = vmatpush.msra.mxu0 0.0
      %1654 = vmatpush.msra.mxu0 0.0
      %1655 = vmatpush.msra.mxu0 0.0
      %1656 = vmatpush.msra.mxu0 0.0
      %1657 = vmatpush.msra.mxu0 0.0
      %1658 = vmatpush.msra.mxu0 0.0
      %1659 = vmatpush.msra.mxu0 0.0
      %1660 = vmatpush.msra.mxu0 0.0
      %1661 = vmatpush.msra.mxu0 %v1644
      %1662 = vmatmul.f32.gmra.mxu0 %v436
      %v1663 = vpop.f32.mrf.mxu0
      %v1664 = vadd.f32 0.0, %v1663
      %1665 = vdwg.mxu0
      %v1666 = vadd.f32 %v1640, %v1664
      %v1667 = vadd.f32 %v1666, %v464
      %v1668 = vmax.f32 %v1667, 0.0
      %1670 = vrot.lane.b32.xlu0 %v1668, 1
      %v1671 = vpop.permute.xlu0 %1670
      %1673 = vst.msk [vmem:[#allocation2 + $0x20] sm:$0x3] %vm472, %v1671
      %v1674 = vld [vmem:[#allocation2] sm:$0x3f]
      %v1675 = vpack.c.bf16 %v1674, %v1674
      %v1677 = vunpack.c.l.b16 %v1675
      %v1678 = vpack.c.b16 %v1677, %v1677
      %1679 = vrot.lane.b32.xlu0 %v1678, 127
      %v1680 = vpop.permute.xlu0 %1679
      %vm1681 = vcmask 48128
      %v1683 = vsel %vm1681, %v366, 0
      %v1686 = vsel %vm385, %v1680, 0
      %1688 = vmatpush.bf16.msra.mxu0 0
      %1689 = vmatpush.bf16.msra.mxu0 0
      %1690 = vmatpush.bf16.msra.mxu0 0
      %1691 = vmatpush.bf16.msra.mxu0 0
      %1692 = vmatpush.bf16.msra.mxu0 0
      %1693 = vmatpush.bf16.msra.mxu0 0
      %1694 = vmatpush.bf16.msra.mxu0 0
      %1695 = vmatpush.bf16.msra.mxu0 %v1686
      %1696 = vmatmul.bf16.gmra.mxu0 %v1683
      %v1697 = vpop.f32.mrf.mxu0
      %v1698 = vadd.f32 0.0, %v1697
      %v1699 = vpop.f32.mrf.mxu0
      %1700 = vdwg.mxu0
      %v1702 = vsel %vm1681, %v364, 0
      %v1705 = vsel %vm385, %v1675, 0
      %1707 = vmatpush.bf16.msra.mxu0 0
      %1708 = vmatpush.bf16.msra.mxu0 0
      %1709 = vmatpush.bf16.msra.mxu0 0
      %1710 = vmatpush.bf16.msra.mxu0 0
      %1711 = vmatpush.bf16.msra.mxu0 0
      %1712 = vmatpush.bf16.msra.mxu0 0
      %1713 = vmatpush.bf16.msra.mxu0 0
      %1714 = vmatpush.bf16.msra.mxu0 %v1705
      %1715 = vmatmul.bf16.gmra.mxu0 %v1702
      %v1716 = vpop.f32.mrf.mxu0
      %v1717 = vadd.f32 %v1698, %v1716
      %v1718 = vpop.f32.mrf.mxu0
      %1719 = vdwg.mxu0
      %1720 = vrot.lane.b32.xlu0 %v1678, 126
      %v1721 = vpop.permute.xlu0 %1720
      %v1723 = vsel %vm1681, %v368, 0
      %v1726 = vsel %vm385, %v1721, 0
      %1728 = vmatpush.bf16.msra.mxu0 0
      %1729 = vmatpush.bf16.msra.mxu0 0
      %1730 = vmatpush.bf16.msra.mxu0 0
      %1731 = vmatpush.bf16.msra.mxu0 0
      %1732 = vmatpush.bf16.msra.mxu0 0
      %1733 = vmatpush.bf16.msra.mxu0 0
      %1734 = vmatpush.bf16.msra.mxu0 0
      %1735 = vmatpush.bf16.msra.mxu0 %v1726
      %1736 = vmatmul.bf16.gmra.mxu0 %v1723
      %v1737 = vpop.f32.mrf.mxu0
      %v1738 = vadd.f32 0.0, %v1737
      %v1739 = vpop.f32.mrf.mxu0
      %1740 = vdwg.mxu0
      %v1741 = vadd.f32 %v1717, %v1738
      %v1742 = vld [vmem:[#allocation2 + $0x2] sm:$0x3f]
      %v1743 = vpack.c.bf16 %v1742, %v1742
      %v1745 = vunpack.c.l.b16 %v1743
      %v1746 = vpack.c.b16 %v1745, %v1745
      %1747 = vrot.lane.b32.xlu0 %v1746, 127
      %v1748 = vpop.permute.xlu0 %1747
      %v1750 = vsel %vm385, %v1748, 0
      %1752 = vmatpush.bf16.msra.mxu0 0
      %1753 = vmatpush.bf16.msra.mxu0 0
      %1754 = vmatpush.bf16.msra.mxu0 0
      %1755 = vmatpush.bf16.msra.mxu0 0
      %1756 = vmatpush.bf16.msra.mxu0 0
      %1757 = vmatpush.bf16.msra.mxu0 0
      %1758 = vmatpush.bf16.msra.mxu0 0
      %1759 = vmatpush.bf16.msra.mxu0 %v1750
      %1760 = vmatmul.bf16.gmra.mxu0 %v1683
      %v1761 = vpop.f32.mrf.mxu0
      %v1762 = vadd.f32 0.0, %v1761
      %v1763 = vpop.f32.mrf.mxu0
      %1764 = vdwg.mxu0
      %v1766 = vsel %vm385, %v1743, 0
      %1768 = vmatpush.bf16.msra.mxu0 0
      %1769 = vmatpush.bf16.msra.mxu0 0
      %1770 = vmatpush.bf16.msra.mxu0 0
      %1771 = vmatpush.bf16.msra.mxu0 0
      %1772 = vmatpush.bf16.msra.mxu0 0
      %1773 = vmatpush.bf16.msra.mxu0 0
      %1774 = vmatpush.bf16.msra.mxu0 0
      %1775 = vmatpush.bf16.msra.mxu0 %v1766
      %1776 = vmatmul.bf16.gmra.mxu0 %v1702
      %v1777 = vpop.f32.mrf.mxu0
      %v1778 = vadd.f32 %v1762, %v1777
      %v1779 = vpop.f32.mrf.mxu0
      %1780 = vdwg.mxu0
      %1781 = vrot.lane.b32.xlu0 %v1746, 126
      %v1782 = vpop.permute.xlu0 %1781
      %v1784 = vsel %vm385, %v1782, 0
      %1786 = vmatpush.bf16.msra.mxu0 0
      %1787 = vmatpush.bf16.msra.mxu0 0
      %1788 = vmatpush.bf16.msra.mxu0 0
      %1789 = vmatpush.bf16.msra.mxu0 0
      %1790 = vmatpush.bf16.msra.mxu0 0
      %1791 = vmatpush.bf16.msra.mxu0 0
      %1792 = vmatpush.bf16.msra.mxu0 0
      %1793 = vmatpush.bf16.msra.mxu0 %v1784
      %1794 = vmatmul.bf16.gmra.mxu0 %v1723
      %v1795 = vpop.f32.mrf.mxu0
      %v1796 = vadd.f32 0.0, %v1795
      %v1797 = vpop.f32.mrf.mxu0
      %1798 = vdwg.mxu0
      %v1799 = vadd.f32 %v1778, %v1796
      %v1800 = vmax.f32 %v1741, %v1799
      %1802 = vset.pattern.permute.xlu0 0
      %1803 = vperm.xlu0 %1802, %v375
      %v1804 = vpop.permute.xlu0 %1803
      %v1806 = vadd.f32 %v1800, %v1804
      %v1807 = vmax.f32 %v1806, 0.0
      %1809 = vrot.lane.b32.xlu0 %v1807, 1
      %v1810 = vpop.permute.xlu0 %1809
      %1812 = vst.msk [vmem:[#allocation3 + $0x2] sm:$0x3] %vm472, %v1810
      %v1813 = vld [vmem:[#allocation2 + $0x4] sm:$0x3f]
      %v1814 = vpack.c.bf16 %v1813, %v1813
      %v1816 = vunpack.c.l.b16 %v1814
      %v1817 = vpack.c.b16 %v1816, %v1816
      %1818 = vrot.lane.b32.xlu0 %v1817, 127
      %v1819 = vpop.permute.xlu0 %1818
      %v1821 = vsel %vm385, %v1819, 0
      %1823 = vmatpush.bf16.msra.mxu0 0
      %1824 = vmatpush.bf16.msra.mxu0 0
      %1825 = vmatpush.bf16.msra.mxu0 0
      %1826 = vmatpush.bf16.msra.mxu0 0
      %1827 = vmatpush.bf16.msra.mxu0 0
      %1828 = vmatpush.bf16.msra.mxu0 0
      %1829 = vmatpush.bf16.msra.mxu0 0
      %1830 = vmatpush.bf16.msra.mxu0 %v1821
      %1831 = vmatmul.bf16.gmra.mxu0 %v1683
      %v1832 = vpop.f32.mrf.mxu0
      %v1833 = vadd.f32 0.0, %v1832
      %v1834 = vpop.f32.mrf.mxu0
      %1835 = vdwg.mxu0
      %v1837 = vsel %vm385, %v1814, 0
      %1839 = vmatpush.bf16.msra.mxu0 0
      %1840 = vmatpush.bf16.msra.mxu0 0
      %1841 = vmatpush.bf16.msra.mxu0 0
      %1842 = vmatpush.bf16.msra.mxu0 0
      %1843 = vmatpush.bf16.msra.mxu0 0
      %1844 = vmatpush.bf16.msra.mxu0 0
      %1845 = vmatpush.bf16.msra.mxu0 0
      %1846 = vmatpush.bf16.msra.mxu0 %v1837
      %1847 = vmatmul.bf16.gmra.mxu0 %v1702
      %v1848 = vpop.f32.mrf.mxu0
      %v1849 = vadd.f32 %v1833, %v1848
      %v1850 = vpop.f32.mrf.mxu0
      %1851 = vdwg.mxu0
      %1852 = vrot.lane.b32.xlu0 %v1817, 126
      %v1853 = vpop.permute.xlu0 %1852
      %v1855 = vsel %vm385, %v1853, 0
      %1857 = vmatpush.bf16.msra.mxu0 0
      %1858 = vmatpush.bf16.msra.mxu0 0
      %1859 = vmatpush.bf16.msra.mxu0 0
      %1860 = vmatpush.bf16.msra.mxu0 0
      %1861 = vmatpush.bf16.msra.mxu0 0
      %1862 = vmatpush.bf16.msra.mxu0 0
      %1863 = vmatpush.bf16.msra.mxu0 0
      %1864 = vmatpush.bf16.msra.mxu0 %v1855
      %1865 = vmatmul.bf16.gmra.mxu0 %v1723
      %v1866 = vpop.f32.mrf.mxu0
      %v1867 = vadd.f32 0.0, %v1866
      %v1868 = vpop.f32.mrf.mxu0
      %1869 = vdwg.mxu0
      %v1870 = vadd.f32 %v1849, %v1867
      %v1871 = vld [vmem:[#allocation2 + $0x6] sm:$0x3f]
      %v1872 = vpack.c.bf16 %v1871, %v1871
      %v1874 = vunpack.c.l.b16 %v1872
      %v1875 = vpack.c.b16 %v1874, %v1874
      %1876 = vrot.lane.b32.xlu0 %v1875, 127
      %v1877 = vpop.permute.xlu0 %1876
      %v1879 = vsel %vm385, %v1877, 0
      %1881 = vmatpush.bf16.msra.mxu0 0
      %1882 = vmatpush.bf16.msra.mxu0 0
      %1883 = vmatpush.bf16.msra.mxu0 0
      %1884 = vmatpush.bf16.msra.mxu0 0
      %1885 = vmatpush.bf16.msra.mxu0 0
      %1886 = vmatpush.bf16.msra.mxu0 0
      %1887 = vmatpush.bf16.msra.mxu0 0
      %1888 = vmatpush.bf16.msra.mxu0 %v1879
      %1889 = vmatmul.bf16.gmra.mxu0 %v1683
      %v1890 = vpop.f32.mrf.mxu0
      %v1891 = vadd.f32 0.0, %v1890
      %v1892 = vpop.f32.mrf.mxu0
      %1893 = vdwg.mxu0
      %v1895 = vsel %vm385, %v1872, 0
      %1897 = vmatpush.bf16.msra.mxu0 0
      %1898 = vmatpush.bf16.msra.mxu0 0
      %1899 = vmatpush.bf16.msra.mxu0 0
      %1900 = vmatpush.bf16.msra.mxu0 0
      %1901 = vmatpush.bf16.msra.mxu0 0
      %1902 = vmatpush.bf16.msra.mxu0 0
      %1903 = vmatpush.bf16.msra.mxu0 0
      %1904 = vmatpush.bf16.msra.mxu0 %v1895
      %1905 = vmatmul.bf16.gmra.mxu0 %v1702
      %v1906 = vpop.f32.mrf.mxu0
      %v1907 = vadd.f32 %v1891, %v1906
      %v1908 = vpop.f32.mrf.mxu0
      %1909 = vdwg.mxu0
      %1910 = vrot.lane.b32.xlu0 %v1875, 126
      %v1911 = vpop.permute.xlu0 %1910
      %v1913 = vsel %vm385, %v1911, 0
      %1915 = vmatpush.bf16.msra.mxu0 0
      %1916 = vmatpush.bf16.msra.mxu0 0
      %1917 = vmatpush.bf16.msra.mxu0 0
      %1918 = vmatpush.bf16.msra.mxu0 0
      %1919 = vmatpush.bf16.msra.mxu0 0
      %1920 = vmatpush.bf16.msra.mxu0 0
      %1921 = vmatpush.bf16.msra.mxu0 0
      %1922 = vmatpush.bf16.msra.mxu0 %v1913
      %1923 = vmatmul.bf16.gmra.mxu0 %v1723
      %v1924 = vpop.f32.mrf.mxu0
      %v1925 = vadd.f32 0.0, %v1924
      %v1926 = vpop.f32.mrf.mxu0
      %1927 = vdwg.mxu0
      %v1928 = vadd.f32 %v1907, %v1925
      %v1929 = vmax.f32 %v1870, %v1928
      %v1930 = vadd.f32 %v1929, %v1804
      %v1931 = vmax.f32 %v1930, 0.0
      %1933 = vrot.lane.b32.xlu0 %v1931, 1
      %v1934 = vpop.permute.xlu0 %1933
      %1936 = vst.msk [vmem:[#allocation3 + $0x4] sm:$0x3] %vm472, %v1934
      %v1937 = vld [vmem:[#allocation2 + $0x8] sm:$0x3f]
      %v1938 = vpack.c.bf16 %v1937, %v1937
      %v1940 = vunpack.c.l.b16 %v1938
      %v1941 = vpack.c.b16 %v1940, %v1940
      %1942 = vrot.lane.b32.xlu0 %v1941, 127
      %v1943 = vpop.permute.xlu0 %1942
      %v1945 = vsel %vm385, %v1943, 0
      %1947 = vmatpush.bf16.msra.mxu0 0
      %1948 = vmatpush.bf16.msra.mxu0 0
      %1949 = vmatpush.bf16.msra.mxu0 0
      %1950 = vmatpush.bf16.msra.mxu0 0
      %1951 = vmatpush.bf16.msra.mxu0 0
      %1952 = vmatpush.bf16.msra.mxu0 0
      %1953 = vmatpush.bf16.msra.mxu0 0
      %1954 = vmatpush.bf16.msra.mxu0 %v1945
      %1955 = vmatmul.bf16.gmra.mxu0 %v1683
      %v1956 = vpop.f32.mrf.mxu0
      %v1957 = vadd.f32 0.0, %v1956
      %v1958 = vpop.f32.mrf.mxu0
      %1959 = vdwg.mxu0
      %v1961 = vsel %vm385, %v1938, 0
      %1963 = vmatpush.bf16.msra.mxu0 0
      %1964 = vmatpush.bf16.msra.mxu0 0
      %1965 = vmatpush.bf16.msra.mxu0 0
      %1966 = vmatpush.bf16.msra.mxu0 0
      %1967 = vmatpush.bf16.msra.mxu0 0
      %1968 = vmatpush.bf16.msra.mxu0 0
      %1969 = vmatpush.bf16.msra.mxu0 0
      %1970 = vmatpush.bf16.msra.mxu0 %v1961
      %1971 = vmatmul.bf16.gmra.mxu0 %v1702
      %v1972 = vpop.f32.mrf.mxu0
      %v1973 = vadd.f32 %v1957, %v1972
      %v1974 = vpop.f32.mrf.mxu0
      %1975 = vdwg.mxu0
      %1976 = vrot.lane.b32.xlu0 %v1941, 126
      %v1977 = vpop.permute.xlu0 %1976
      %v1979 = vsel %vm385, %v1977, 0
      %1981 = vmatpush.bf16.msra.mxu0 0
      %1982 = vmatpush.bf16.msra.mxu0 0
      %1983 = vmatpush.bf16.msra.mxu0 0
      %1984 = vmatpush.bf16.msra.mxu0 0
      %1985 = vmatpush.bf16.msra.mxu0 0
      %1986 = vmatpush.bf16.msra.mxu0 0
      %1987 = vmatpush.bf16.msra.mxu0 0
      %1988 = vmatpush.bf16.msra.mxu0 %v1979
      %1989 = vmatmul.bf16.gmra.mxu0 %v1723
      %v1990 = vpop.f32.mrf.mxu0
      %v1991 = vadd.f32 0.0, %v1990
      %v1992 = vpop.f32.mrf.mxu0
      %1993 = vdwg.mxu0
      %v1994 = vadd.f32 %v1973, %v1991
      %v1995 = vld [vmem:[#allocation2 + $0xa] sm:$0x3f]
      %v1996 = vpack.c.bf16 %v1995, %v1995
      %v1998 = vunpack.c.l.b16 %v1996
      %v1999 = vpack.c.b16 %v1998, %v1998
      %2000 = vrot.lane.b32.xlu0 %v1999, 127
      %v2001 = vpop.permute.xlu0 %2000
      %v2003 = vsel %vm385, %v2001, 0
      %2005 = vmatpush.bf16.msra.mxu0 0
      %2006 = vmatpush.bf16.msra.mxu0 0
      %2007 = vmatpush.bf16.msra.mxu0 0
      %2008 = vmatpush.bf16.msra.mxu0 0
      %2009 = vmatpush.bf16.msra.mxu0 0
      %2010 = vmatpush.bf16.msra.mxu0 0
      %2011 = vmatpush.bf16.msra.mxu0 0
      %2012 = vmatpush.bf16.msra.mxu0 %v2003
      %2013 = vmatmul.bf16.gmra.mxu0 %v1683
      %v2014 = vpop.f32.mrf.mxu0
      %v2015 = vadd.f32 0.0, %v2014
      %v2016 = vpop.f32.mrf.mxu0
      %2017 = vdwg.mxu0
      %v2019 = vsel %vm385, %v1996, 0
      %2021 = vmatpush.bf16.msra.mxu0 0
      %2022 = vmatpush.bf16.msra.mxu0 0
      %2023 = vmatpush.bf16.msra.mxu0 0
      %2024 = vmatpush.bf16.msra.mxu0 0
      %2025 = vmatpush.bf16.msra.mxu0 0
      %2026 = vmatpush.bf16.msra.mxu0 0
      %2027 = vmatpush.bf16.msra.mxu0 0
      %2028 = vmatpush.bf16.msra.mxu0 %v2019
      %2029 = vmatmul.bf16.gmra.mxu0 %v1702
      %v2030 = vpop.f32.mrf.mxu0
      %v2031 = vadd.f32 %v2015, %v2030
      %v2032 = vpop.f32.mrf.mxu0
      %2033 = vdwg.mxu0
      %2034 = vrot.lane.b32.xlu0 %v1999, 126
      %v2035 = vpop.permute.xlu0 %2034
      %v2037 = vsel %vm385, %v2035, 0
      %2039 = vmatpush.bf16.msra.mxu0 0
      %2040 = vmatpush.bf16.msra.mxu0 0
      %2041 = vmatpush.bf16.msra.mxu0 0
      %2042 = vmatpush.bf16.msra.mxu0 0
      %2043 = vmatpush.bf16.msra.mxu0 0
      %2044 = vmatpush.bf16.msra.mxu0 0
      %2045 = vmatpush.bf16.msra.mxu0 0
      %2046 = vmatpush.bf16.msra.mxu0 %v2037
      %2047 = vmatmul.bf16.gmra.mxu0 %v1723
      %v2048 = vpop.f32.mrf.mxu0
      %v2049 = vadd.f32 0.0, %v2048
      %v2050 = vpop.f32.mrf.mxu0
      %2051 = vdwg.mxu0
      %v2052 = vadd.f32 %v2031, %v2049
      %v2053 = vmax.f32 %v1994, %v2052
      %v2054 = vadd.f32 %v2053, %v1804
      %v2055 = vmax.f32 %v2054, 0.0
      %2057 = vrot.lane.b32.xlu0 %v2055, 1
      %v2058 = vpop.permute.xlu0 %2057
      %2060 = vst.msk [vmem:[#allocation3 + $0x6] sm:$0x3] %vm472, %v2058
      %v2061 = vld [vmem:[#allocation2 + $0xc] sm:$0x3f]
      %v2062 = vpack.c.bf16 %v2061, %v2061
      %v2064 = vunpack.c.l.b16 %v2062
      %v2065 = vpack.c.b16 %v2064, %v2064
      %2066 = vrot.lane.b32.xlu0 %v2065, 127
      %v2067 = vpop.permute.xlu0 %2066
      %v2069 = vsel %vm385, %v2067, 0
      %2071 = vmatpush.bf16.msra.mxu0 0
      %2072 = vmatpush.bf16.msra.mxu0 0
      %2073 = vmatpush.bf16.msra.mxu0 0
      %2074 = vmatpush.bf16.msra.mxu0 0
      %2075 = vmatpush.bf16.msra.mxu0 0
      %2076 = vmatpush.bf16.msra.mxu0 0
      %2077 = vmatpush.bf16.msra.mxu0 0
      %2078 = vmatpush.bf16.msra.mxu0 %v2069
      %2079 = vmatmul.bf16.gmra.mxu0 %v1683
      %v2080 = vpop.f32.mrf.mxu0
      %v2081 = vadd.f32 0.0, %v2080
      %v2082 = vpop.f32.mrf.mxu0
      %2083 = vdwg.mxu0
      %v2085 = vsel %vm385, %v2062, 0
      %2087 = vmatpush.bf16.msra.mxu0 0
      %2088 = vmatpush.bf16.msra.mxu0 0
      %2089 = vmatpush.bf16.msra.mxu0 0
      %2090 = vmatpush.bf16.msra.mxu0 0
      %2091 = vmatpush.bf16.msra.mxu0 0
      %2092 = vmatpush.bf16.msra.mxu0 0
      %2093 = vmatpush.bf16.msra.mxu0 0
      %2094 = vmatpush.bf16.msra.mxu0 %v2085
      %2095 = vmatmul.bf16.gmra.mxu0 %v1702
      %v2096 = vpop.f32.mrf.mxu0
      %v2097 = vadd.f32 %v2081, %v2096
      %v2098 = vpop.f32.mrf.mxu0
      %2099 = vdwg.mxu0
      %2100 = vrot.lane.b32.xlu0 %v2065, 126
      %v2101 = vpop.permute.xlu0 %2100
      %v2103 = vsel %vm385, %v2101, 0
      %2105 = vmatpush.bf16.msra.mxu0 0
      %2106 = vmatpush.bf16.msra.mxu0 0
      %2107 = vmatpush.bf16.msra.mxu0 0
      %2108 = vmatpush.bf16.msra.mxu0 0
      %2109 = vmatpush.bf16.msra.mxu0 0
      %2110 = vmatpush.bf16.msra.mxu0 0
      %2111 = vmatpush.bf16.msra.mxu0 0
      %2112 = vmatpush.bf16.msra.mxu0 %v2103
      %2113 = vmatmul.bf16.gmra.mxu0 %v1723
      %v2114 = vpop.f32.mrf.mxu0
      %v2115 = vadd.f32 0.0, %v2114
      %v2116 = vpop.f32.mrf.mxu0
      %2117 = vdwg.mxu0
      %v2118 = vadd.f32 %v2097, %v2115
      %v2119 = vld [vmem:[#allocation2 + $0xe] sm:$0x3f]
      %v2120 = vpack.c.bf16 %v2119, %v2119
      %v2122 = vunpack.c.l.b16 %v2120
      %v2123 = vpack.c.b16 %v2122, %v2122
      %2124 = vrot.lane.b32.xlu0 %v2123, 127
      %v2125 = vpop.permute.xlu0 %2124
      %v2127 = vsel %vm385, %v2125, 0
      %2129 = vmatpush.bf16.msra.mxu0 0
      %2130 = vmatpush.bf16.msra.mxu0 0
      %2131 = vmatpush.bf16.msra.mxu0 0
      %2132 = vmatpush.bf16.msra.mxu0 0
      %2133 = vmatpush.bf16.msra.mxu0 0
      %2134 = vmatpush.bf16.msra.mxu0 0
      %2135 = vmatpush.bf16.msra.mxu0 0
      %2136 = vmatpush.bf16.msra.mxu0 %v2127
      %2137 = vmatmul.bf16.gmra.mxu0 %v1683
      %v2138 = vpop.f32.mrf.mxu0
      %v2139 = vadd.f32 0.0, %v2138
      %v2140 = vpop.f32.mrf.mxu0
      %2141 = vdwg.mxu0
      %v2143 = vsel %vm385, %v2120, 0
      %2145 = vmatpush.bf16.msra.mxu0 0
      %2146 = vmatpush.bf16.msra.mxu0 0
      %2147 = vmatpush.bf16.msra.mxu0 0
      %2148 = vmatpush.bf16.msra.mxu0 0
      %2149 = vmatpush.bf16.msra.mxu0 0
      %2150 = vmatpush.bf16.msra.mxu0 0
      %2151 = vmatpush.bf16.msra.mxu0 0
      %2152 = vmatpush.bf16.msra.mxu0 %v2143
      %2153 = vmatmul.bf16.gmra.mxu0 %v1702
      %v2154 = vpop.f32.mrf.mxu0
      %v2155 = vadd.f32 %v2139, %v2154
      %v2156 = vpop.f32.mrf.mxu0
      %2157 = vdwg.mxu0
      %2158 = vrot.lane.b32.xlu0 %v2123, 126
      %v2159 = vpop.permute.xlu0 %2158
      %v2161 = vsel %vm385, %v2159, 0
      %2163 = vmatpush.bf16.msra.mxu0 0
      %2164 = vmatpush.bf16.msra.mxu0 0
      %2165 = vmatpush.bf16.msra.mxu0 0
      %2166 = vmatpush.bf16.msra.mxu0 0
      %2167 = vmatpush.bf16.msra.mxu0 0
      %2168 = vmatpush.bf16.msra.mxu0 0
      %2169 = vmatpush.bf16.msra.mxu0 0
      %2170 = vmatpush.bf16.msra.mxu0 %v2161
      %2171 = vmatmul.bf16.gmra.mxu0 %v1723
      %v2172 = vpop.f32.mrf.mxu0
      %v2173 = vadd.f32 0.0, %v2172
      %v2174 = vpop.f32.mrf.mxu0
      %2175 = vdwg.mxu0
      %v2176 = vadd.f32 %v2155, %v2173
      %v2177 = vmax.f32 %v2118, %v2176
      %v2178 = vadd.f32 %v2177, %v1804
      %v2179 = vmax.f32 %v2178, 0.0
      %2181 = vrot.lane.b32.xlu0 %v2179, 1
      %v2182 = vpop.permute.xlu0 %2181
      %2184 = vst.msk [vmem:[#allocation3 + $0x8] sm:$0x3] %vm472, %v2182
      %v2185 = vld [vmem:[#allocation2 + $0x10] sm:$0x3f]
      %v2186 = vpack.c.bf16 %v2185, %v2185
      %v2188 = vunpack.c.l.b16 %v2186
      %v2189 = vpack.c.b16 %v2188, %v2188
      %2190 = vrot.lane.b32.xlu0 %v2189, 127
      %v2191 = vpop.permute.xlu0 %2190
      %v2193 = vsel %vm385, %v2191, 0
      %2195 = vmatpush.bf16.msra.mxu0 0
      %2196 = vmatpush.bf16.msra.mxu0 0
      %2197 = vmatpush.bf16.msra.mxu0 0
      %2198 = vmatpush.bf16.msra.mxu0 0
      %2199 = vmatpush.bf16.msra.mxu0 0
      %2200 = vmatpush.bf16.msra.mxu0 0
      %2201 = vmatpush.bf16.msra.mxu0 0
      %2202 = vmatpush.bf16.msra.mxu0 %v2193
      %2203 = vmatmul.bf16.gmra.mxu0 %v1683
      %v2204 = vpop.f32.mrf.mxu0
      %v2205 = vadd.f32 0.0, %v2204
      %v2206 = vpop.f32.mrf.mxu0
      %2207 = vdwg.mxu0
      %v2209 = vsel %vm385, %v2186, 0
      %2211 = vmatpush.bf16.msra.mxu0 0
      %2212 = vmatpush.bf16.msra.mxu0 0
      %2213 = vmatpush.bf16.msra.mxu0 0
      %2214 = vmatpush.bf16.msra.mxu0 0
      %2215 = vmatpush.bf16.msra.mxu0 0
      %2216 = vmatpush.bf16.msra.mxu0 0
      %2217 = vmatpush.bf16.msra.mxu0 0
      %2218 = vmatpush.bf16.msra.mxu0 %v2209
      %2219 = vmatmul.bf16.gmra.mxu0 %v1702
      %v2220 = vpop.f32.mrf.mxu0
      %v2221 = vadd.f32 %v2205, %v2220
      %v2222 = vpop.f32.mrf.mxu0
      %2223 = vdwg.mxu0
      %2224 = vrot.lane.b32.xlu0 %v2189, 126
      %v2225 = vpop.permute.xlu0 %2224
      %v2227 = vsel %vm385, %v2225, 0
      %2229 = vmatpush.bf16.msra.mxu0 0
      %2230 = vmatpush.bf16.msra.mxu0 0
      %2231 = vmatpush.bf16.msra.mxu0 0
      %2232 = vmatpush.bf16.msra.mxu0 0
      %2233 = vmatpush.bf16.msra.mxu0 0
      %2234 = vmatpush.bf16.msra.mxu0 0
      %2235 = vmatpush.bf16.msra.mxu0 0
      %2236 = vmatpush.bf16.msra.mxu0 %v2227
      %2237 = vmatmul.bf16.gmra.mxu0 %v1723
      %v2238 = vpop.f32.mrf.mxu0
      %v2239 = vadd.f32 0.0, %v2238
      %v2240 = vpop.f32.mrf.mxu0
      %2241 = vdwg.mxu0
      %v2242 = vadd.f32 %v2221, %v2239
      %v2243 = vld [vmem:[#allocation2 + $0x12] sm:$0x3f]
      %v2244 = vpack.c.bf16 %v2243, %v2243
      %v2246 = vunpack.c.l.b16 %v2244
      %v2247 = vpack.c.b16 %v2246, %v2246
      %2248 = vrot.lane.b32.xlu0 %v2247, 127
      %v2249 = vpop.permute.xlu0 %2248
      %v2251 = vsel %vm385, %v2249, 0
      %2253 = vmatpush.bf16.msra.mxu0 0
      %2254 = vmatpush.bf16.msra.mxu0 0
      %2255 = vmatpush.bf16.msra.mxu0 0
      %2256 = vmatpush.bf16.msra.mxu0 0
      %2257 = vmatpush.bf16.msra.mxu0 0
      %2258 = vmatpush.bf16.msra.mxu0 0
      %2259 = vmatpush.bf16.msra.mxu0 0
      %2260 = vmatpush.bf16.msra.mxu0 %v2251
      %2261 = vmatmul.bf16.gmra.mxu0 %v1683
      %v2262 = vpop.f32.mrf.mxu0
      %v2263 = vadd.f32 0.0, %v2262
      %v2264 = vpop.f32.mrf.mxu0
      %2265 = vdwg.mxu0
      %v2267 = vsel %vm385, %v2244, 0
      %2269 = vmatpush.bf16.msra.mxu0 0
      %2270 = vmatpush.bf16.msra.mxu0 0
      %2271 = vmatpush.bf16.msra.mxu0 0
      %2272 = vmatpush.bf16.msra.mxu0 0
      %2273 = vmatpush.bf16.msra.mxu0 0
      %2274 = vmatpush.bf16.msra.mxu0 0
      %2275 = vmatpush.bf16.msra.mxu0 0
      %2276 = vmatpush.bf16.msra.mxu0 %v2267
      %2277 = vmatmul.bf16.gmra.mxu0 %v1702
      %v2278 = vpop.f32.mrf.mxu0
      %v2279 = vadd.f32 %v2263, %v2278
      %v2280 = vpop.f32.mrf.mxu0
      %2281 = vdwg.mxu0
      %2282 = vrot.lane.b32.xlu0 %v2247, 126
      %v2283 = vpop.permute.xlu0 %2282
      %v2285 = vsel %vm385, %v2283, 0
      %2287 = vmatpush.bf16.msra.mxu0 0
      %2288 = vmatpush.bf16.msra.mxu0 0
      %2289 = vmatpush.bf16.msra.mxu0 0
      %2290 = vmatpush.bf16.msra.mxu0 0
      %2291 = vmatpush.bf16.msra.mxu0 0
      %2292 = vmatpush.bf16.msra.mxu0 0
      %2293 = vmatpush.bf16.msra.mxu0 0
      %2294 = vmatpush.bf16.msra.mxu0 %v2285
      %2295 = vmatmul.bf16.gmra.mxu0 %v1723
      %v2296 = vpop.f32.mrf.mxu0
      %v2297 = vadd.f32 0.0, %v2296
      %v2298 = vpop.f32.mrf.mxu0
      %2299 = vdwg.mxu0
      %v2300 = vadd.f32 %v2279, %v2297
      %v2301 = vmax.f32 %v2242, %v2300
      %v2302 = vadd.f32 %v2301, %v1804
      %v2303 = vmax.f32 %v2302, 0.0
      %2305 = vrot.lane.b32.xlu0 %v2303, 1
      %v2306 = vpop.permute.xlu0 %2305
      %2308 = vst.msk [vmem:[#allocation3 + $0xa] sm:$0x3] %vm472, %v2306
      %v2309 = vld [vmem:[#allocation2 + $0x14] sm:$0x3f]
      %v2310 = vpack.c.bf16 %v2309, %v2309
      %v2312 = vunpack.c.l.b16 %v2310
      %v2313 = vpack.c.b16 %v2312, %v2312
      %2314 = vrot.lane.b32.xlu0 %v2313, 127
      %v2315 = vpop.permute.xlu0 %2314
      %v2317 = vsel %vm385, %v2315, 0
      %2319 = vmatpush.bf16.msra.mxu0 0
      %2320 = vmatpush.bf16.msra.mxu0 0
      %2321 = vmatpush.bf16.msra.mxu0 0
      %2322 = vmatpush.bf16.msra.mxu0 0
      %2323 = vmatpush.bf16.msra.mxu0 0
      %2324 = vmatpush.bf16.msra.mxu0 0
      %2325 = vmatpush.bf16.msra.mxu0 0
      %2326 = vmatpush.bf16.msra.mxu0 %v2317
      %2327 = vmatmul.bf16.gmra.mxu0 %v1683
      %v2328 = vpop.f32.mrf.mxu0
      %v2329 = vadd.f32 0.0, %v2328
      %v2330 = vpop.f32.mrf.mxu0
      %2331 = vdwg.mxu0
      %v2333 = vsel %vm385, %v2310, 0
      %2335 = vmatpush.bf16.msra.mxu0 0
      %2336 = vmatpush.bf16.msra.mxu0 0
      %2337 = vmatpush.bf16.msra.mxu0 0
      %2338 = vmatpush.bf16.msra.mxu0 0
      %2339 = vmatpush.bf16.msra.mxu0 0
      %2340 = vmatpush.bf16.msra.mxu0 0
      %2341 = vmatpush.bf16.msra.mxu0 0
      %2342 = vmatpush.bf16.msra.mxu0 %v2333
      %2343 = vmatmul.bf16.gmra.mxu0 %v1702
      %v2344 = vpop.f32.mrf.mxu0
      %v2345 = vadd.f32 %v2329, %v2344
      %v2346 = vpop.f32.mrf.mxu0
      %2347 = vdwg.mxu0
      %2348 = vrot.lane.b32.xlu0 %v2313, 126
      %v2349 = vpop.permute.xlu0 %2348
      %v2351 = vsel %vm385, %v2349, 0
      %2353 = vmatpush.bf16.msra.mxu0 0
      %2354 = vmatpush.bf16.msra.mxu0 0
      %2355 = vmatpush.bf16.msra.mxu0 0
      %2356 = vmatpush.bf16.msra.mxu0 0
      %2357 = vmatpush.bf16.msra.mxu0 0
      %2358 = vmatpush.bf16.msra.mxu0 0
      %2359 = vmatpush.bf16.msra.mxu0 0
      %2360 = vmatpush.bf16.msra.mxu0 %v2351
      %2361 = vmatmul.bf16.gmra.mxu0 %v1723
      %v2362 = vpop.f32.mrf.mxu0
      %v2363 = vadd.f32 0.0, %v2362
      %v2364 = vpop.f32.mrf.mxu0
      %2365 = vdwg.mxu0
      %v2366 = vadd.f32 %v2345, %v2363
      %v2367 = vld [vmem:[#allocation2 + $0x16] sm:$0x3f]
      %v2368 = vpack.c.bf16 %v2367, %v2367
      %v2370 = vunpack.c.l.b16 %v2368
      %v2371 = vpack.c.b16 %v2370, %v2370
      %2372 = vrot.lane.b32.xlu0 %v2371, 127
      %v2373 = vpop.permute.xlu0 %2372
      %v2375 = vsel %vm385, %v2373, 0
      %2377 = vmatpush.bf16.msra.mxu0 0
      %2378 = vmatpush.bf16.msra.mxu0 0
      %2379 = vmatpush.bf16.msra.mxu0 0
      %2380 = vmatpush.bf16.msra.mxu0 0
      %2381 = vmatpush.bf16.msra.mxu0 0
      %2382 = vmatpush.bf16.msra.mxu0 0
      %2383 = vmatpush.bf16.msra.mxu0 0
      %2384 = vmatpush.bf16.msra.mxu0 %v2375
      %2385 = vmatmul.bf16.gmra.mxu0 %v1683
      %v2386 = vpop.f32.mrf.mxu0
      %v2387 = vadd.f32 0.0, %v2386
      %v2388 = vpop.f32.mrf.mxu0
      %2389 = vdwg.mxu0
      %v2391 = vsel %vm385, %v2368, 0
      %2393 = vmatpush.bf16.msra.mxu0 0
      %2394 = vmatpush.bf16.msra.mxu0 0
      %2395 = vmatpush.bf16.msra.mxu0 0
      %2396 = vmatpush.bf16.msra.mxu0 0
      %2397 = vmatpush.bf16.msra.mxu0 0
      %2398 = vmatpush.bf16.msra.mxu0 0
      %2399 = vmatpush.bf16.msra.mxu0 0
      %2400 = vmatpush.bf16.msra.mxu0 %v2391
      %2401 = vmatmul.bf16.gmra.mxu0 %v1702
      %v2402 = vpop.f32.mrf.mxu0
      %v2403 = vadd.f32 %v2387, %v2402
      %v2404 = vpop.f32.mrf.mxu0
      %2405 = vdwg.mxu0
      %2406 = vrot.lane.b32.xlu0 %v2371, 126
      %v2407 = vpop.permute.xlu0 %2406
      %v2409 = vsel %vm385, %v2407, 0
      %2411 = vmatpush.bf16.msra.mxu0 0
      %2412 = vmatpush.bf16.msra.mxu0 0
      %2413 = vmatpush.bf16.msra.mxu0 0
      %2414 = vmatpush.bf16.msra.mxu0 0
      %2415 = vmatpush.bf16.msra.mxu0 0
      %2416 = vmatpush.bf16.msra.mxu0 0
      %2417 = vmatpush.bf16.msra.mxu0 0
      %2418 = vmatpush.bf16.msra.mxu0 %v2409
      %2419 = vmatmul.bf16.gmra.mxu0 %v1723
      %v2420 = vpop.f32.mrf.mxu0
      %v2421 = vadd.f32 0.0, %v2420
      %v2422 = vpop.f32.mrf.mxu0
      %2423 = vdwg.mxu0
      %v2424 = vadd.f32 %v2403, %v2421
      %v2425 = vmax.f32 %v2366, %v2424
      %v2426 = vadd.f32 %v2425, %v1804
      %v2427 = vmax.f32 %v2426, 0.0
      %2429 = vrot.lane.b32.xlu0 %v2427, 1
      %v2430 = vpop.permute.xlu0 %2429
      %2432 = vst.msk [vmem:[#allocation3 + $0xc] sm:$0x3] %vm472, %v2430
      %v2433 = vld [vmem:[#allocation2 + $0x18] sm:$0x3f]
      %v2434 = vpack.c.bf16 %v2433, %v2433
      %v2436 = vunpack.c.l.b16 %v2434
      %v2437 = vpack.c.b16 %v2436, %v2436
      %2438 = vrot.lane.b32.xlu0 %v2437, 127
      %v2439 = vpop.permute.xlu0 %2438
      %v2441 = vsel %vm385, %v2439, 0
      %2443 = vmatpush.bf16.msra.mxu0 0
      %2444 = vmatpush.bf16.msra.mxu0 0
      %2445 = vmatpush.bf16.msra.mxu0 0
      %2446 = vmatpush.bf16.msra.mxu0 0
      %2447 = vmatpush.bf16.msra.mxu0 0
      %2448 = vmatpush.bf16.msra.mxu0 0
      %2449 = vmatpush.bf16.msra.mxu0 0
      %2450 = vmatpush.bf16.msra.mxu0 %v2441
      %2451 = vmatmul.bf16.gmra.mxu0 %v1683
      %v2452 = vpop.f32.mrf.mxu0
      %v2453 = vadd.f32 0.0, %v2452
      %v2454 = vpop.f32.mrf.mxu0
      %2455 = vdwg.mxu0
      %v2457 = vsel %vm385, %v2434, 0
      %2459 = vmatpush.bf16.msra.mxu0 0
      %2460 = vmatpush.bf16.msra.mxu0 0
      %2461 = vmatpush.bf16.msra.mxu0 0
      %2462 = vmatpush.bf16.msra.mxu0 0
      %2463 = vmatpush.bf16.msra.mxu0 0
      %2464 = vmatpush.bf16.msra.mxu0 0
      %2465 = vmatpush.bf16.msra.mxu0 0
      %2466 = vmatpush.bf16.msra.mxu0 %v2457
      %2467 = vmatmul.bf16.gmra.mxu0 %v1702
      %v2468 = vpop.f32.mrf.mxu0
      %v2469 = vadd.f32 %v2453, %v2468
      %v2470 = vpop.f32.mrf.mxu0
      %2471 = vdwg.mxu0
      %2472 = vrot.lane.b32.xlu0 %v2437, 126
      %v2473 = vpop.permute.xlu0 %2472
      %v2475 = vsel %vm385, %v2473, 0
      %2477 = vmatpush.bf16.msra.mxu0 0
      %2478 = vmatpush.bf16.msra.mxu0 0
      %2479 = vmatpush.bf16.msra.mxu0 0
      %2480 = vmatpush.bf16.msra.mxu0 0
      %2481 = vmatpush.bf16.msra.mxu0 0
      %2482 = vmatpush.bf16.msra.mxu0 0
      %2483 = vmatpush.bf16.msra.mxu0 0
      %2484 = vmatpush.bf16.msra.mxu0 %v2475
      %2485 = vmatmul.bf16.gmra.mxu0 %v1723
      %v2486 = vpop.f32.mrf.mxu0
      %v2487 = vadd.f32 0.0, %v2486
      %v2488 = vpop.f32.mrf.mxu0
      %2489 = vdwg.mxu0
      %v2490 = vadd.f32 %v2469, %v2487
      %v2491 = vld [vmem:[#allocation2 + $0x1a] sm:$0x3f]
      %v2492 = vpack.c.bf16 %v2491, %v2491
      %v2494 = vunpack.c.l.b16 %v2492
      %v2495 = vpack.c.b16 %v2494, %v2494
      %2496 = vrot.lane.b32.xlu0 %v2495, 127
      %v2497 = vpop.permute.xlu0 %2496
      %v2499 = vsel %vm385, %v2497, 0
      %2501 = vmatpush.bf16.msra.mxu0 0
      %2502 = vmatpush.bf16.msra.mxu0 0
      %2503 = vmatpush.bf16.msra.mxu0 0
      %2504 = vmatpush.bf16.msra.mxu0 0
      %2505 = vmatpush.bf16.msra.mxu0 0
      %2506 = vmatpush.bf16.msra.mxu0 0
      %2507 = vmatpush.bf16.msra.mxu0 0
      %2508 = vmatpush.bf16.msra.mxu0 %v2499
      %2509 = vmatmul.bf16.gmra.mxu0 %v1683
      %v2510 = vpop.f32.mrf.mxu0
      %v2511 = vadd.f32 0.0, %v2510
      %v2512 = vpop.f32.mrf.mxu0
      %2513 = vdwg.mxu0
      %v2515 = vsel %vm385, %v2492, 0
      %2517 = vmatpush.bf16.msra.mxu0 0
      %2518 = vmatpush.bf16.msra.mxu0 0
      %2519 = vmatpush.bf16.msra.mxu0 0
      %2520 = vmatpush.bf16.msra.mxu0 0
      %2521 = vmatpush.bf16.msra.mxu0 0
      %2522 = vmatpush.bf16.msra.mxu0 0
      %2523 = vmatpush.bf16.msra.mxu0 0
      %2524 = vmatpush.bf16.msra.mxu0 %v2515
      %2525 = vmatmul.bf16.gmra.mxu0 %v1702
      %v2526 = vpop.f32.mrf.mxu0
      %v2527 = vadd.f32 %v2511, %v2526
      %v2528 = vpop.f32.mrf.mxu0
      %2529 = vdwg.mxu0
      %2530 = vrot.lane.b32.xlu0 %v2495, 126
      %v2531 = vpop.permute.xlu0 %2530
      %v2533 = vsel %vm385, %v2531, 0
      %2535 = vmatpush.bf16.msra.mxu0 0
      %2536 = vmatpush.bf16.msra.mxu0 0
      %2537 = vmatpush.bf16.msra.mxu0 0
      %2538 = vmatpush.bf16.msra.mxu0 0
      %2539 = vmatpush.bf16.msra.mxu0 0
      %2540 = vmatpush.bf16.msra.mxu0 0
      %2541 = vmatpush.bf16.msra.mxu0 0
      %2542 = vmatpush.bf16.msra.mxu0 %v2533
      %2543 = vmatmul.bf16.gmra.mxu0 %v1723
      %v2544 = vpop.f32.mrf.mxu0
      %v2545 = vadd.f32 0.0, %v2544
      %v2546 = vpop.f32.mrf.mxu0
      %2547 = vdwg.mxu0
      %v2548 = vadd.f32 %v2527, %v2545
      %v2549 = vmax.f32 %v2490, %v2548
      %v2550 = vadd.f32 %v2549, %v1804
      %v2551 = vmax.f32 %v2550, 0.0
      %2553 = vrot.lane.b32.xlu0 %v2551, 1
      %v2554 = vpop.permute.xlu0 %2553
      %2556 = vst.msk [vmem:[#allocation3 + $0xe] sm:$0x3] %vm472, %v2554
      %v2557 = vld [vmem:[#allocation2 + $0x1c] sm:$0x3f]
      %v2558 = vpack.c.bf16 %v2557, %v2557
      %v2560 = vunpack.c.l.b16 %v2558
      %v2561 = vpack.c.b16 %v2560, %v2560
      %2562 = vrot.lane.b32.xlu0 %v2561, 127
      %v2563 = vpop.permute.xlu0 %2562
      %v2565 = vsel %vm385, %v2563, 0
      %2567 = vmatpush.bf16.msra.mxu0 0
      %2568 = vmatpush.bf16.msra.mxu0 0
      %2569 = vmatpush.bf16.msra.mxu0 0
      %2570 = vmatpush.bf16.msra.mxu0 0
      %2571 = vmatpush.bf16.msra.mxu0 0
      %2572 = vmatpush.bf16.msra.mxu0 0
      %2573 = vmatpush.bf16.msra.mxu0 0
      %2574 = vmatpush.bf16.msra.mxu0 %v2565
      %2575 = vmatmul.bf16.gmra.mxu0 %v1683
      %v2576 = vpop.f32.mrf.mxu0
      %v2577 = vadd.f32 0.0, %v2576
      %v2578 = vpop.f32.mrf.mxu0
      %2579 = vdwg.mxu0
      %v2581 = vsel %vm385, %v2558, 0
      %2583 = vmatpush.bf16.msra.mxu0 0
      %2584 = vmatpush.bf16.msra.mxu0 0
      %2585 = vmatpush.bf16.msra.mxu0 0
      %2586 = vmatpush.bf16.msra.mxu0 0
      %2587 = vmatpush.bf16.msra.mxu0 0
      %2588 = vmatpush.bf16.msra.mxu0 0
      %2589 = vmatpush.bf16.msra.mxu0 0
      %2590 = vmatpush.bf16.msra.mxu0 %v2581
      %2591 = vmatmul.bf16.gmra.mxu0 %v1702
      %v2592 = vpop.f32.mrf.mxu0
      %v2593 = vadd.f32 %v2577, %v2592
      %v2594 = vpop.f32.mrf.mxu0
      %2595 = vdwg.mxu0
      %2596 = vrot.lane.b32.xlu0 %v2561, 126
      %v2597 = vpop.permute.xlu0 %2596
      %v2599 = vsel %vm385, %v2597, 0
      %2601 = vmatpush.bf16.msra.mxu0 0
      %2602 = vmatpush.bf16.msra.mxu0 0
      %2603 = vmatpush.bf16.msra.mxu0 0
      %2604 = vmatpush.bf16.msra.mxu0 0
      %2605 = vmatpush.bf16.msra.mxu0 0
      %2606 = vmatpush.bf16.msra.mxu0 0
      %2607 = vmatpush.bf16.msra.mxu0 0
      %2608 = vmatpush.bf16.msra.mxu0 %v2599
      %2609 = vmatmul.bf16.gmra.mxu0 %v1723
      %v2610 = vpop.f32.mrf.mxu0
      %v2611 = vadd.f32 0.0, %v2610
      %v2612 = vpop.f32.mrf.mxu0
      %2613 = vdwg.mxu0
      %v2614 = vadd.f32 %v2593, %v2611
      %v2615 = vld [vmem:[#allocation2 + $0x1e] sm:$0x3f]
      %v2616 = vpack.c.bf16 %v2615, %v2615
      %v2618 = vunpack.c.l.b16 %v2616
      %v2619 = vpack.c.b16 %v2618, %v2618
      %2620 = vrot.lane.b32.xlu0 %v2619, 127
      %v2621 = vpop.permute.xlu0 %2620
      %v2623 = vsel %vm385, %v2621, 0
      %2625 = vmatpush.bf16.msra.mxu0 0
      %2626 = vmatpush.bf16.msra.mxu0 0
      %2627 = vmatpush.bf16.msra.mxu0 0
      %2628 = vmatpush.bf16.msra.mxu0 0
      %2629 = vmatpush.bf16.msra.mxu0 0
      %2630 = vmatpush.bf16.msra.mxu0 0
      %2631 = vmatpush.bf16.msra.mxu0 0
      %2632 = vmatpush.bf16.msra.mxu0 %v2623
      %2633 = vmatmul.bf16.gmra.mxu0 %v1683
      %v2634 = vpop.f32.mrf.mxu0
      %v2635 = vadd.f32 0.0, %v2634
      %v2636 = vpop.f32.mrf.mxu0
      %2637 = vdwg.mxu0
      %v2639 = vsel %vm385, %v2616, 0
      %2641 = vmatpush.bf16.msra.mxu0 0
      %2642 = vmatpush.bf16.msra.mxu0 0
      %2643 = vmatpush.bf16.msra.mxu0 0
      %2644 = vmatpush.bf16.msra.mxu0 0
      %2645 = vmatpush.bf16.msra.mxu0 0
      %2646 = vmatpush.bf16.msra.mxu0 0
      %2647 = vmatpush.bf16.msra.mxu0 0
      %2648 = vmatpush.bf16.msra.mxu0 %v2639
      %2649 = vmatmul.bf16.gmra.mxu0 %v1702
      %v2650 = vpop.f32.mrf.mxu0
      %v2651 = vadd.f32 %v2635, %v2650
      %v2652 = vpop.f32.mrf.mxu0
      %2653 = vdwg.mxu0
      %2654 = vrot.lane.b32.xlu0 %v2619, 126
      %v2655 = vpop.permute.xlu0 %2654
      %v2657 = vsel %vm385, %v2655, 0
      %2659 = vmatpush.bf16.msra.mxu0 0
      %2660 = vmatpush.bf16.msra.mxu0 0
      %2661 = vmatpush.bf16.msra.mxu0 0
      %2662 = vmatpush.bf16.msra.mxu0 0
      %2663 = vmatpush.bf16.msra.mxu0 0
      %2664 = vmatpush.bf16.msra.mxu0 0
      %2665 = vmatpush.bf16.msra.mxu0 0
      %2666 = vmatpush.bf16.msra.mxu0 %v2657
      %2667 = vmatmul.bf16.gmra.mxu0 %v1723
      %v2668 = vpop.f32.mrf.mxu0
      %v2669 = vadd.f32 0.0, %v2668
      %v2670 = vpop.f32.mrf.mxu0
      %2671 = vdwg.mxu0
      %v2672 = vadd.f32 %v2651, %v2669
      %v2673 = vmax.f32 %v2614, %v2672
      %v2674 = vadd.f32 %v2673, %v1804
      %v2675 = vmax.f32 %v2674, 0.0
      %2677 = vrot.lane.b32.xlu0 %v2675, 1
      %v2678 = vpop.permute.xlu0 %2677
      %2680 = vst.msk [vmem:[#allocation3 + $0x10] sm:$0x3] %vm472, %v2678
      %v2681 = vld [vmem:[#allocation3] sm:$0x3f]
      %v2682 = vpack.c.bf16 %v2681, %v2681
      %v2684 = vunpack.c.l.b16 %v2682
      %v2685 = vpack.c.b16 %v2684, %v2684
      %2686 = vrot.lane.b32.xlu0 %v2685, 127
      %v2687 = vpop.permute.xlu0 %2686
      %v2689 = vsel %vm1681, %v371, 0
      %v2692 = vsel %vm385, %v2687, 0
      %2694 = vmatpush.bf16.msra.mxu0 0
      %2695 = vmatpush.bf16.msra.mxu0 0
      %2696 = vmatpush.bf16.msra.mxu0 0
      %2697 = vmatpush.bf16.msra.mxu0 0
      %2698 = vmatpush.bf16.msra.mxu0 0
      %2699 = vmatpush.bf16.msra.mxu0 0
      %2700 = vmatpush.bf16.msra.mxu0 0
      %2701 = vmatpush.bf16.msra.mxu0 %v2692
      %2702 = vmatmul.bf16.gmra.mxu0 %v2689
      %v2703 = vpop.f32.mrf.mxu0
      %v2704 = vadd.f32 0.0, %v2703
      %v2705 = vpop.f32.mrf.mxu0
      %2706 = vdwg.mxu0
      %v2708 = vsel %vm1681, %v369, 0
      %v2711 = vsel %vm385, %v2682, 0
      %2713 = vmatpush.bf16.msra.mxu0 0
      %2714 = vmatpush.bf16.msra.mxu0 0
      %2715 = vmatpush.bf16.msra.mxu0 0
      %2716 = vmatpush.bf16.msra.mxu0 0
      %2717 = vmatpush.bf16.msra.mxu0 0
      %2718 = vmatpush.bf16.msra.mxu0 0
      %2719 = vmatpush.bf16.msra.mxu0 0
      %2720 = vmatpush.bf16.msra.mxu0 %v2711
      %2721 = vmatmul.bf16.gmra.mxu0 %v2708
      %v2722 = vpop.f32.mrf.mxu0
      %v2723 = vadd.f32 %v2704, %v2722
      %v2724 = vpop.f32.mrf.mxu0
      %2725 = vdwg.mxu0
      %2726 = vrot.lane.b32.xlu0 %v2685, 126
      %v2727 = vpop.permute.xlu0 %2726
      %v2729 = vsel %vm1681, %v373, 0
      %v2732 = vsel %vm385, %v2727, 0
      %2734 = vmatpush.bf16.msra.mxu0 0
      %2735 = vmatpush.bf16.msra.mxu0 0
      %2736 = vmatpush.bf16.msra.mxu0 0
      %2737 = vmatpush.bf16.msra.mxu0 0
      %2738 = vmatpush.bf16.msra.mxu0 0
      %2739 = vmatpush.bf16.msra.mxu0 0
      %2740 = vmatpush.bf16.msra.mxu0 0
      %2741 = vmatpush.bf16.msra.mxu0 %v2732
      %2742 = vmatmul.bf16.gmra.mxu0 %v2729
      %v2743 = vpop.f32.mrf.mxu0
      %v2744 = vadd.f32 0.0, %v2743
      %v2745 = vpop.f32.mrf.mxu0
      %2746 = vdwg.mxu0
      %v2747 = vadd.f32 %v2723, %v2744
      %v2748 = vld [vmem:[#allocation3 + $0x2] sm:$0x3f]
      %v2749 = vpack.c.bf16 %v2748, %v2748
      %v2751 = vunpack.c.l.b16 %v2749
      %v2752 = vpack.c.b16 %v2751, %v2751
      %2753 = vrot.lane.b32.xlu0 %v2752, 127
      %v2754 = vpop.permute.xlu0 %2753
      %v2756 = vsel %vm385, %v2754, 0
      %2758 = vmatpush.bf16.msra.mxu0 0
      %2759 = vmatpush.bf16.msra.mxu0 0
      %2760 = vmatpush.bf16.msra.mxu0 0
      %2761 = vmatpush.bf16.msra.mxu0 0
      %2762 = vmatpush.bf16.msra.mxu0 0
      %2763 = vmatpush.bf16.msra.mxu0 0
      %2764 = vmatpush.bf16.msra.mxu0 0
      %2765 = vmatpush.bf16.msra.mxu0 %v2756
      %2766 = vmatmul.bf16.gmra.mxu0 %v2689
      %v2767 = vpop.f32.mrf.mxu0
      %v2768 = vadd.f32 0.0, %v2767
      %v2769 = vpop.f32.mrf.mxu0
      %2770 = vdwg.mxu0
      %v2772 = vsel %vm385, %v2749, 0
      %2774 = vmatpush.bf16.msra.mxu0 0
      %2775 = vmatpush.bf16.msra.mxu0 0
      %2776 = vmatpush.bf16.msra.mxu0 0
      %2777 = vmatpush.bf16.msra.mxu0 0
      %2778 = vmatpush.bf16.msra.mxu0 0
      %2779 = vmatpush.bf16.msra.mxu0 0
      %2780 = vmatpush.bf16.msra.mxu0 0
      %2781 = vmatpush.bf16.msra.mxu0 %v2772
      %2782 = vmatmul.bf16.gmra.mxu0 %v2708
      %v2783 = vpop.f32.mrf.mxu0
      %v2784 = vadd.f32 %v2768, %v2783
      %v2785 = vpop.f32.mrf.mxu0
      %2786 = vdwg.mxu0
      %2787 = vrot.lane.b32.xlu0 %v2752, 126
      %v2788 = vpop.permute.xlu0 %2787
      %v2790 = vsel %vm385, %v2788, 0
      %2792 = vmatpush.bf16.msra.mxu0 0
      %2793 = vmatpush.bf16.msra.mxu0 0
      %2794 = vmatpush.bf16.msra.mxu0 0
      %2795 = vmatpush.bf16.msra.mxu0 0
      %2796 = vmatpush.bf16.msra.mxu0 0
      %2797 = vmatpush.bf16.msra.mxu0 0
      %2798 = vmatpush.bf16.msra.mxu0 0
      %2799 = vmatpush.bf16.msra.mxu0 %v2790
      %2800 = vmatmul.bf16.gmra.mxu0 %v2729
      %v2801 = vpop.f32.mrf.mxu0
      %v2802 = vadd.f32 0.0, %v2801
      %v2803 = vpop.f32.mrf.mxu0
      %2804 = vdwg.mxu0
      %v2805 = vadd.f32 %v2784, %v2802
      %v2806 = vmax.f32 %v2747, %v2805
      %2808 = vset.pattern.permute.xlu0 0
      %2809 = vperm.xlu0 %2808, %v376
      %v2810 = vpop.permute.xlu0 %2809
      %v2812 = vadd.f32 %v2806, %v2810
      %v2813 = vmax.f32 %v2812, 0.0
      %vm2814 = vcmask 60416
      %2815 = vst.msk [vmem:[#allocation4] sm:$0xf] %vm2814, %v2813
      %v2816 = vld [vmem:[#allocation3 + $0x4] sm:$0x3f]
      %v2817 = vpack.c.bf16 %v2816, %v2816
      %v2819 = vunpack.c.l.b16 %v2817
      %v2820 = vpack.c.b16 %v2819, %v2819
      %2821 = vrot.lane.b32.xlu0 %v2820, 127
      %v2822 = vpop.permute.xlu0 %2821
      %v2824 = vsel %vm385, %v2822, 0
      %2826 = vmatpush.bf16.msra.mxu0 0
      %2827 = vmatpush.bf16.msra.mxu0 0
      %2828 = vmatpush.bf16.msra.mxu0 0
      %2829 = vmatpush.bf16.msra.mxu0 0
      %2830 = vmatpush.bf16.msra.mxu0 0
      %2831 = vmatpush.bf16.msra.mxu0 0
      %2832 = vmatpush.bf16.msra.mxu0 0
      %2833 = vmatpush.bf16.msra.mxu0 %v2824
      %2834 = vmatmul.bf16.gmra.mxu0 %v2689
      %v2835 = vpop.f32.mrf.mxu0
      %v2836 = vadd.f32 0.0, %v2835
      %v2837 = vpop.f32.mrf.mxu0
      %2838 = vdwg.mxu0
      %v2840 = vsel %vm385, %v2817, 0
      %2842 = vmatpush.bf16.msra.mxu0 0
      %2843 = vmatpush.bf16.msra.mxu0 0
      %2844 = vmatpush.bf16.msra.mxu0 0
      %2845 = vmatpush.bf16.msra.mxu0 0
      %2846 = vmatpush.bf16.msra.mxu0 0
      %2847 = vmatpush.bf16.msra.mxu0 0
      %2848 = vmatpush.bf16.msra.mxu0 0
      %2849 = vmatpush.bf16.msra.mxu0 %v2840
      %2850 = vmatmul.bf16.gmra.mxu0 %v2708
      %v2851 = vpop.f32.mrf.mxu0
      %v2852 = vadd.f32 %v2836, %v2851
      %v2853 = vpop.f32.mrf.mxu0
      %2854 = vdwg.mxu0
      %2855 = vrot.lane.b32.xlu0 %v2820, 126
      %v2856 = vpop.permute.xlu0 %2855
      %v2858 = vsel %vm385, %v2856, 0
      %2860 = vmatpush.bf16.msra.mxu0 0
      %2861 = vmatpush.bf16.msra.mxu0 0
      %2862 = vmatpush.bf16.msra.mxu0 0
      %2863 = vmatpush.bf16.msra.mxu0 0
      %2864 = vmatpush.bf16.msra.mxu0 0
      %2865 = vmatpush.bf16.msra.mxu0 0
      %2866 = vmatpush.bf16.msra.mxu0 0
      %2867 = vmatpush.bf16.msra.mxu0 %v2858
      %2868 = vmatmul.bf16.gmra.mxu0 %v2729
      %v2869 = vpop.f32.mrf.mxu0
      %v2870 = vadd.f32 0.0, %v2869
      %v2871 = vpop.f32.mrf.mxu0
      %2872 = vdwg.mxu0
      %v2873 = vadd.f32 %v2852, %v2870
      %v2874 = vld [vmem:[#allocation3 + $0x6] sm:$0x3f]
      %v2875 = vpack.c.bf16 %v2874, %v2874
      %v2877 = vunpack.c.l.b16 %v2875
      %v2878 = vpack.c.b16 %v2877, %v2877
      %2879 = vrot.lane.b32.xlu0 %v2878, 127
      %v2880 = vpop.permute.xlu0 %2879
      %v2882 = vsel %vm385, %v2880, 0
      %2884 = vmatpush.bf16.msra.mxu0 0
      %2885 = vmatpush.bf16.msra.mxu0 0
      %2886 = vmatpush.bf16.msra.mxu0 0
      %2887 = vmatpush.bf16.msra.mxu0 0
      %2888 = vmatpush.bf16.msra.mxu0 0
      %2889 = vmatpush.bf16.msra.mxu0 0
      %2890 = vmatpush.bf16.msra.mxu0 0
      %2891 = vmatpush.bf16.msra.mxu0 %v2882
      %2892 = vmatmul.bf16.gmra.mxu0 %v2689
      %v2893 = vpop.f32.mrf.mxu0
      %v2894 = vadd.f32 0.0, %v2893
      %v2895 = vpop.f32.mrf.mxu0
      %2896 = vdwg.mxu0
      %v2898 = vsel %vm385, %v2875, 0
      %2900 = vmatpush.bf16.msra.mxu0 0
      %2901 = vmatpush.bf16.msra.mxu0 0
      %2902 = vmatpush.bf16.msra.mxu0 0
      %2903 = vmatpush.bf16.msra.mxu0 0
      %2904 = vmatpush.bf16.msra.mxu0 0
      %2905 = vmatpush.bf16.msra.mxu0 0
      %2906 = vmatpush.bf16.msra.mxu0 0
      %2907 = vmatpush.bf16.msra.mxu0 %v2898
      %2908 = vmatmul.bf16.gmra.mxu0 %v2708
      %v2909 = vpop.f32.mrf.mxu0
      %v2910 = vadd.f32 %v2894, %v2909
      %v2911 = vpop.f32.mrf.mxu0
      %2912 = vdwg.mxu0
      %2913 = vrot.lane.b32.xlu0 %v2878, 126
      %v2914 = vpop.permute.xlu0 %2913
      %v2916 = vsel %vm385, %v2914, 0
      %2918 = vmatpush.bf16.msra.mxu0 0
      %2919 = vmatpush.bf16.msra.mxu0 0
      %2920 = vmatpush.bf16.msra.mxu0 0
      %2921 = vmatpush.bf16.msra.mxu0 0
      %2922 = vmatpush.bf16.msra.mxu0 0
      %2923 = vmatpush.bf16.msra.mxu0 0
      %2924 = vmatpush.bf16.msra.mxu0 0
      %2925 = vmatpush.bf16.msra.mxu0 %v2916
      %2926 = vmatmul.bf16.gmra.mxu0 %v2729
      %v2927 = vpop.f32.mrf.mxu0
      %v2928 = vadd.f32 0.0, %v2927
      %v2929 = vpop.f32.mrf.mxu0
      %2930 = vdwg.mxu0
      %v2931 = vadd.f32 %v2910, %v2928
      %v2932 = vmax.f32 %v2873, %v2931
      %v2933 = vadd.f32 %v2932, %v2810
      %v2934 = vmax.f32 %v2933, 0.0
      %2935 = vst.msk [vmem:[#allocation4 + $0x4] sm:$0xf] %vm2814, %v2934
      %v2936 = vld [vmem:[#allocation3 + $0x8] sm:$0x3f]
      %v2937 = vpack.c.bf16 %v2936, %v2936
      %v2939 = vunpack.c.l.b16 %v2937
      %v2940 = vpack.c.b16 %v2939, %v2939
      %2941 = vrot.lane.b32.xlu0 %v2940, 127
      %v2942 = vpop.permute.xlu0 %2941
      %v2944 = vsel %vm385, %v2942, 0
      %2946 = vmatpush.bf16.msra.mxu0 0
      %2947 = vmatpush.bf16.msra.mxu0 0
      %2948 = vmatpush.bf16.msra.mxu0 0
      %2949 = vmatpush.bf16.msra.mxu0 0
      %2950 = vmatpush.bf16.msra.mxu0 0
      %2951 = vmatpush.bf16.msra.mxu0 0
      %2952 = vmatpush.bf16.msra.mxu0 0
      %2953 = vmatpush.bf16.msra.mxu0 %v2944
      %2954 = vmatmul.bf16.gmra.mxu0 %v2689
      %v2955 = vpop.f32.mrf.mxu0
      %v2956 = vadd.f32 0.0, %v2955
      %v2957 = vpop.f32.mrf.mxu0
      %2958 = vdwg.mxu0
      %v2960 = vsel %vm385, %v2937, 0
      %2962 = vmatpush.bf16.msra.mxu0 0
      %2963 = vmatpush.bf16.msra.mxu0 0
      %2964 = vmatpush.bf16.msra.mxu0 0
      %2965 = vmatpush.bf16.msra.mxu0 0
      %2966 = vmatpush.bf16.msra.mxu0 0
      %2967 = vmatpush.bf16.msra.mxu0 0
      %2968 = vmatpush.bf16.msra.mxu0 0
      %2969 = vmatpush.bf16.msra.mxu0 %v2960
      %2970 = vmatmul.bf16.gmra.mxu0 %v2708
      %v2971 = vpop.f32.mrf.mxu0
      %v2972 = vadd.f32 %v2956, %v2971
      %v2973 = vpop.f32.mrf.mxu0
      %2974 = vdwg.mxu0
      %2975 = vrot.lane.b32.xlu0 %v2940, 126
      %v2976 = vpop.permute.xlu0 %2975
      %v2978 = vsel %vm385, %v2976, 0
      %2980 = vmatpush.bf16.msra.mxu0 0
      %2981 = vmatpush.bf16.msra.mxu0 0
      %2982 = vmatpush.bf16.msra.mxu0 0
      %2983 = vmatpush.bf16.msra.mxu0 0
      %2984 = vmatpush.bf16.msra.mxu0 0
      %2985 = vmatpush.bf16.msra.mxu0 0
      %2986 = vmatpush.bf16.msra.mxu0 0
      %2987 = vmatpush.bf16.msra.mxu0 %v2978
      %2988 = vmatmul.bf16.gmra.mxu0 %v2729
      %v2989 = vpop.f32.mrf.mxu0
      %v2990 = vadd.f32 0.0, %v2989
      %v2991 = vpop.f32.mrf.mxu0
      %2992 = vdwg.mxu0
      %v2993 = vadd.f32 %v2972, %v2990
      %v2994 = vld [vmem:[#allocation3 + $0xa] sm:$0x3f]
      %v2995 = vpack.c.bf16 %v2994, %v2994
      %v2997 = vunpack.c.l.b16 %v2995
      %v2998 = vpack.c.b16 %v2997, %v2997
      %2999 = vrot.lane.b32.xlu0 %v2998, 127
      %v3000 = vpop.permute.xlu0 %2999
      %v3002 = vsel %vm385, %v3000, 0
      %3004 = vmatpush.bf16.msra.mxu0 0
      %3005 = vmatpush.bf16.msra.mxu0 0
      %3006 = vmatpush.bf16.msra.mxu0 0
      %3007 = vmatpush.bf16.msra.mxu0 0
      %3008 = vmatpush.bf16.msra.mxu0 0
      %3009 = vmatpush.bf16.msra.mxu0 0
      %3010 = vmatpush.bf16.msra.mxu0 0
      %3011 = vmatpush.bf16.msra.mxu0 %v3002
      %3012 = vmatmul.bf16.gmra.mxu0 %v2689
      %v3013 = vpop.f32.mrf.mxu0
      %v3014 = vadd.f32 0.0, %v3013
      %v3015 = vpop.f32.mrf.mxu0
      %3016 = vdwg.mxu0
      %v3018 = vsel %vm385, %v2995, 0
      %3020 = vmatpush.bf16.msra.mxu0 0
      %3021 = vmatpush.bf16.msra.mxu0 0
      %3022 = vmatpush.bf16.msra.mxu0 0
      %3023 = vmatpush.bf16.msra.mxu0 0
      %3024 = vmatpush.bf16.msra.mxu0 0
      %3025 = vmatpush.bf16.msra.mxu0 0
      %3026 = vmatpush.bf16.msra.mxu0 0
      %3027 = vmatpush.bf16.msra.mxu0 %v3018
      %3028 = vmatmul.bf16.gmra.mxu0 %v2708
      %v3029 = vpop.f32.mrf.mxu0
      %v3030 = vadd.f32 %v3014, %v3029
      %v3031 = vpop.f32.mrf.mxu0
      %3032 = vdwg.mxu0
      %3033 = vrot.lane.b32.xlu0 %v2998, 126
      %v3034 = vpop.permute.xlu0 %3033
      %v3036 = vsel %vm385, %v3034, 0
      %3038 = vmatpush.bf16.msra.mxu0 0
      %3039 = vmatpush.bf16.msra.mxu0 0
      %3040 = vmatpush.bf16.msra.mxu0 0
      %3041 = vmatpush.bf16.msra.mxu0 0
      %3042 = vmatpush.bf16.msra.mxu0 0
      %3043 = vmatpush.bf16.msra.mxu0 0
      %3044 = vmatpush.bf16.msra.mxu0 0
      %3045 = vmatpush.bf16.msra.mxu0 %v3036
      %3046 = vmatmul.bf16.gmra.mxu0 %v2729
      %v3047 = vpop.f32.mrf.mxu0
      %v3048 = vadd.f32 0.0, %v3047
      %v3049 = vpop.f32.mrf.mxu0
      %3050 = vdwg.mxu0
      %v3051 = vadd.f32 %v3030, %v3048
      %v3052 = vmax.f32 %v2993, %v3051
      %v3053 = vadd.f32 %v3052, %v2810
      %v3054 = vmax.f32 %v3053, 0.0
      %3055 = vst.msk [vmem:[#allocation4 + $0x8] sm:$0xf] %vm2814, %v3054
      %v3056 = vld [vmem:[#allocation3 + $0xc] sm:$0x3f]
      %v3057 = vpack.c.bf16 %v3056, %v3056
      %v3059 = vunpack.c.l.b16 %v3057
      %v3060 = vpack.c.b16 %v3059, %v3059
      %3061 = vrot.lane.b32.xlu0 %v3060, 127
      %v3062 = vpop.permute.xlu0 %3061
      %v3064 = vsel %vm385, %v3062, 0
      %3066 = vmatpush.bf16.msra.mxu0 0
      %3067 = vmatpush.bf16.msra.mxu0 0
      %3068 = vmatpush.bf16.msra.mxu0 0
      %3069 = vmatpush.bf16.msra.mxu0 0
      %3070 = vmatpush.bf16.msra.mxu0 0
      %3071 = vmatpush.bf16.msra.mxu0 0
      %3072 = vmatpush.bf16.msra.mxu0 0
      %3073 = vmatpush.bf16.msra.mxu0 %v3064
      %3074 = vmatmul.bf16.gmra.mxu0 %v2689
      %v3075 = vpop.f32.mrf.mxu0
      %v3076 = vadd.f32 0.0, %v3075
      %v3077 = vpop.f32.mrf.mxu0
      %3078 = vdwg.mxu0
      %v3080 = vsel %vm385, %v3057, 0
      %3082 = vmatpush.bf16.msra.mxu0 0
      %3083 = vmatpush.bf16.msra.mxu0 0
      %3084 = vmatpush.bf16.msra.mxu0 0
      %3085 = vmatpush.bf16.msra.mxu0 0
      %3086 = vmatpush.bf16.msra.mxu0 0
      %3087 = vmatpush.bf16.msra.mxu0 0
      %3088 = vmatpush.bf16.msra.mxu0 0
      %3089 = vmatpush.bf16.msra.mxu0 %v3080
      %3090 = vmatmul.bf16.gmra.mxu0 %v2708
      %v3091 = vpop.f32.mrf.mxu0
      %v3092 = vadd.f32 %v3076, %v3091
      %v3093 = vpop.f32.mrf.mxu0
      %3094 = vdwg.mxu0
      %3095 = vrot.lane.b32.xlu0 %v3060, 126
      %v3096 = vpop.permute.xlu0 %3095
      %v3098 = vsel %vm385, %v3096, 0
      %3100 = vmatpush.bf16.msra.mxu0 0
      %3101 = vmatpush.bf16.msra.mxu0 0
      %3102 = vmatpush.bf16.msra.mxu0 0
      %3103 = vmatpush.bf16.msra.mxu0 0
      %3104 = vmatpush.bf16.msra.mxu0 0
      %3105 = vmatpush.bf16.msra.mxu0 0
      %3106 = vmatpush.bf16.msra.mxu0 0
      %3107 = vmatpush.bf16.msra.mxu0 %v3098
      %3108 = vmatmul.bf16.gmra.mxu0 %v2729
      %v3109 = vpop.f32.mrf.mxu0
      %v3110 = vadd.f32 0.0, %v3109
      %v3111 = vpop.f32.mrf.mxu0
      %3112 = vdwg.mxu0
      %v3113 = vadd.f32 %v3092, %v3110
      %v3114 = vld [vmem:[#allocation3 + $0xe] sm:$0x3f]
      %v3115 = vpack.c.bf16 %v3114, %v3114
      %v3117 = vunpack.c.l.b16 %v3115
      %v3118 = vpack.c.b16 %v3117, %v3117
      %3119 = vrot.lane.b32.xlu0 %v3118, 127
      %v3120 = vpop.permute.xlu0 %3119
      %v3122 = vsel %vm385, %v3120, 0
      %3124 = vmatpush.bf16.msra.mxu0 0
      %3125 = vmatpush.bf16.msra.mxu0 0
      %3126 = vmatpush.bf16.msra.mxu0 0
      %3127 = vmatpush.bf16.msra.mxu0 0
      %3128 = vmatpush.bf16.msra.mxu0 0
      %3129 = vmatpush.bf16.msra.mxu0 0
      %3130 = vmatpush.bf16.msra.mxu0 0
      %3131 = vmatpush.bf16.msra.mxu0 %v3122
      %3132 = vmatmul.bf16.gmra.mxu0 %v2689
      %v3133 = vpop.f32.mrf.mxu0
      %v3134 = vadd.f32 0.0, %v3133
      %v3135 = vpop.f32.mrf.mxu0
      %3136 = vdwg.mxu0
      %v3138 = vsel %vm385, %v3115, 0
      %3140 = vmatpush.bf16.msra.mxu0 0
      %3141 = vmatpush.bf16.msra.mxu0 0
      %3142 = vmatpush.bf16.msra.mxu0 0
      %3143 = vmatpush.bf16.msra.mxu0 0
      %3144 = vmatpush.bf16.msra.mxu0 0
      %3145 = vmatpush.bf16.msra.mxu0 0
      %3146 = vmatpush.bf16.msra.mxu0 0
      %3147 = vmatpush.bf16.msra.mxu0 %v3138
      %3148 = vmatmul.bf16.gmra.mxu0 %v2708
      %v3149 = vpop.f32.mrf.mxu0
      %v3150 = vadd.f32 %v3134, %v3149
      %v3151 = vpop.f32.mrf.mxu0
      %3152 = vdwg.mxu0
      %3153 = vrot.lane.b32.xlu0 %v3118, 126
      %v3154 = vpop.permute.xlu0 %3153
      %v3156 = vsel %vm385, %v3154, 0
      %3158 = vmatpush.bf16.msra.mxu0 0
      %3159 = vmatpush.bf16.msra.mxu0 0
      %3160 = vmatpush.bf16.msra.mxu0 0
      %3161 = vmatpush.bf16.msra.mxu0 0
      %3162 = vmatpush.bf16.msra.mxu0 0
      %3163 = vmatpush.bf16.msra.mxu0 0
      %3164 = vmatpush.bf16.msra.mxu0 0
      %3165 = vmatpush.bf16.msra.mxu0 %v3156
      %3166 = vmatmul.bf16.gmra.mxu0 %v2729
      %v3167 = vpop.f32.mrf.mxu0
      %v3168 = vadd.f32 0.0, %v3167
      %v3169 = vpop.f32.mrf.mxu0
      %3170 = vdwg.mxu0
      %v3171 = vadd.f32 %v3150, %v3168
      %v3172 = vmax.f32 %v3113, %v3171
      %v3173 = vadd.f32 %v3172, %v2810
      %v3174 = vmax.f32 %v3173, 0.0
      %3175 = vst.msk [vmem:[#allocation4 + $0xc] sm:$0xf] %vm2814, %v3174
      %v3176 = vld [vmem:[%s7] sm:$0xf]
      %v3177 = vld [vmem:[%s7 + $0x4] sm:$0xf]
      %v3178 = vld [vmem:[%s7 + $0x8] sm:$0xf]
      %v3179 = vld [vmem:[%s7 + $0xc] sm:$0xf]
      %v3180 = vld [vmem:[#allocation4] sm:$0xff]
      %v3181 = vld [vmem:[#allocation4 + $0x8] sm:$0xff]
      %v3182 = vpack.c.bf16 %v3181, %v3180
      %v3183 = vld [vmem:[%s8] sm:$0xff]
      %v3184 = vld [vmem:[%s8 + $0x8] sm:$0xff]
      %v3185 = vld [vmem:[%s8 + $0x10] sm:$0xff]
      %v3186 = vld [vmem:[%s8 + $0x18] sm:$0xff]
      %3188 = vset.pattern.permute.xlu0 0
      %3189 = vperm.xlu0 %3188, %v3183
      %v3190 = vpop.permute.xlu0 %3189
      %3193 = vset.pattern.permute.xlu0 0
      %3194 = vperm.xlu0 %3193, %v3184
      %v3195 = vpop.permute.xlu0 %3194
      %3198 = vset.pattern.permute.xlu0 0
      %3199 = vperm.xlu0 %3198, %v3185
      %v3200 = vpop.permute.xlu0 %3199
      %3203 = vset.pattern.permute.xlu0 0
      %3204 = vperm.xlu0 %3203, %v3186
      %v3205 = vpop.permute.xlu0 %3204
      %v3211 = vunpack.c.l.b16 %v3176
      %v3212 = vunpack.c.l.b16 %v3177
      %v3213 = vunpack.c.l.b16 %v3178
      %v3214 = vunpack.c.l.b16 %v3179
      %v3215 = vpack.c.b16 %v3212, %v3211
      %v3216 = vpack.c.b16 %v3214, %v3213
      %vm3217 = vcmask 130048
      %v3219 = vsel %vm3217, %v3215, 0
      %v3222 = vsel %vm3217, %v3216, 0
      %3224 = vmatpush.bf16.msra.mxu0 0
      %3225 = vmatpush.bf16.msra.mxu0 0
      %3226 = vmatpush.bf16.msra.mxu0 0
      %3227 = vmatpush.bf16.msra.mxu0 0
      %3228 = vmatpush.bf16.msra.mxu0 0
      %3229 = vmatpush.bf16.msra.mxu0 0
      %3230 = vmatpush.bf16.msra.mxu0 0
      %3231 = vmatpush.bf16.msra.mxu0 %v3182
      %3232 = vmatmul.bf16.gmra.mxu0 %v3219
      %v3233 = vpop.f32.mrf.mxu0
      %v3234 = vadd.f32 %v3190, %v3233
      %v3235 = vpop.f32.mrf.mxu0
      %v3236 = vadd.f32 %v3195, %v3235
      %3237 = vmatmul.bf16.gmra.mxu0 %v3222
      %v3238 = vpop.f32.mrf.mxu0
      %v3239 = vadd.f32 %v3200, %v3238
      %v3240 = vpop.f32.mrf.mxu0
      %v3241 = vadd.f32 %v3205, %v3240
      %3242 = vdwg.mxu0
      %vm3243 = vcmask 64512
      %3244 = vst.msk [vmem:[%s332] sm:$0xff] %vm3243, %v3234
      %3245 = vst.msk [vmem:[%s332 + $0x8] sm:$0xff] %vm3243, %v3236
      %3246 = vst.msk [vmem:[%s332 + $0x10] sm:$0xff] %vm3243, %v3239
      %3247 = vst.msk [vmem:[%s332 + $0x18] sm:$0xff] %vm3243, %v3241
      %p3248 = scmp.lt.s32.totalorder %s20, 1
      %s3249 = scalar_select %p3248, %s20, 1
      %s3250 = smul.addr %s3249, 4
      %s3251 = smul.addr %s3250, 8
      %s3252 = scalar_lea.vmem %s9, %s3251
      // Predicated region
      $region57: #{convstack_forward.1} parent=55 // pred_check
        %p3253 = pneg %p232
      $region58: #{convstack_forward.1} parent=55 // pred_check_branch
        %3255 = sbr.rel (%p3253) target = $region60
      $region59: #{convstack_forward.1} parent=55 // pred_region
        _
      $region60: #{convstack_forward.1} parent=55 // pred_fallthru
        _
    $region56: #{convstack_forward.1} parent=5 // pred_fallthru
      _
    %p3256 = scmp.le.s32.totalorder 2, %s15
    // Predicated region
    $region61: #{convstack_forward.1} parent=5 // pred_check
      %p3257 = pneg %p3256
    $region62: #{convstack_forward.1} parent=5 // pred_check_branch
      %3259 = sbr.rel (%p3257) target = $region64
    $region63: #{convstack_forward.1} parent=5 // pred_region
      %s3260 = ssub.s32 %s15, 2
      // Predicated region
      $region65: #{convstack_forward.1} parent=63 // pred_check
        %p3261 = pneg %p238
      $region66: #{convstack_forward.1} parent=63 // pred_check_branch
        %3263 = sbr.rel (%p3261) target = $region68
      $region67: #{convstack_forward.1} parent=63 // pred_region
        %p3264 = scmp.lt.s32.totalorder %s21, 1
        %s3265 = scalar_select %p3264, %s21, 1
        %s3266 = smul.addr %s3265, 4
        %s3267 = smul.addr %s3266, 8
        %s3268 = scalar_lea.vmem %s9, %s3267
      $region68: #{convstack_forward.1} parent=63 // pred_fallthru
        _
    $region64: #{convstack_forward.1} parent=5 // pred_fallthru
      _
  $region6: #{convstack_forward.1} parent=0 // loop_footer
    %s19 = sadd.s32 1, %s15
  $region7: #{convstack_forward.1} parent=0 // loop_footer_branch
    %14 = sbr.rel target = $region3
  $region8: #{convstack_forward.1} parent=0 // loop_exit
    _

</llo_original>
